<compile_context>
chip_gen: v7x
topology: tpu7x:2x2x1
jax: 0.10.0
libtpu: 0.0.40
codegen_flags: <defaults>
</compile_context>

<pallas_src>
import functools

import jax
import jax.numpy as jnp
from jax.experimental import pallas as pl
from jax.experimental.pallas import tpu as pltpu

ROW_ALIGN = 16   # bf16 packs 2 rows/sublane; 16 keeps both f32 and bf16 tiles dense


def _round_up(v, m):
    return (v + m - 1) // m * m


def _tensorcores_per_chip():
    """Best-effort TensorCores-per-chip: 2 on v7x, 1 on v5e/v6e (and on failure)."""
    try:
        kind = jax.devices()[0].device_kind.lower()
        if "v7" in kind:
            return 2
    except Exception:
        pass
    return 1


def mlp_kernel(x_ref, w1_ref, b1_ref, w2_ref, b2_ref, w3_ref, b3_ref, o_ref,
               *, use_bf16):
    """Fused Linear->ReLU->Linear->ReLU->Linear on one (tile_m, d_in) row tile.

    Inputs arrive in f32 straight from HBM; any bf16 cast happens in-register.
    Accumulation, bias add and ReLU run in f32 on the VPU.
    """
    if use_bf16:
        def dense(h, w_ref, b_ref):
            acc = jnp.dot(h.astype(jnp.bfloat16), w_ref[...].astype(jnp.bfloat16),
                          preferred_element_type=jnp.float32)
            return acc + b_ref[...]
    else:
        def dense(h, w_ref, b_ref):
            acc = jnp.dot(h, w_ref[...], preferred_element_type=jnp.float32,
                          precision=jax.lax.Precision.HIGHEST)
            return acc + b_ref[...]

    h = jnp.maximum(dense(x_ref[...], w1_ref, b1_ref), 0.0)    # layer 1 + ReLU
    h = jnp.maximum(dense(h, w2_ref, b2_ref), 0.0)             # layer 2 + ReLU
    o_ref[...] = dense(h, w3_ref, b3_ref).astype(o_ref.dtype)  # output head (no act)


@functools.partial(jax.jit,
                   static_argnames=("tile_m", "core_split", "use_bf16"))
def _mlp_pallas(x, w1, b1, w2, b2, w3, b3, *, tile_m, core_split, use_bf16):
    n, d_in = x.shape
    d_h1 = w1.shape[1]
    d_h2 = w2.shape[1]
    d_out = w3.shape[1]
    grid = (n // tile_m,)

    rows = lambda i: (i, 0)
    whole = lambda i: (0, 0)

    # Grid-invariant parameters: single-buffered (no pointless double buffer).
    def param_spec(shape):
        return pl.BlockSpec(shape, whole, pipeline_mode=pl.Buffered(1))

    # Rough VMEM estimate (bytes): double-buffered x/out row tiles + resident
    # params + f32 intermediates, x2 margin.  Clamped to [32 MiB, 64 MiB].
    est = 4 * (2 * tile_m * (d_in + d_out)
               + (d_in * d_h1 + d_h1 * d_h2 + d_h2 * d_out + d_h1 + d_h2 + d_out)
               + 4 * tile_m * max(d_h1, d_h2))
    vmem_limit = min(max(2 * est, 32 << 20), 64 << 20)

    if core_split:
        # Only core-parallel semantics actually shard the grid across v7x's 2 TCs.
        semantics = (getattr(pltpu, "CORE_PARALLEL", "parallel"),)
    else:
        semantics = ("arbitrary",)

    return pl.pallas_call(
        functools.partial(mlp_kernel, use_bf16=use_bf16),
        out_shape=jax.ShapeDtypeStruct((n, d_out), jnp.float32),
        grid_spec=pltpu.PrefetchScalarGridSpec(
            num_scalar_prefetch=0,
            grid=grid,
            in_specs=[
                pl.BlockSpec((tile_m, d_in), rows),  # x row tile (f32, unpadded)
                param_spec((d_in, d_h1)),            # W1
                param_spec((1, d_h1)),               # b1
                param_spec((d_h1, d_h2)),            # W2
                param_spec((1, d_h2)),               # b2
                param_spec((d_h2, d_out)),           # W3
                param_spec((1, d_out)),              # b3
            ],
            out_specs=pl.BlockSpec((tile_m, d_out), rows),   # true d_out, no pad
        ),
        compiler_params=pltpu.CompilerParams(
            dimension_semantics=semantics,
            vmem_limit_bytes=vmem_limit,
        ),
    )(x, w1, b1, w2, b2, w3, b3)


def mlp_forward(x, params, use_bf16=False):
    """Forward pass of MLP (bn=False). x: (n, d_in) f32; params: 3x (W(in,out), b(1,out))."""
    (w1, b1), (w2, b2), (w3, b3) = params
    n = x.shape[0]

    cores = _tensorcores_per_chip()
    tile_cap = 256 if cores > 1 else 512   # v7x has 64 MiB VMEM -> smaller row cap

    core_split = False
    if cores > 1 and n >= 2 * ROW_ALIGN and n % (cores * ROW_ALIGN) == 0:
        tile_m = min(n // cores, tile_cap)   # one (or a few) row tiles per TensorCore
        core_split = True
    elif n <= tile_cap:
        tile_m = n                           # single grid step: no padding, no slice
    else:
        tile_m = tile_cap

    n_pad = _round_up(n, tile_m)
    x_in = x if n_pad == n else jnp.pad(x, ((0, n_pad - n), (0, 0)))

    out = _mlp_pallas(x_in, w1, b1, w2, b2, w3, b3,
                      tile_m=tile_m, core_split=core_split, use_bf16=use_bf16)
    return out if n_pad == n else out[:n]


def init_linear(key, fan_in, fan_out):
    """Match PyTorch: xavier_uniform_(weight, gain=calculate_gain('relu')),
    default Linear bias init = U(-1/sqrt(fan_in), 1/sqrt(fan_in))."""
    kw, kb = jax.random.split(key)
    gain = jnp.sqrt(2.0)  # calculate_gain('relu')
    bound_w = gain * jnp.sqrt(6.0 / (fan_in + fan_out))
    # Stored as (in, out) so the forward is x @ W + b.
    w = jax.random.uniform(kw, (fan_in, fan_out), jnp.float32, -bound_w, bound_w)
    bound_b = 1.0 / jnp.sqrt(fan_in)
    b = jax.random.uniform(kb, (1, fan_out), jnp.float32, -bound_b, bound_b)
    return w, b


def mlp_reference(x, params):
    """Pure-f32 reference matching the PyTorch module."""
    (w1, b1), (w2, b2), (w3, b3) = params
    hp = jax.lax.Precision.HIGHEST
    h = jnp.maximum(jnp.dot(x, w1, precision=hp) + b1, 0.0)
    h = jnp.maximum(jnp.dot(h, w2, precision=hp) + b2, 0.0)
    return jnp.dot(h, w3, precision=hp) + b3


if __name__ == "__main__":
    # MLP(input_dim=32, output_dim=16) with defaults:
    # num_hidden_lyr=2, hidden_channels=[32, 32], activation='relu', bn=False.
    input_dim, output_dim = 32, 16
    hidden = [input_dim, input_dim]
    batch = 128

    key = jax.random.PRNGKey(0)
    kx, k1, k2, k3 = jax.random.split(key, 4)

    x = jax.random.normal(kx, (batch, input_dim), jnp.float32)
    params = (
        init_linear(k1, input_dim, hidden[0]),
        init_linear(k2, hidden[0], hidden[1]),
        init_linear(k3, hidden[1], output_dim),
    )

    out = jax.block_until_ready(mlp_forward(x, params))
    assert out.shape == (batch, output_dim)

    # f32 matmuls in-kernel -> observed max abs error vs. the f32 reference is
    # ~1e-5; tolerance kept loose enough to be robust across chip generations
    # while still catching any real structural bug.
    ref = mlp_reference(x, params)
    err = float(jnp.max(jnp.abs(out - ref)))
    assert jnp.allclose(out, ref, atol=2e-2, rtol=2e-2), err

    print("KERNEL_OK")
</pallas_src>

<mosaic_0001>
module attributes {stable_mosaic.version = 11 : i64} {
  func.func @mlp_kernel(%arg0: i32, %arg1: memref<128x32xf32, #tpu.memory_space<vmem>>, %arg2: memref<32x32xf32, #tpu.memory_space<vmem>>, %arg3: memref<1x32xf32, #tpu.memory_space<vmem>>, %arg4: memref<32x32xf32, #tpu.memory_space<vmem>>, %arg5: memref<1x32xf32, #tpu.memory_space<vmem>>, %arg6: memref<32x16xf32, #tpu.memory_space<vmem>>, %arg7: memref<1x16xf32, #tpu.memory_space<vmem>>, %arg8: memref<128x16xf32, #tpu.memory_space<vmem>>) attributes {dimension_semantics = [#tpu.dimension_semantics<arbitrary>], iteration_bounds = array<i64: 1>, scalar_prefetch = 0 : i64, scratch_operands = 0 : i64, tpu.core_type = #tpu.core_type<tc>, window_params = [{transform_indices = @transform_0, window_bounds = array<i64: 128, 32>}, {pipeline_mode = #tpu.pipeline_mode<synchronous>, transform_indices = @transform_1, window_bounds = array<i64: 32, 32>}, {pipeline_mode = #tpu.pipeline_mode<synchronous>, transform_indices = @transform_2, window_bounds = array<i64: 1, 32>}, {pipeline_mode = #tpu.pipeline_mode<synchronous>, transform_indices = @transform_3, window_bounds = array<i64: 32, 32>}, {pipeline_mode = #tpu.pipeline_mode<synchronous>, transform_indices = @transform_4, window_bounds = array<i64: 1, 32>}, {pipeline_mode = #tpu.pipeline_mode<synchronous>, transform_indices = @transform_5, window_bounds = array<i64: 32, 16>}, {pipeline_mode = #tpu.pipeline_mode<synchronous>, transform_indices = @transform_6, window_bounds = array<i64: 1, 16>}, {transform_indices = @transform_7, window_bounds = array<i64: 128, 16>}]} {
    %c0 = arith.constant 0 : index
    %c0_0 = arith.constant 0 : index
    %0 = vector.load %arg1[%c0, %c0_0] : memref<128x32xf32, #tpu.memory_space<vmem>>, vector<128x32xf32>
    %c0_1 = arith.constant 0 : index
    %c0_2 = arith.constant 0 : index
    %1 = vector.load %arg2[%c0_1, %c0_2] : memref<32x32xf32, #tpu.memory_space<vmem>>, vector<32x32xf32>
    %cst = arith.constant dense<0.000000e+00> : vector<128x32xf32>
    %2 = tpu.matmul %0, %1, %cst {dimension_numbers = #tpu.dot_dimension_numbers<[1], [0], [0], [1], [0, 0, 1, 1], [], []>, precision = #tpu.contract_precision<fp32>} : vector<128x32xf32>, vector<32x32xf32>, vector<128x32xf32> -> vector<128x32xf32>
    %c0_3 = arith.constant 0 : index
    %c0_4 = arith.constant 0 : index
    %3 = vector.load %arg3[%c0_3, %c0_4] : memref<1x32xf32, #tpu.memory_space<vmem>>, vector<1x32xf32>
    %4 = vector.broadcast %3 : vector<1x32xf32> to vector<128x32xf32>
    %5 = arith.addf %2, %4 : vector<128x32xf32>
    %cst_5 = arith.constant 0.000000e+00 : f32
    %6 = vector.broadcast %cst_5 : f32 to vector<128x32xf32>
    %7 = arith.maximumf %5, %6 : vector<128x32xf32>
    %c0_6 = arith.constant 0 : index
    %c0_7 = arith.constant 0 : index
    %8 = vector.load %arg4[%c0_6, %c0_7] : memref<32x32xf32, #tpu.memory_space<vmem>>, vector<32x32xf32>
    %cst_8 = arith.constant dense<0.000000e+00> : vector<128x32xf32>
    %9 = tpu.matmul %7, %8, %cst_8 {dimension_numbers = #tpu.dot_dimension_numbers<[1], [0], [0], [1], [0, 0, 1, 1], [], []>, precision = #tpu.contract_precision<fp32>} : vector<128x32xf32>, vector<32x32xf32>, vector<128x32xf32> -> vector<128x32xf32>
    %c0_9 = arith.constant 0 : index
    %c0_10 = arith.constant 0 : index
    %10 = vector.load %arg5[%c0_9, %c0_10] : memref<1x32xf32, #tpu.memory_space<vmem>>, vector<1x32xf32>
    %11 = vector.broadcast %10 : vector<1x32xf32> to vector<128x32xf32>
    %12 = arith.addf %9, %11 : vector<128x32xf32>
    %cst_11 = arith.constant 0.000000e+00 : f32
    %13 = vector.broadcast %cst_11 : f32 to vector<128x32xf32>
    %14 = arith.maximumf %12, %13 : vector<128x32xf32>
    %c0_12 = arith.constant 0 : index
    %c0_13 = arith.constant 0 : index
    %15 = vector.load %arg6[%c0_12, %c0_13] : memref<32x16xf32, #tpu.memory_space<vmem>>, vector<32x16xf32>
    %cst_14 = arith.constant dense<0.000000e+00> : vector<128x16xf32>
    %16 = tpu.matmul %14, %15, %cst_14 {dimension_numbers = #tpu.dot_dimension_numbers<[1], [0], [0], [1], [0, 0, 1, 1], [], []>, precision = #tpu.contract_precision<fp32>} : vector<128x32xf32>, vector<32x16xf32>, vector<128x16xf32> -> vector<128x16xf32>
    %c0_15 = arith.constant 0 : index
    %c0_16 = arith.constant 0 : index
    %17 = vector.load %arg7[%c0_15, %c0_16] : memref<1x16xf32, #tpu.memory_space<vmem>>, vector<1x16xf32>
    %18 = vector.broadcast %17 : vector<1x16xf32> to vector<128x16xf32>
    %19 = arith.addf %16, %18 : vector<128x16xf32>
    %c0_17 = arith.constant 0 : index
    %c0_18 = arith.constant 0 : index
    %20 = vector.load %arg8[%c0_17, %c0_18] : memref<128x16xf32, #tpu.memory_space<vmem>>, vector<128x16xf32>
    tpu.vector_store %arg8[%c0_17, %c0_18], %19 {strides = array<i32>} : memref<128x16xf32, #tpu.memory_space<vmem>>, vector<128x16xf32>,
    return
  }
  func.func @transform_0(%arg0: i32) -> (i32, i32) {
    %c0_i32 = arith.constant 0 : i32
    %c0_i32_0 = arith.constant 0 : i32
    return %arg0, %c0_i32 : i32, i32
  }
  func.func @transform_1(%arg0: i32) -> (i32, i32) {
    %c0_i32 = arith.constant 0 : i32
    %c0_i32_0 = arith.constant 0 : i32
    %c0_i32_1 = arith.constant 0 : i32
    return %c0_i32, %c0_i32_0 : i32, i32
  }
  func.func @transform_2(%arg0: i32) -> (i32, i32) {
    %c0_i32 = arith.constant 0 : i32
    %c0_i32_0 = arith.constant 0 : i32
    %c0_i32_1 = arith.constant 0 : i32
    return %c0_i32, %c0_i32_0 : i32, i32
  }
  func.func @transform_3(%arg0: i32) -> (i32, i32) {
    %c0_i32 = arith.constant 0 : i32
    %c0_i32_0 = arith.constant 0 : i32
    %c0_i32_1 = arith.constant 0 : i32
    return %c0_i32, %c0_i32_0 : i32, i32
  }
  func.func @transform_4(%arg0: i32) -> (i32, i32) {
    %c0_i32 = arith.constant 0 : i32
    %c0_i32_0 = arith.constant 0 : i32
    %c0_i32_1 = arith.constant 0 : i32
    return %c0_i32, %c0_i32_0 : i32, i32
  }
  func.func @transform_5(%arg0: i32) -> (i32, i32) {
    %c0_i32 = arith.constant 0 : i32
    %c0_i32_0 = arith.constant 0 : i32
    %c0_i32_1 = arith.constant 0 : i32
    return %c0_i32, %c0_i32_0 : i32, i32
  }
  func.func @transform_6(%arg0: i32) -> (i32, i32) {
    %c0_i32 = arith.constant 0 : i32
    %c0_i32_0 = arith.constant 0 : i32
    %c0_i32_1 = arith.constant 0 : i32
    return %c0_i32, %c0_i32_0 : i32, i32
  }
  func.func @transform_7(%arg0: i32) -> (i32, i32) {
    %c0_i32 = arith.constant 0 : i32
    %c0_i32_0 = arith.constant 0 : i32
    return %arg0, %c0_i32 : i32, i32
  }
}

</mosaic_0001>

<llo_original>
// kernel: _mlp_pallas.1
$region0: #{_mlp_pallas.1}
  #allocation0 [shape = 'u32[]', space=smem, size = 0x4, offset = 0x4, fixed_abs, tag = 'smem constant byte address 0x4 - core index']
  #allocation1 [shape = 'u32[144,128]{1,0:T(1,128)}', space=vmem, size = 0x12000, scoped, tag = 'internal scratch']
  %s0 = inlined_call_operand.vmem [shape: f32[128,32], index: 0, kind: input, shape index: {}]
  %s1 = inlined_call_operand.vmem [shape: f32[32,32], index: 1, kind: input, shape index: {}]
  %s2 = inlined_call_operand.vmem [shape: f32[1,32], index: 2, kind: input, shape index: {}]
  %s3 = inlined_call_operand.vmem [shape: f32[32,32], index: 3, kind: input, shape index: {}]
  %s4 = inlined_call_operand.vmem [shape: f32[1,32], index: 4, kind: input, shape index: {}]
  %s5 = inlined_call_operand.vmem [shape: f32[32,16], index: 5, kind: input, shape index: {}]
  %s6 = inlined_call_operand.vmem [shape: f32[1,16], index: 6, kind: input, shape index: {}]
  %s7 = inlined_call_operand.vmem [shape: f32[128,16], index: 7, kind: output, shape index: {}]
  %s8 = sld [smem:[#allocation0]]
  $region38: #{_mlp_pallas.1} parent=0
    _
  %s10 = ssub.s32 1, %s8
  %s11 = scalar_select 0, %s10, %s8
  // Predicated region
  $region2: #{_mlp_pallas.1} parent=0 // pred_check
    _
  $region3: #{_mlp_pallas.1} parent=0 // pred_check_branch
    %13 = sbr.rel (0) target = $region5
  $region4: #{_mlp_pallas.1} parent=0 // pred_region
    _
  $region5: #{_mlp_pallas.1} parent=0 // pred_fallthru
    _
  // Predicated region
  $region6: #{_mlp_pallas.1} parent=0 // pred_check
    _
  $region7: #{_mlp_pallas.1} parent=0 // pred_check_branch
    %15 = sbr.rel (0) target = $region9
  $region8: #{_mlp_pallas.1} parent=0 // pred_region
    _
  $region9: #{_mlp_pallas.1} parent=0 // pred_fallthru
    _
  // Predicated region
  $region10: #{_mlp_pallas.1} parent=0 // pred_check
    _
  $region11: #{_mlp_pallas.1} parent=0 // pred_check_branch
    %17 = sbr.rel (0) target = $region13
  $region12: #{_mlp_pallas.1} parent=0 // pred_region
    _
  $region13: #{_mlp_pallas.1} parent=0 // pred_fallthru
    _
  // Predicated region
  $region14: #{_mlp_pallas.1} parent=0 // pred_check
    _
  $region15: #{_mlp_pallas.1} parent=0 // pred_check_branch
    %19 = sbr.rel (0) target = $region17
  $region16: #{_mlp_pallas.1} parent=0 // pred_region
    _
  $region17: #{_mlp_pallas.1} parent=0 // pred_fallthru
    _
  // Predicated region
  $region18: #{_mlp_pallas.1} parent=0 // pred_check
    _
  $region19: #{_mlp_pallas.1} parent=0 // pred_check_branch
    %21 = sbr.rel (0) target = $region21
  $region20: #{_mlp_pallas.1} parent=0 // pred_region
    _
  $region21: #{_mlp_pallas.1} parent=0 // pred_fallthru
    _
  // Predicated region
  $region22: #{_mlp_pallas.1} parent=0 // pred_check
    _
  $region23: #{_mlp_pallas.1} parent=0 // pred_check_branch
    %23 = sbr.rel (0) target = $region25
  $region24: #{_mlp_pallas.1} parent=0 // pred_region
    _
  $region25: #{_mlp_pallas.1} parent=0 // pred_fallthru
    _
  // Predicated region
  $region26: #{_mlp_pallas.1} parent=0 // pred_check
    _
  $region27: #{_mlp_pallas.1} parent=0 // pred_check_branch
    %25 = sbr.rel (0) target = $region29
  $region28: #{_mlp_pallas.1} parent=0 // pred_region
    _
  $region29: #{_mlp_pallas.1} parent=0 // pred_fallthru
    _
  %v26 = vld [vmem:[%s0] sm:$0xff]
  %v27 = vld [vmem:[%s0 + $0x8] sm:$0xff]
  %v28 = vld [vmem:[%s0 + $0x10] sm:$0xff]
  %v29 = vld [vmem:[%s0 + $0x18] sm:$0xff]
  %v30 = vld [vmem:[%s0 + $0x20] sm:$0xff]
  %v31 = vld [vmem:[%s0 + $0x28] sm:$0xff]
  %v32 = vld [vmem:[%s0 + $0x30] sm:$0xff]
  %v33 = vld [vmem:[%s0 + $0x38] sm:$0xff]
  %v34 = vld [vmem:[%s0 + $0x40] sm:$0xff]
  %v35 = vld [vmem:[%s0 + $0x48] sm:$0xff]
  %v36 = vld [vmem:[%s0 + $0x50] sm:$0xff]
  %v37 = vld [vmem:[%s0 + $0x58] sm:$0xff]
  %v38 = vld [vmem:[%s0 + $0x60] sm:$0xff]
  %v39 = vld [vmem:[%s0 + $0x68] sm:$0xff]
  %v40 = vld [vmem:[%s0 + $0x70] sm:$0xff]
  %v41 = vld [vmem:[%s0 + $0x78] sm:$0xff]
  %v42 = vld [vmem:[%s1] sm:$0xff]
  %v43 = vld [vmem:[%s1 + $0x8] sm:$0xff]
  %v44 = vld [vmem:[%s1 + $0x10] sm:$0xff]
  %v45 = vld [vmem:[%s1 + $0x18] sm:$0xff]
  %v46 = vld [vmem:[%s2] sm:$0x1]
  %v48 = vlaneseq
  %v49 = vshrl.u32 %v48, 7
  %v50 = vsub.s32 0, %v49
  %v51 = vrot.slane %v46, %v50
  %vm53 = vcmask 261120
  %v55 = vsel %vm53, %v26, 0
  %v58 = vsel %vm53, %v27, 0
  %v61 = vsel %vm53, %v28, 0
  %v64 = vsel %vm53, %v29, 0
  %v67 = vsel %vm53, %v30, 0
  %v70 = vsel %vm53, %v31, 0
  %v73 = vsel %vm53, %v32, 0
  %v76 = vsel %vm53, %v33, 0
  %v79 = vsel %vm53, %v34, 0
  %v82 = vsel %vm53, %v35, 0
  %v85 = vsel %vm53, %v36, 0
  %v88 = vsel %vm53, %v37, 0
  %v91 = vsel %vm53, %v38, 0
  %v94 = vsel %vm53, %v39, 0
  %v97 = vsel %vm53, %v40, 0
  %v100 = vsel %vm53, %v41, 0
  %102 = vmatprep.subr.mxu0 0.0
  %v103 = vand.u32 %v42, 4294901760
  %104 = vmatpush1.msra.mxu0 %v103
  %105 = vmatprep.subr.mxu0 0.0
  %v106 = vand.u32 %v43, 4294901760
  %107 = vmatpush1.msra.mxu0 %v106
  %108 = vmatprep.subr.mxu0 0.0
  %v109 = vand.u32 %v44, 4294901760
  %110 = vmatpush1.msra.mxu0 %v109
  %111 = vmatprep.subr.mxu0 0.0
  %v112 = vand.u32 %v45, 4294901760
  %113 = vmatpush1.msra.mxu0 %v112
  %114 = vmatprep.subr.mxu0 0.0
  %115 = vmatpush1.msra.mxu0 0.0
  %116 = vmatprep.subr.mxu0 0.0
  %117 = vmatpush1.msra.mxu0 0.0
  %118 = vmatprep.subr.mxu0 0.0
  %119 = vmatpush1.msra.mxu0 0.0
  %120 = vmatprep.subr.mxu0 0.0
  %121 = vmatpush1.msra.mxu0 0.0
  %122 = vmatprep.subr.mxu0 0.0
  %123 = vmatpush1.msra.mxu0 0.0
  %124 = vmatprep.subr.mxu0 0.0
  %125 = vmatpush1.msra.mxu0 0.0
  %126 = vmatprep.subr.mxu0 0.0
  %127 = vmatpush1.msra.mxu0 0.0
  %128 = vmatprep.subr.mxu0 0.0
  %129 = vmatpush1.msra.mxu0 0.0
  %130 = vmatprep.subr.mxu0 0.0
  %131 = vmatpush1.msra.mxu0 0.0
  %132 = vmatprep.subr.mxu0 0.0
  %133 = vmatpush1.msra.mxu0 0.0
  %134 = vmatprep.subr.mxu0 0.0
  %135 = vmatpush1.msra.mxu0 0.0
  %136 = vmatprep.subr.mxu0 0.0
  %137 = vmatpush1.msra.mxu0 0.0
  %138 = vmatprep.subr.mxu0 0.0
  %139 = vmatpush1.msra.mxu0 0.0
  %140 = vmatprep.subr.mxu0 0.0
  %141 = vmatpush1.msra.mxu0 0.0
  %142 = vmatprep.subr.mxu0 0.0
  %143 = vmatpush1.msra.mxu0 0.0
  %144 = vmatprep.subr.mxu0 0.0
  %145 = vmatpush1.msra.mxu0 0.0
  %146 = vmatprep.subr.mxu0 0.0
  %147 = vmatpush1.msra.mxu0 0.0
  %148 = vmatprep.subr.mxu0 0.0
  %149 = vmatpush1.msra.mxu0 0.0
  %150 = vmatprep.subr.mxu0 0.0
  %151 = vmatpush1.msra.mxu0 0.0
  %152 = vmatprep.subr.mxu0 0.0
  %153 = vmatpush1.msra.mxu0 0.0
  %154 = vmatprep.subr.mxu0 0.0
  %155 = vmatpush1.msra.mxu0 0.0
  %156 = vmatprep.subr.mxu0 0.0
  %157 = vmatpush1.msra.mxu0 0.0
  %158 = vmatprep.subr.mxu0 0.0
  %159 = vmatpush1.msra.mxu0 0.0
  %160 = vmatprep.subr.mxu0 0.0
  %161 = vmatpush1.msra.mxu0 0.0
  %162 = vmatprep.subr.mxu0 0.0
  %163 = vmatpush1.msra.mxu0 0.0
  %164 = vmatprep.subr.mxu0 0.0
  %165 = vmatpush1.msra.mxu0 0.0
  %166 = vmatprep.subr.mxu0 0.0
  %167 = vmatpush1.msra.mxu0 0.0
  %168 = vmatprep.subr.mxu0 0.0
  %169 = vmatpush1.msra.mxu0 0.0
  %170 = vmatprep.mubr.f32.mxu0 0.0
  %v171 = vand.u32 %v55, 4294901760
  %v172 = vsub.f32 %v55, %v171
  %v173 = vand.u32 %v172, 4294901760
  %v174 = vsub.f32 %v172, %v173
  %v175 = vand.u32 %v174, 4294901760
  %176 = vmatmul.mubr.f32.gmra.mrb[0].mxu0 %v175
  %v177 = vpop.f32.mrb[0].mxu0
  %v178 = vadd.f32 %v51, %v177
  %v179 = vpop.f32.mrb[0].mxu0
  %180 = vmatprep.mubr.f32.mxu0 0.0
  %v181 = vand.u32 %v58, 4294901760
  %v182 = vsub.f32 %v58, %v181
  %v183 = vand.u32 %v182, 4294901760
  %v184 = vsub.f32 %v182, %v183
  %v185 = vand.u32 %v184, 4294901760
  %186 = vmatmul.mubr.f32.gmra.mrb[0].mxu0 %v185
  %v187 = vpop.f32.mrb[0].mxu0
  %v188 = vadd.f32 %v51, %v187
  %v189 = vpop.f32.mrb[0].mxu0
  %190 = vmatprep.mubr.f32.mxu0 0.0
  %v191 = vand.u32 %v61, 4294901760
  %v192 = vsub.f32 %v61, %v191
  %v193 = vand.u32 %v192, 4294901760
  %v194 = vsub.f32 %v192, %v193
  %v195 = vand.u32 %v194, 4294901760
  %196 = vmatmul.mubr.f32.gmra.mrb[0].mxu0 %v195
  %v197 = vpop.f32.mrb[0].mxu0
  %v198 = vadd.f32 %v51, %v197
  %v199 = vpop.f32.mrb[0].mxu0
  %200 = vmatprep.mubr.f32.mxu0 0.0
  %v201 = vand.u32 %v64, 4294901760
  %v202 = vsub.f32 %v64, %v201
  %v203 = vand.u32 %v202, 4294901760
  %v204 = vsub.f32 %v202, %v203
  %v205 = vand.u32 %v204, 4294901760
  %206 = vmatmul.mubr.f32.gmra.mrb[0].mxu0 %v205
  %v207 = vpop.f32.mrb[0].mxu0
  %v208 = vadd.f32 %v51, %v207
  %v209 = vpop.f32.mrb[0].mxu0
  %210 = vmatprep.mubr.f32.mxu0 0.0
  %v211 = vand.u32 %v67, 4294901760
  %v212 = vsub.f32 %v67, %v211
  %v213 = vand.u32 %v212, 4294901760
  %v214 = vsub.f32 %v212, %v213
  %v215 = vand.u32 %v214, 4294901760
  %216 = vmatmul.mubr.f32.gmra.mrb[0].mxu0 %v215
  %v217 = vpop.f32.mrb[0].mxu0
  %v218 = vadd.f32 %v51, %v217
  %v219 = vpop.f32.mrb[0].mxu0
  %220 = vmatprep.mubr.f32.mxu0 0.0
  %v221 = vand.u32 %v70, 4294901760
  %v222 = vsub.f32 %v70, %v221
  %v223 = vand.u32 %v222, 4294901760
  %v224 = vsub.f32 %v222, %v223
  %v225 = vand.u32 %v224, 4294901760
  %226 = vmatmul.mubr.f32.gmra.mrb[0].mxu0 %v225
  %v227 = vpop.f32.mrb[0].mxu0
  %v228 = vadd.f32 %v51, %v227
  %v229 = vpop.f32.mrb[0].mxu0
  %230 = vmatprep.mubr.f32.mxu0 0.0
  %v231 = vand.u32 %v73, 4294901760
  %v232 = vsub.f32 %v73, %v231
  %v233 = vand.u32 %v232, 4294901760
  %v234 = vsub.f32 %v232, %v233
  %v235 = vand.u32 %v234, 4294901760
  %236 = vmatmul.mubr.f32.gmra.mrb[0].mxu0 %v235
  %v237 = vpop.f32.mrb[0].mxu0
  %v238 = vadd.f32 %v51, %v237
  %v239 = vpop.f32.mrb[0].mxu0
  %240 = vmatprep.mubr.f32.mxu0 0.0
  %v241 = vand.u32 %v76, 4294901760
  %v242 = vsub.f32 %v76, %v241
  %v243 = vand.u32 %v242, 4294901760
  %v244 = vsub.f32 %v242, %v243
  %v245 = vand.u32 %v244, 4294901760
  %246 = vmatmul.mubr.f32.gmra.mrb[0].mxu0 %v245
  %v247 = vpop.f32.mrb[0].mxu0
  %v248 = vadd.f32 %v51, %v247
  %v249 = vpop.f32.mrb[0].mxu0
  %250 = vmatprep.mubr.f32.mxu0 0.0
  %v251 = vand.u32 %v79, 4294901760
  %v252 = vsub.f32 %v79, %v251
  %v253 = vand.u32 %v252, 4294901760
  %v254 = vsub.f32 %v252, %v253
  %v255 = vand.u32 %v254, 4294901760
  %256 = vmatmul.mubr.f32.gmra.mrb[0].mxu0 %v255
  %v257 = vpop.f32.mrb[0].mxu0
  %v258 = vadd.f32 %v51, %v257
  %v259 = vpop.f32.mrb[0].mxu0
  %260 = vmatprep.mubr.f32.mxu0 0.0
  %v261 = vand.u32 %v82, 4294901760
  %v262 = vsub.f32 %v82, %v261
  %v263 = vand.u32 %v262, 4294901760
  %v264 = vsub.f32 %v262, %v263
  %v265 = vand.u32 %v264, 4294901760
  %266 = vmatmul.mubr.f32.gmra.mrb[0].mxu0 %v265
  %v267 = vpop.f32.mrb[0].mxu0
  %v268 = vadd.f32 %v51, %v267
  %v269 = vpop.f32.mrb[0].mxu0
  %270 = vmatprep.mubr.f32.mxu0 0.0
  %v271 = vand.u32 %v85, 4294901760
  %v272 = vsub.f32 %v85, %v271
  %v273 = vand.u32 %v272, 4294901760
  %v274 = vsub.f32 %v272, %v273
  %v275 = vand.u32 %v274, 4294901760
  %276 = vmatmul.mubr.f32.gmra.mrb[0].mxu0 %v275
  %v277 = vpop.f32.mrb[0].mxu0
  %v278 = vadd.f32 %v51, %v277
  %v279 = vpop.f32.mrb[0].mxu0
  %280 = vmatprep.mubr.f32.mxu0 0.0
  %v281 = vand.u32 %v88, 4294901760
  %v282 = vsub.f32 %v88, %v281
  %v283 = vand.u32 %v282, 4294901760
  %v284 = vsub.f32 %v282, %v283
  %v285 = vand.u32 %v284, 4294901760
  %286 = vmatmul.mubr.f32.gmra.mrb[0].mxu0 %v285
  %v287 = vpop.f32.mrb[0].mxu0
  %v288 = vadd.f32 %v51, %v287
  %v289 = vpop.f32.mrb[0].mxu0
  %290 = vmatprep.mubr.f32.mxu0 0.0
  %v291 = vand.u32 %v91, 4294901760
  %v292 = vsub.f32 %v91, %v291
  %v293 = vand.u32 %v292, 4294901760
  %v294 = vsub.f32 %v292, %v293
  %v295 = vand.u32 %v294, 4294901760
  %296 = vmatmul.mubr.f32.gmra.mrb[0].mxu0 %v295
  %v297 = vpop.f32.mrb[0].mxu0
  %v298 = vadd.f32 %v51, %v297
  %v299 = vpop.f32.mrb[0].mxu0
  %300 = vmatprep.mubr.f32.mxu0 0.0
  %v301 = vand.u32 %v94, 4294901760
  %v302 = vsub.f32 %v94, %v301
  %v303 = vand.u32 %v302, 4294901760
  %v304 = vsub.f32 %v302, %v303
  %v305 = vand.u32 %v304, 4294901760
  %306 = vmatmul.mubr.f32.gmra.mrb[0].mxu0 %v305
  %v307 = vpop.f32.mrb[0].mxu0
  %v308 = vadd.f32 %v51, %v307
  %v309 = vpop.f32.mrb[0].mxu0
  %310 = vmatprep.mubr.f32.mxu0 0.0
  %v311 = vand.u32 %v97, 4294901760
  %v312 = vsub.f32 %v97, %v311
  %v313 = vand.u32 %v312, 4294901760
  %v314 = vsub.f32 %v312, %v313
  %v315 = vand.u32 %v314, 4294901760
  %316 = vmatmul.mubr.f32.gmra.mrb[0].mxu0 %v315
  %v317 = vpop.f32.mrb[0].mxu0
  %v318 = vadd.f32 %v51, %v317
  %v319 = vpop.f32.mrb[0].mxu0
  %320 = vmatprep.mubr.f32.mxu0 0.0
  %v321 = vand.u32 %v100, 4294901760
  %v322 = vsub.f32 %v100, %v321
  %v323 = vand.u32 %v322, 4294901760
  %v324 = vsub.f32 %v322, %v323
  %v325 = vand.u32 %v324, 4294901760
  %326 = vmatmul.mubr.f32.gmra.mrb[0].mxu0 %v325
  %v327 = vpop.f32.mrb[0].mxu0
  %v328 = vadd.f32 %v51, %v327
  %v329 = vpop.f32.mrb[0].mxu0
  %330 = vdwg.mxu0
  %331 = vmatprep.subr.mxu0 0.0
  %v332 = vand.u32 %v42, 4294901760
  %v333 = vsub.f32 %v42, %v332
  %v334 = vand.u32 %v333, 4294901760
  %v335 = vsub.f32 %v333, %v334
  %v336 = vand.u32 %v335, 4294901760
  %337 = vmatpush1.msra.mxu0 %v336
  %338 = vmatprep.subr.mxu0 0.0
  %v339 = vand.u32 %v43, 4294901760
  %v340 = vsub.f32 %v43, %v339
  %v341 = vand.u32 %v340, 4294901760
  %v342 = vsub.f32 %v340, %v341
  %v343 = vand.u32 %v342, 4294901760
  %344 = vmatpush1.msra.mxu0 %v343
  %345 = vmatprep.subr.mxu0 0.0
  %v346 = vand.u32 %v44, 4294901760
  %v347 = vsub.f32 %v44, %v346
  %v348 = vand.u32 %v347, 4294901760
  %v349 = vsub.f32 %v347, %v348
  %v350 = vand.u32 %v349, 4294901760
  %351 = vmatpush1.msra.mxu0 %v350
  %352 = vmatprep.subr.mxu0 0.0
  %v353 = vand.u32 %v45, 4294901760
  %v354 = vsub.f32 %v45, %v353
  %v355 = vand.u32 %v354, 4294901760
  %v356 = vsub.f32 %v354, %v355
  %v357 = vand.u32 %v356, 4294901760
  %358 = vmatpush1.msra.mxu0 %v357
  %359 = vmatprep.subr.mxu0 0.0
  %360 = vmatpush1.msra.mxu0 0.0
  %361 = vmatprep.subr.mxu0 0.0
  %362 = vmatpush1.msra.mxu0 0.0
  %363 = vmatprep.subr.mxu0 0.0
  %364 = vmatpush1.msra.mxu0 0.0
  %365 = vmatprep.subr.mxu0 0.0
  %366 = vmatpush1.msra.mxu0 0.0
  %367 = vmatprep.subr.mxu0 0.0
  %368 = vmatpush1.msra.mxu0 0.0
  %369 = vmatprep.subr.mxu0 0.0
  %370 = vmatpush1.msra.mxu0 0.0
  %371 = vmatprep.subr.mxu0 0.0
  %372 = vmatpush1.msra.mxu0 0.0
  %373 = vmatprep.subr.mxu0 0.0
  %374 = vmatpush1.msra.mxu0 0.0
  %375 = vmatprep.subr.mxu0 0.0
  %376 = vmatpush1.msra.mxu0 0.0
  %377 = vmatprep.subr.mxu0 0.0
  %378 = vmatpush1.msra.mxu0 0.0
  %379 = vmatprep.subr.mxu0 0.0
  %380 = vmatpush1.msra.mxu0 0.0
  %381 = vmatprep.subr.mxu0 0.0
  %382 = vmatpush1.msra.mxu0 0.0
  %383 = vmatprep.subr.mxu0 0.0
  %384 = vmatpush1.msra.mxu0 0.0
  %385 = vmatprep.subr.mxu0 0.0
  %386 = vmatpush1.msra.mxu0 0.0
  %387 = vmatprep.subr.mxu0 0.0
  %388 = vmatpush1.msra.mxu0 0.0
  %389 = vmatprep.subr.mxu0 0.0
  %390 = vmatpush1.msra.mxu0 0.0
  %391 = vmatprep.subr.mxu0 0.0
  %392 = vmatpush1.msra.mxu0 0.0
  %393 = vmatprep.subr.mxu0 0.0
  %394 = vmatpush1.msra.mxu0 0.0
  %395 = vmatprep.subr.mxu0 0.0
  %396 = vmatpush1.msra.mxu0 0.0
  %397 = vmatprep.subr.mxu0 0.0
  %398 = vmatpush1.msra.mxu0 0.0
  %399 = vmatprep.subr.mxu0 0.0
  %400 = vmatpush1.msra.mxu0 0.0
  %401 = vmatprep.subr.mxu0 0.0
  %402 = vmatpush1.msra.mxu0 0.0
  %403 = vmatprep.subr.mxu0 0.0
  %404 = vmatpush1.msra.mxu0 0.0
  %405 = vmatprep.subr.mxu0 0.0
  %406 = vmatpush1.msra.mxu0 0.0
  %407 = vmatprep.subr.mxu0 0.0
  %408 = vmatpush1.msra.mxu0 0.0
  %409 = vmatprep.subr.mxu0 0.0
  %410 = vmatpush1.msra.mxu0 0.0
  %411 = vmatprep.subr.mxu0 0.0
  %412 = vmatpush1.msra.mxu0 0.0
  %413 = vmatprep.subr.mxu0 0.0
  %414 = vmatpush1.msra.mxu0 0.0
  %415 = vmatprep.mubr.f32.mxu0 0.0
  %v416 = vand.u32 %v55, 4294901760
  %417 = vmatmul.mubr.f32.gmra.mrb[0].mxu0 %v416
  %v418 = vpop.f32.mrb[0].mxu0
  %v419 = vadd.f32 %v178, %v418
  %v420 = vpop.f32.mrb[0].mxu0
  %421 = vmatprep.mubr.f32.mxu0 0.0
  %v422 = vand.u32 %v58, 4294901760
  %423 = vmatmul.mubr.f32.gmra.mrb[0].mxu0 %v422
  %v424 = vpop.f32.mrb[0].mxu0
  %v425 = vadd.f32 %v188, %v424
  %v426 = vpop.f32.mrb[0].mxu0
  %427 = vmatprep.mubr.f32.mxu0 0.0
  %v428 = vand.u32 %v61, 4294901760
  %429 = vmatmul.mubr.f32.gmra.mrb[0].mxu0 %v428
  %v430 = vpop.f32.mrb[0].mxu0
  %v431 = vadd.f32 %v198, %v430
  %v432 = vpop.f32.mrb[0].mxu0
  %433 = vmatprep.mubr.f32.mxu0 0.0
  %v434 = vand.u32 %v64, 4294901760
  %435 = vmatmul.mubr.f32.gmra.mrb[0].mxu0 %v434
  %v436 = vpop.f32.mrb[0].mxu0
  %v437 = vadd.f32 %v208, %v436
  %v438 = vpop.f32.mrb[0].mxu0
  %439 = vmatprep.mubr.f32.mxu0 0.0
  %v440 = vand.u32 %v67, 4294901760
  %441 = vmatmul.mubr.f32.gmra.mrb[0].mxu0 %v440
  %v442 = vpop.f32.mrb[0].mxu0
  %v443 = vadd.f32 %v218, %v442
  %v444 = vpop.f32.mrb[0].mxu0
  %445 = vmatprep.mubr.f32.mxu0 0.0
  %v446 = vand.u32 %v70, 4294901760
  %447 = vmatmul.mubr.f32.gmra.mrb[0].mxu0 %v446
  %v448 = vpop.f32.mrb[0].mxu0
  %v449 = vadd.f32 %v228, %v448
  %v450 = vpop.f32.mrb[0].mxu0
  %451 = vmatprep.mubr.f32.mxu0 0.0
  %v452 = vand.u32 %v73, 4294901760
  %453 = vmatmul.mubr.f32.gmra.mrb[0].mxu0 %v452
  %v454 = vpop.f32.mrb[0].mxu0
  %v455 = vadd.f32 %v238, %v454
  %v456 = vpop.f32.mrb[0].mxu0
  %457 = vmatprep.mubr.f32.mxu0 0.0
  %v458 = vand.u32 %v76, 4294901760
  %459 = vmatmul.mubr.f32.gmra.mrb[0].mxu0 %v458
  %v460 = vpop.f32.mrb[0].mxu0
  %v461 = vadd.f32 %v248, %v460
  %v462 = vpop.f32.mrb[0].mxu0
  %463 = vmatprep.mubr.f32.mxu0 0.0
  %v464 = vand.u32 %v79, 4294901760
  %465 = vmatmul.mubr.f32.gmra.mrb[0].mxu0 %v464
  %v466 = vpop.f32.mrb[0].mxu0
  %v467 = vadd.f32 %v258, %v466
  %v468 = vpop.f32.mrb[0].mxu0
  %469 = vmatprep.mubr.f32.mxu0 0.0
  %v470 = vand.u32 %v82, 4294901760
  %471 = vmatmul.mubr.f32.gmra.mrb[0].mxu0 %v470
  %v472 = vpop.f32.mrb[0].mxu0
  %v473 = vadd.f32 %v268, %v472
  %v474 = vpop.f32.mrb[0].mxu0
  %475 = vmatprep.mubr.f32.mxu0 0.0
  %v476 = vand.u32 %v85, 4294901760
  %477 = vmatmul.mubr.f32.gmra.mrb[0].mxu0 %v476
  %v478 = vpop.f32.mrb[0].mxu0
  %v479 = vadd.f32 %v278, %v478
  %v480 = vpop.f32.mrb[0].mxu0
  %481 = vmatprep.mubr.f32.mxu0 0.0
  %v482 = vand.u32 %v88, 4294901760
  %483 = vmatmul.mubr.f32.gmra.mrb[0].mxu0 %v482
  %v484 = vpop.f32.mrb[0].mxu0
  %v485 = vadd.f32 %v288, %v484
  %v486 = vpop.f32.mrb[0].mxu0
  %487 = vmatprep.mubr.f32.mxu0 0.0
  %v488 = vand.u32 %v91, 4294901760
  %489 = vmatmul.mubr.f32.gmra.mrb[0].mxu0 %v488
  %v490 = vpop.f32.mrb[0].mxu0
  %v491 = vadd.f32 %v298, %v490
  %v492 = vpop.f32.mrb[0].mxu0
  %493 = vmatprep.mubr.f32.mxu0 0.0
  %v494 = vand.u32 %v94, 4294901760
  %495 = vmatmul.mubr.f32.gmra.mrb[0].mxu0 %v494
  %v496 = vpop.f32.mrb[0].mxu0
  %v497 = vadd.f32 %v308, %v496
  %v498 = vpop.f32.mrb[0].mxu0
  %499 = vmatprep.mubr.f32.mxu0 0.0
  %v500 = vand.u32 %v97, 4294901760
  %501 = vmatmul.mubr.f32.gmra.mrb[0].mxu0 %v500
  %v502 = vpop.f32.mrb[0].mxu0
  %v503 = vadd.f32 %v318, %v502
  %v504 = vpop.f32.mrb[0].mxu0
  %505 = vmatprep.mubr.f32.mxu0 0.0
  %v506 = vand.u32 %v100, 4294901760
  %507 = vmatmul.mubr.f32.gmra.mrb[0].mxu0 %v506
  %v508 = vpop.f32.mrb[0].mxu0
  %v509 = vadd.f32 %v328, %v508
  %v510 = vpop.f32.mrb[0].mxu0
  %511 = vdwg.mxu0
  %512 = vmatprep.subr.mxu0 0.0
  %v513 = vand.u32 %v42, 4294901760
  %v514 = vsub.f32 %v42, %v513
  %515 = vmatpush1.msra.mxu0 %v514
  %516 = vmatprep.subr.mxu0 0.0
  %v517 = vand.u32 %v43, 4294901760
  %v518 = vsub.f32 %v43, %v517
  %519 = vmatpush1.msra.mxu0 %v518
  %520 = vmatprep.subr.mxu0 0.0
  %v521 = vand.u32 %v44, 4294901760
  %v522 = vsub.f32 %v44, %v521
  %523 = vmatpush1.msra.mxu0 %v522
  %524 = vmatprep.subr.mxu0 0.0
  %v525 = vand.u32 %v45, 4294901760
  %v526 = vsub.f32 %v45, %v525
  %527 = vmatpush1.msra.mxu0 %v526
  %528 = vmatprep.subr.mxu0 0.0
  %529 = vmatpush1.msra.mxu0 0.0
  %530 = vmatprep.subr.mxu0 0.0
  %531 = vmatpush1.msra.mxu0 0.0
  %532 = vmatprep.subr.mxu0 0.0
  %533 = vmatpush1.msra.mxu0 0.0
  %534 = vmatprep.subr.mxu0 0.0
  %535 = vmatpush1.msra.mxu0 0.0
  %536 = vmatprep.subr.mxu0 0.0
  %537 = vmatpush1.msra.mxu0 0.0
  %538 = vmatprep.subr.mxu0 0.0
  %539 = vmatpush1.msra.mxu0 0.0
  %540 = vmatprep.subr.mxu0 0.0
  %541 = vmatpush1.msra.mxu0 0.0
  %542 = vmatprep.subr.mxu0 0.0
  %543 = vmatpush1.msra.mxu0 0.0
  %544 = vmatprep.subr.mxu0 0.0
  %545 = vmatpush1.msra.mxu0 0.0
  %546 = vmatprep.subr.mxu0 0.0
  %547 = vmatpush1.msra.mxu0 0.0
  %548 = vmatprep.subr.mxu0 0.0
  %549 = vmatpush1.msra.mxu0 0.0
  %550 = vmatprep.subr.mxu0 0.0
  %551 = vmatpush1.msra.mxu0 0.0
  %552 = vmatprep.subr.mxu0 0.0
  %553 = vmatpush1.msra.mxu0 0.0
  %554 = vmatprep.subr.mxu0 0.0
  %555 = vmatpush1.msra.mxu0 0.0
  %556 = vmatprep.subr.mxu0 0.0
  %557 = vmatpush1.msra.mxu0 0.0
  %558 = vmatprep.subr.mxu0 0.0
  %559 = vmatpush1.msra.mxu0 0.0
  %560 = vmatprep.subr.mxu0 0.0
  %561 = vmatpush1.msra.mxu0 0.0
  %562 = vmatprep.subr.mxu0 0.0
  %563 = vmatpush1.msra.mxu0 0.0
  %564 = vmatprep.subr.mxu0 0.0
  %565 = vmatpush1.msra.mxu0 0.0
  %566 = vmatprep.subr.mxu0 0.0
  %567 = vmatpush1.msra.mxu0 0.0
  %568 = vmatprep.subr.mxu0 0.0
  %569 = vmatpush1.msra.mxu0 0.0
  %570 = vmatprep.subr.mxu0 0.0
  %571 = vmatpush1.msra.mxu0 0.0
  %572 = vmatprep.subr.mxu0 0.0
  %573 = vmatpush1.msra.mxu0 0.0
  %574 = vmatprep.subr.mxu0 0.0
  %575 = vmatpush1.msra.mxu0 0.0
  %576 = vmatprep.subr.mxu0 0.0
  %577 = vmatpush1.msra.mxu0 0.0
  %578 = vmatprep.subr.mxu0 0.0
  %579 = vmatpush1.msra.mxu0 0.0
  %580 = vmatprep.subr.mxu0 0.0
  %581 = vmatpush1.msra.mxu0 0.0
  %582 = vmatprep.subr.mxu0 0.0
  %583 = vmatpush1.msra.mxu0 0.0
  %584 = vmatprep.mubr.f32.mxu0 0.0
  %v585 = vand.u32 %v55, 4294901760
  %v586 = vsub.f32 %v55, %v585
  %587 = vmatmul.mubr.f32.gmra.mrb[0].mxu0 %v586
  %v588 = vpop.f32.mrb[0].mxu0
  %v589 = vadd.f32 %v419, %v588
  %v590 = vpop.f32.mrb[0].mxu0
  %591 = vmatprep.mubr.f32.mxu0 0.0
  %v592 = vand.u32 %v58, 4294901760
  %v593 = vsub.f32 %v58, %v592
  %594 = vmatmul.mubr.f32.gmra.mrb[0].mxu0 %v593
  %v595 = vpop.f32.mrb[0].mxu0
  %v596 = vadd.f32 %v425, %v595
  %v597 = vpop.f32.mrb[0].mxu0
  %598 = vmatprep.mubr.f32.mxu0 0.0
  %v599 = vand.u32 %v61, 4294901760
  %v600 = vsub.f32 %v61, %v599
  %601 = vmatmul.mubr.f32.gmra.mrb[0].mxu0 %v600
  %v602 = vpop.f32.mrb[0].mxu0
  %v603 = vadd.f32 %v431, %v602
  %v604 = vpop.f32.mrb[0].mxu0
  %605 = vmatprep.mubr.f32.mxu0 0.0
  %v606 = vand.u32 %v64, 4294901760
  %v607 = vsub.f32 %v64, %v606
  %608 = vmatmul.mubr.f32.gmra.mrb[0].mxu0 %v607
  %v609 = vpop.f32.mrb[0].mxu0
  %v610 = vadd.f32 %v437, %v609
  %v611 = vpop.f32.mrb[0].mxu0
  %612 = vmatprep.mubr.f32.mxu0 0.0
  %v613 = vand.u32 %v67, 4294901760
  %v614 = vsub.f32 %v67, %v613
  %615 = vmatmul.mubr.f32.gmra.mrb[0].mxu0 %v614
  %v616 = vpop.f32.mrb[0].mxu0
  %v617 = vadd.f32 %v443, %v616
  %v618 = vpop.f32.mrb[0].mxu0
  %619 = vmatprep.mubr.f32.mxu0 0.0
  %v620 = vand.u32 %v70, 4294901760
  %v621 = vsub.f32 %v70, %v620
  %622 = vmatmul.mubr.f32.gmra.mrb[0].mxu0 %v621
  %v623 = vpop.f32.mrb[0].mxu0
  %v624 = vadd.f32 %v449, %v623
  %v625 = vpop.f32.mrb[0].mxu0
  %626 = vmatprep.mubr.f32.mxu0 0.0
  %v627 = vand.u32 %v73, 4294901760
  %v628 = vsub.f32 %v73, %v627
  %629 = vmatmul.mubr.f32.gmra.mrb[0].mxu0 %v628
  %v630 = vpop.f32.mrb[0].mxu0
  %v631 = vadd.f32 %v455, %v630
  %v632 = vpop.f32.mrb[0].mxu0
  %633 = vmatprep.mubr.f32.mxu0 0.0
  %v634 = vand.u32 %v76, 4294901760
  %v635 = vsub.f32 %v76, %v634
  %636 = vmatmul.mubr.f32.gmra.mrb[0].mxu0 %v635
  %v637 = vpop.f32.mrb[0].mxu0
  %v638 = vadd.f32 %v461, %v637
  %v639 = vpop.f32.mrb[0].mxu0
  %640 = vmatprep.mubr.f32.mxu0 0.0
  %v641 = vand.u32 %v79, 4294901760
  %v642 = vsub.f32 %v79, %v641
  %643 = vmatmul.mubr.f32.gmra.mrb[0].mxu0 %v642
  %v644 = vpop.f32.mrb[0].mxu0
  %v645 = vadd.f32 %v467, %v644
  %v646 = vpop.f32.mrb[0].mxu0
  %647 = vmatprep.mubr.f32.mxu0 0.0
  %v648 = vand.u32 %v82, 4294901760
  %v649 = vsub.f32 %v82, %v648
  %650 = vmatmul.mubr.f32.gmra.mrb[0].mxu0 %v649
  %v651 = vpop.f32.mrb[0].mxu0
  %v652 = vadd.f32 %v473, %v651
  %v653 = vpop.f32.mrb[0].mxu0
  %654 = vmatprep.mubr.f32.mxu0 0.0
  %v655 = vand.u32 %v85, 4294901760
  %v656 = vsub.f32 %v85, %v655
  %657 = vmatmul.mubr.f32.gmra.mrb[0].mxu0 %v656
  %v658 = vpop.f32.mrb[0].mxu0
  %v659 = vadd.f32 %v479, %v658
  %v660 = vpop.f32.mrb[0].mxu0
  %661 = vmatprep.mubr.f32.mxu0 0.0
  %v662 = vand.u32 %v88, 4294901760
  %v663 = vsub.f32 %v88, %v662
  %664 = vmatmul.mubr.f32.gmra.mrb[0].mxu0 %v663
  %v665 = vpop.f32.mrb[0].mxu0
  %v666 = vadd.f32 %v485, %v665
  %v667 = vpop.f32.mrb[0].mxu0
  %668 = vmatprep.mubr.f32.mxu0 0.0
  %v669 = vand.u32 %v91, 4294901760
  %v670 = vsub.f32 %v91, %v669
  %671 = vmatmul.mubr.f32.gmra.mrb[0].mxu0 %v670
  %v672 = vpop.f32.mrb[0].mxu0
  %v673 = vadd.f32 %v491, %v672
  %v674 = vpop.f32.mrb[0].mxu0
  %675 = vmatprep.mubr.f32.mxu0 0.0
  %v676 = vand.u32 %v94, 4294901760
  %v677 = vsub.f32 %v94, %v676
  %678 = vmatmul.mubr.f32.gmra.mrb[0].mxu0 %v677
  %v679 = vpop.f32.mrb[0].mxu0
  %v680 = vadd.f32 %v497, %v679
  %v681 = vpop.f32.mrb[0].mxu0
  %682 = vmatprep.mubr.f32.mxu0 0.0
  %v683 = vand.u32 %v97, 4294901760
  %v684 = vsub.f32 %v97, %v683
  %685 = vmatmul.mubr.f32.gmra.mrb[0].mxu0 %v684
  %v686 = vpop.f32.mrb[0].mxu0
  %v687 = vadd.f32 %v503, %v686
  %v688 = vpop.f32.mrb[0].mxu0
  %689 = vmatprep.mubr.f32.mxu0 0.0
  %v690 = vand.u32 %v100, 4294901760
  %v691 = vsub.f32 %v100, %v690
  %692 = vmatmul.mubr.f32.gmra.mrb[0].mxu0 %v691
  %v693 = vpop.f32.mrb[0].mxu0
  %v694 = vadd.f32 %v509, %v693
  %v695 = vpop.f32.mrb[0].mxu0
  %696 = vdwg.mxu0
  %697 = vmatprep.subr.mxu0 0.0
  %v698 = vand.u32 %v42, 4294901760
  %699 = vmatpush1.msra.mxu0 %v698
  %700 = vmatprep.subr.mxu0 0.0
  %v701 = vand.u32 %v43, 4294901760
  %702 = vmatpush1.msra.mxu0 %v701
  %703 = vmatprep.subr.mxu0 0.0
  %v704 = vand.u32 %v44, 4294901760
  %705 = vmatpush1.msra.mxu0 %v704
  %706 = vmatprep.subr.mxu0 0.0
  %v707 = vand.u32 %v45, 4294901760
  %708 = vmatpush1.msra.mxu0 %v707
  %709 = vmatprep.subr.mxu0 0.0
  %710 = vmatpush1.msra.mxu0 0.0
  %711 = vmatprep.subr.mxu0 0.0
  %712 = vmatpush1.msra.mxu0 0.0
  %713 = vmatprep.subr.mxu0 0.0
  %714 = vmatpush1.msra.mxu0 0.0
  %715 = vmatprep.subr.mxu0 0.0
  %716 = vmatpush1.msra.mxu0 0.0
  %717 = vmatprep.subr.mxu0 0.0
  %718 = vmatpush1.msra.mxu0 0.0
  %719 = vmatprep.subr.mxu0 0.0
  %720 = vmatpush1.msra.mxu0 0.0
  %721 = vmatprep.subr.mxu0 0.0
  %722 = vmatpush1.msra.mxu0 0.0
  %723 = vmatprep.subr.mxu0 0.0
  %724 = vmatpush1.msra.mxu0 0.0
  %725 = vmatprep.subr.mxu0 0.0
  %726 = vmatpush1.msra.mxu0 0.0
  %727 = vmatprep.subr.mxu0 0.0
  %728 = vmatpush1.msra.mxu0 0.0
  %729 = vmatprep.subr.mxu0 0.0
  %730 = vmatpush1.msra.mxu0 0.0
  %731 = vmatprep.subr.mxu0 0.0
  %732 = vmatpush1.msra.mxu0 0.0
  %733 = vmatprep.subr.mxu0 0.0
  %734 = vmatpush1.msra.mxu0 0.0
  %735 = vmatprep.subr.mxu0 0.0
  %736 = vmatpush1.msra.mxu0 0.0
  %737 = vmatprep.subr.mxu0 0.0
  %738 = vmatpush1.msra.mxu0 0.0
  %739 = vmatprep.subr.mxu0 0.0
  %740 = vmatpush1.msra.mxu0 0.0
  %741 = vmatprep.subr.mxu0 0.0
  %742 = vmatpush1.msra.mxu0 0.0
  %743 = vmatprep.subr.mxu0 0.0
  %744 = vmatpush1.msra.mxu0 0.0
  %745 = vmatprep.subr.mxu0 0.0
  %746 = vmatpush1.msra.mxu0 0.0
  %747 = vmatprep.subr.mxu0 0.0
  %748 = vmatpush1.msra.mxu0 0.0
  %749 = vmatprep.subr.mxu0 0.0
  %750 = vmatpush1.msra.mxu0 0.0
  %751 = vmatprep.subr.mxu0 0.0
  %752 = vmatpush1.msra.mxu0 0.0
  %753 = vmatprep.subr.mxu0 0.0
  %754 = vmatpush1.msra.mxu0 0.0
  %755 = vmatprep.subr.mxu0 0.0
  %756 = vmatpush1.msra.mxu0 0.0
  %757 = vmatprep.subr.mxu0 0.0
  %758 = vmatpush1.msra.mxu0 0.0
  %759 = vmatprep.subr.mxu0 0.0
  %760 = vmatpush1.msra.mxu0 0.0
  %761 = vmatprep.subr.mxu0 0.0
  %762 = vmatpush1.msra.mxu0 0.0
  %763 = vmatprep.subr.mxu0 0.0
  %764 = vmatpush1.msra.mxu0 0.0
  %765 = vmatprep.mubr.f32.mxu0 0.0
  %v766 = vand.u32 %v55, 4294901760
  %v767 = vsub.f32 %v55, %v766
  %v768 = vand.u32 %v767, 4294901760
  %769 = vmatmul.mubr.f32.gmra.mrb[0].mxu0 %v768
  %v770 = vpop.f32.mrb[0].mxu0
  %v771 = vadd.f32 %v589, %v770
  %v772 = vpop.f32.mrb[0].mxu0
  %773 = vmatprep.mubr.f32.mxu0 0.0
  %v774 = vand.u32 %v58, 4294901760
  %v775 = vsub.f32 %v58, %v774
  %v776 = vand.u32 %v775, 4294901760
  %777 = vmatmul.mubr.f32.gmra.mrb[0].mxu0 %v776
  %v778 = vpop.f32.mrb[0].mxu0
  %v779 = vadd.f32 %v596, %v778
  %v780 = vpop.f32.mrb[0].mxu0
  %781 = vmatprep.mubr.f32.mxu0 0.0
  %v782 = vand.u32 %v61, 4294901760
  %v783 = vsub.f32 %v61, %v782
  %v784 = vand.u32 %v783, 4294901760
  %785 = vmatmul.mubr.f32.gmra.mrb[0].mxu0 %v784
  %v786 = vpop.f32.mrb[0].mxu0
  %v787 = vadd.f32 %v603, %v786
  %v788 = vpop.f32.mrb[0].mxu0
  %789 = vmatprep.mubr.f32.mxu0 0.0
  %v790 = vand.u32 %v64, 4294901760
  %v791 = vsub.f32 %v64, %v790
  %v792 = vand.u32 %v791, 4294901760
  %793 = vmatmul.mubr.f32.gmra.mrb[0].mxu0 %v792
  %v794 = vpop.f32.mrb[0].mxu0
  %v795 = vadd.f32 %v610, %v794
  %v796 = vpop.f32.mrb[0].mxu0
  %797 = vmatprep.mubr.f32.mxu0 0.0
  %v798 = vand.u32 %v67, 4294901760
  %v799 = vsub.f32 %v67, %v798
  %v800 = vand.u32 %v799, 4294901760
  %801 = vmatmul.mubr.f32.gmra.mrb[0].mxu0 %v800
  %v802 = vpop.f32.mrb[0].mxu0
  %v803 = vadd.f32 %v617, %v802
  %v804 = vpop.f32.mrb[0].mxu0
  %805 = vmatprep.mubr.f32.mxu0 0.0
  %v806 = vand.u32 %v70, 4294901760
  %v807 = vsub.f32 %v70, %v806
  %v808 = vand.u32 %v807, 4294901760
  %809 = vmatmul.mubr.f32.gmra.mrb[0].mxu0 %v808
  %v810 = vpop.f32.mrb[0].mxu0
  %v811 = vadd.f32 %v624, %v810
  %v812 = vpop.f32.mrb[0].mxu0
  %813 = vmatprep.mubr.f32.mxu0 0.0
  %v814 = vand.u32 %v73, 4294901760
  %v815 = vsub.f32 %v73, %v814
  %v816 = vand.u32 %v815, 4294901760
  %817 = vmatmul.mubr.f32.gmra.mrb[0].mxu0 %v816
  %v818 = vpop.f32.mrb[0].mxu0
  %v819 = vadd.f32 %v631, %v818
  %v820 = vpop.f32.mrb[0].mxu0
  %821 = vmatprep.mubr.f32.mxu0 0.0
  %v822 = vand.u32 %v76, 4294901760
  %v823 = vsub.f32 %v76, %v822
  %v824 = vand.u32 %v823, 4294901760
  %825 = vmatmul.mubr.f32.gmra.mrb[0].mxu0 %v824
  %v826 = vpop.f32.mrb[0].mxu0
  %v827 = vadd.f32 %v638, %v826
  %v828 = vpop.f32.mrb[0].mxu0
  %829 = vmatprep.mubr.f32.mxu0 0.0
  %v830 = vand.u32 %v79, 4294901760
  %v831 = vsub.f32 %v79, %v830
  %v832 = vand.u32 %v831, 4294901760
  %833 = vmatmul.mubr.f32.gmra.mrb[0].mxu0 %v832
  %v834 = vpop.f32.mrb[0].mxu0
  %v835 = vadd.f32 %v645, %v834
  %v836 = vpop.f32.mrb[0].mxu0
  %837 = vmatprep.mubr.f32.mxu0 0.0
  %v838 = vand.u32 %v82, 4294901760
  %v839 = vsub.f32 %v82, %v838
  %v840 = vand.u32 %v839, 4294901760
  %841 = vmatmul.mubr.f32.gmra.mrb[0].mxu0 %v840
  %v842 = vpop.f32.mrb[0].mxu0
  %v843 = vadd.f32 %v652, %v842
  %v844 = vpop.f32.mrb[0].mxu0
  %845 = vmatprep.mubr.f32.mxu0 0.0
  %v846 = vand.u32 %v85, 4294901760
  %v847 = vsub.f32 %v85, %v846
  %v848 = vand.u32 %v847, 4294901760
  %849 = vmatmul.mubr.f32.gmra.mrb[0].mxu0 %v848
  %v850 = vpop.f32.mrb[0].mxu0
  %v851 = vadd.f32 %v659, %v850
  %v852 = vpop.f32.mrb[0].mxu0
  %853 = vmatprep.mubr.f32.mxu0 0.0
  %v854 = vand.u32 %v88, 4294901760
  %v855 = vsub.f32 %v88, %v854
  %v856 = vand.u32 %v855, 4294901760
  %857 = vmatmul.mubr.f32.gmra.mrb[0].mxu0 %v856
  %v858 = vpop.f32.mrb[0].mxu0
  %v859 = vadd.f32 %v666, %v858
  %v860 = vpop.f32.mrb[0].mxu0
  %861 = vmatprep.mubr.f32.mxu0 0.0
  %v862 = vand.u32 %v91, 4294901760
  %v863 = vsub.f32 %v91, %v862
  %v864 = vand.u32 %v863, 4294901760
  %865 = vmatmul.mubr.f32.gmra.mrb[0].mxu0 %v864
  %v866 = vpop.f32.mrb[0].mxu0
  %v867 = vadd.f32 %v673, %v866
  %v868 = vpop.f32.mrb[0].mxu0
  %869 = vmatprep.mubr.f32.mxu0 0.0
  %v870 = vand.u32 %v94, 4294901760
  %v871 = vsub.f32 %v94, %v870
  %v872 = vand.u32 %v871, 4294901760
  %873 = vmatmul.mubr.f32.gmra.mrb[0].mxu0 %v872
  %v874 = vpop.f32.mrb[0].mxu0
  %v875 = vadd.f32 %v680, %v874
  %v876 = vpop.f32.mrb[0].mxu0
  %877 = vmatprep.mubr.f32.mxu0 0.0
  %v878 = vand.u32 %v97, 4294901760
  %v879 = vsub.f32 %v97, %v878
  %v880 = vand.u32 %v879, 4294901760
  %881 = vmatmul.mubr.f32.gmra.mrb[0].mxu0 %v880
  %v882 = vpop.f32.mrb[0].mxu0
  %v883 = vadd.f32 %v687, %v882
  %v884 = vpop.f32.mrb[0].mxu0
  %885 = vmatprep.mubr.f32.mxu0 0.0
  %v886 = vand.u32 %v100, 4294901760
  %v887 = vsub.f32 %v100, %v886
  %v888 = vand.u32 %v887, 4294901760
  %889 = vmatmul.mubr.f32.gmra.mrb[0].mxu0 %v888
  %v890 = vpop.f32.mrb[0].mxu0
  %v891 = vadd.f32 %v694, %v890
  %v892 = vpop.f32.mrb[0].mxu0
  %893 = vdwg.mxu0
  %894 = vmatprep.subr.mxu0 0.0
  %v895 = vand.u32 %v42, 4294901760
  %v896 = vsub.f32 %v42, %v895
  %v897 = vand.u32 %v896, 4294901760
  %898 = vmatpush1.msra.mxu0 %v897
  %899 = vmatprep.subr.mxu0 0.0
  %v900 = vand.u32 %v43, 4294901760
  %v901 = vsub.f32 %v43, %v900
  %v902 = vand.u32 %v901, 4294901760
  %903 = vmatpush1.msra.mxu0 %v902
  %904 = vmatprep.subr.mxu0 0.0
  %v905 = vand.u32 %v44, 4294901760
  %v906 = vsub.f32 %v44, %v905
  %v907 = vand.u32 %v906, 4294901760
  %908 = vmatpush1.msra.mxu0 %v907
  %909 = vmatprep.subr.mxu0 0.0
  %v910 = vand.u32 %v45, 4294901760
  %v911 = vsub.f32 %v45, %v910
  %v912 = vand.u32 %v911, 4294901760
  %913 = vmatpush1.msra.mxu0 %v912
  %914 = vmatprep.subr.mxu0 0.0
  %915 = vmatpush1.msra.mxu0 0.0
  %916 = vmatprep.subr.mxu0 0.0
  %917 = vmatpush1.msra.mxu0 0.0
  %918 = vmatprep.subr.mxu0 0.0
  %919 = vmatpush1.msra.mxu0 0.0
  %920 = vmatprep.subr.mxu0 0.0
  %921 = vmatpush1.msra.mxu0 0.0
  %922 = vmatprep.subr.mxu0 0.0
  %923 = vmatpush1.msra.mxu0 0.0
  %924 = vmatprep.subr.mxu0 0.0
  %925 = vmatpush1.msra.mxu0 0.0
  %926 = vmatprep.subr.mxu0 0.0
  %927 = vmatpush1.msra.mxu0 0.0
  %928 = vmatprep.subr.mxu0 0.0
  %929 = vmatpush1.msra.mxu0 0.0
  %930 = vmatprep.subr.mxu0 0.0
  %931 = vmatpush1.msra.mxu0 0.0
  %932 = vmatprep.subr.mxu0 0.0
  %933 = vmatpush1.msra.mxu0 0.0
  %934 = vmatprep.subr.mxu0 0.0
  %935 = vmatpush1.msra.mxu0 0.0
  %936 = vmatprep.subr.mxu0 0.0
  %937 = vmatpush1.msra.mxu0 0.0
  %938 = vmatprep.subr.mxu0 0.0
  %939 = vmatpush1.msra.mxu0 0.0
  %940 = vmatprep.subr.mxu0 0.0
  %941 = vmatpush1.msra.mxu0 0.0
  %942 = vmatprep.subr.mxu0 0.0
  %943 = vmatpush1.msra.mxu0 0.0
  %944 = vmatprep.subr.mxu0 0.0
  %945 = vmatpush1.msra.mxu0 0.0
  %946 = vmatprep.subr.mxu0 0.0
  %947 = vmatpush1.msra.mxu0 0.0
  %948 = vmatprep.subr.mxu0 0.0
  %949 = vmatpush1.msra.mxu0 0.0
  %950 = vmatprep.subr.mxu0 0.0
  %951 = vmatpush1.msra.mxu0 0.0
  %952 = vmatprep.subr.mxu0 0.0
  %953 = vmatpush1.msra.mxu0 0.0
  %954 = vmatprep.subr.mxu0 0.0
  %955 = vmatpush1.msra.mxu0 0.0
  %956 = vmatprep.subr.mxu0 0.0
  %957 = vmatpush1.msra.mxu0 0.0
  %958 = vmatprep.subr.mxu0 0.0
  %959 = vmatpush1.msra.mxu0 0.0
  %960 = vmatprep.subr.mxu0 0.0
  %961 = vmatpush1.msra.mxu0 0.0
  %962 = vmatprep.subr.mxu0 0.0
  %963 = vmatpush1.msra.mxu0 0.0
  %964 = vmatprep.subr.mxu0 0.0
  %965 = vmatpush1.msra.mxu0 0.0
  %966 = vmatprep.subr.mxu0 0.0
  %967 = vmatpush1.msra.mxu0 0.0
  %968 = vmatprep.subr.mxu0 0.0
  %969 = vmatpush1.msra.mxu0 0.0
  %970 = vmatprep.mubr.f32.mxu0 0.0
  %v971 = vand.u32 %v55, 4294901760
  %972 = vmatmul.mubr.f32.gmra.mrb[0].mxu0 %v971
  %v973 = vpop.f32.mrb[0].mxu0
  %v974 = vadd.f32 %v771, %v973
  %v975 = vpop.f32.mrb[0].mxu0
  %976 = vmatprep.mubr.f32.mxu0 0.0
  %v977 = vand.u32 %v58, 4294901760
  %978 = vmatmul.mubr.f32.gmra.mrb[0].mxu0 %v977
  %v979 = vpop.f32.mrb[0].mxu0
  %v980 = vadd.f32 %v779, %v979
  %v981 = vpop.f32.mrb[0].mxu0
  %982 = vmatprep.mubr.f32.mxu0 0.0
  %v983 = vand.u32 %v61, 4294901760
  %984 = vmatmul.mubr.f32.gmra.mrb[0].mxu0 %v983
  %v985 = vpop.f32.mrb[0].mxu0
  %v986 = vadd.f32 %v787, %v985
  %v987 = vpop.f32.mrb[0].mxu0
  %988 = vmatprep.mubr.f32.mxu0 0.0
  %v989 = vand.u32 %v64, 4294901760
  %990 = vmatmul.mubr.f32.gmra.mrb[0].mxu0 %v989
  %v991 = vpop.f32.mrb[0].mxu0
  %v992 = vadd.f32 %v795, %v991
  %v993 = vpop.f32.mrb[0].mxu0
  %994 = vmatprep.mubr.f32.mxu0 0.0
  %v995 = vand.u32 %v67, 4294901760
  %996 = vmatmul.mubr.f32.gmra.mrb[0].mxu0 %v995
  %v997 = vpop.f32.mrb[0].mxu0
  %v998 = vadd.f32 %v803, %v997
  %v999 = vpop.f32.mrb[0].mxu0
  %1000 = vmatprep.mubr.f32.mxu0 0.0
  %v1001 = vand.u32 %v70, 4294901760
  %1002 = vmatmul.mubr.f32.gmra.mrb[0].mxu0 %v1001
  %v1003 = vpop.f32.mrb[0].mxu0
  %v1004 = vadd.f32 %v811, %v1003
  %v1005 = vpop.f32.mrb[0].mxu0
  %1006 = vmatprep.mubr.f32.mxu0 0.0
  %v1007 = vand.u32 %v73, 4294901760
  %1008 = vmatmul.mubr.f32.gmra.mrb[0].mxu0 %v1007
  %v1009 = vpop.f32.mrb[0].mxu0
  %v1010 = vadd.f32 %v819, %v1009
  %v1011 = vpop.f32.mrb[0].mxu0
  %1012 = vmatprep.mubr.f32.mxu0 0.0
  %v1013 = vand.u32 %v76, 4294901760
  %1014 = vmatmul.mubr.f32.gmra.mrb[0].mxu0 %v1013
  %v1015 = vpop.f32.mrb[0].mxu0
  %v1016 = vadd.f32 %v827, %v1015
  %v1017 = vpop.f32.mrb[0].mxu0
  %1018 = vmatprep.mubr.f32.mxu0 0.0
  %v1019 = vand.u32 %v79, 4294901760
  %1020 = vmatmul.mubr.f32.gmra.mrb[0].mxu0 %v1019
  %v1021 = vpop.f32.mrb[0].mxu0
  %v1022 = vadd.f32 %v835, %v1021
  %v1023 = vpop.f32.mrb[0].mxu0
  %1024 = vmatprep.mubr.f32.mxu0 0.0
  %v1025 = vand.u32 %v82, 4294901760
  %1026 = vmatmul.mubr.f32.gmra.mrb[0].mxu0 %v1025
  %v1027 = vpop.f32.mrb[0].mxu0
  %v1028 = vadd.f32 %v843, %v1027
  %v1029 = vpop.f32.mrb[0].mxu0
  %1030 = vmatprep.mubr.f32.mxu0 0.0
  %v1031 = vand.u32 %v85, 4294901760
  %1032 = vmatmul.mubr.f32.gmra.mrb[0].mxu0 %v1031
  %v1033 = vpop.f32.mrb[0].mxu0
  %v1034 = vadd.f32 %v851, %v1033
  %v1035 = vpop.f32.mrb[0].mxu0
  %1036 = vmatprep.mubr.f32.mxu0 0.0
  %v1037 = vand.u32 %v88, 4294901760
  %1038 = vmatmul.mubr.f32.gmra.mrb[0].mxu0 %v1037
  %v1039 = vpop.f32.mrb[0].mxu0
  %v1040 = vadd.f32 %v859, %v1039
  %v1041 = vpop.f32.mrb[0].mxu0
  %1042 = vmatprep.mubr.f32.mxu0 0.0
  %v1043 = vand.u32 %v91, 4294901760
  %1044 = vmatmul.mubr.f32.gmra.mrb[0].mxu0 %v1043
  %v1045 = vpop.f32.mrb[0].mxu0
  %v1046 = vadd.f32 %v867, %v1045
  %v1047 = vpop.f32.mrb[0].mxu0
  %1048 = vmatprep.mubr.f32.mxu0 0.0
  %v1049 = vand.u32 %v94, 4294901760
  %1050 = vmatmul.mubr.f32.gmra.mrb[0].mxu0 %v1049
  %v1051 = vpop.f32.mrb[0].mxu0
  %v1052 = vadd.f32 %v875, %v1051
  %v1053 = vpop.f32.mrb[0].mxu0
  %1054 = vmatprep.mubr.f32.mxu0 0.0
  %v1055 = vand.u32 %v97, 4294901760
  %1056 = vmatmul.mubr.f32.gmra.mrb[0].mxu0 %v1055
  %v1057 = vpop.f32.mrb[0].mxu0
  %v1058 = vadd.f32 %v883, %v1057
  %v1059 = vpop.f32.mrb[0].mxu0
  %1060 = vmatprep.mubr.f32.mxu0 0.0
  %v1061 = vand.u32 %v100, 4294901760
  %1062 = vmatmul.mubr.f32.gmra.mrb[0].mxu0 %v1061
  %v1063 = vpop.f32.mrb[0].mxu0
  %v1064 = vadd.f32 %v891, %v1063
  %v1065 = vpop.f32.mrb[0].mxu0
  %1066 = vdwg.mxu0
  %1067 = vmatprep.subr.mxu0 0.0
  %v1068 = vand.u32 %v42, 4294901760
  %1069 = vmatpush1.msra.mxu0 %v1068
  %1070 = vmatprep.subr.mxu0 0.0
  %v1071 = vand.u32 %v43, 4294901760
  %1072 = vmatpush1.msra.mxu0 %v1071
  %1073 = vmatprep.subr.mxu0 0.0
  %v1074 = vand.u32 %v44, 4294901760
  %1075 = vmatpush1.msra.mxu0 %v1074
  %1076 = vmatprep.subr.mxu0 0.0
  %v1077 = vand.u32 %v45, 4294901760
  %1078 = vmatpush1.msra.mxu0 %v1077
  %1079 = vmatprep.subr.mxu0 0.0
  %1080 = vmatpush1.msra.mxu0 0.0
  %1081 = vmatprep.subr.mxu0 0.0
  %1082 = vmatpush1.msra.mxu0 0.0
  %1083 = vmatprep.subr.mxu0 0.0
  %1084 = vmatpush1.msra.mxu0 0.0
  %1085 = vmatprep.subr.mxu0 0.0
  %1086 = vmatpush1.msra.mxu0 0.0
  %1087 = vmatprep.subr.mxu0 0.0
  %1088 = vmatpush1.msra.mxu0 0.0
  %1089 = vmatprep.subr.mxu0 0.0
  %1090 = vmatpush1.msra.mxu0 0.0
  %1091 = vmatprep.subr.mxu0 0.0
  %1092 = vmatpush1.msra.mxu0 0.0
  %1093 = vmatprep.subr.mxu0 0.0
  %1094 = vmatpush1.msra.mxu0 0.0
  %1095 = vmatprep.subr.mxu0 0.0
  %1096 = vmatpush1.msra.mxu0 0.0
  %1097 = vmatprep.subr.mxu0 0.0
  %1098 = vmatpush1.msra.mxu0 0.0
  %1099 = vmatprep.subr.mxu0 0.0
  %1100 = vmatpush1.msra.mxu0 0.0
  %1101 = vmatprep.subr.mxu0 0.0
  %1102 = vmatpush1.msra.mxu0 0.0
  %1103 = vmatprep.subr.mxu0 0.0
  %1104 = vmatpush1.msra.mxu0 0.0
  %1105 = vmatprep.subr.mxu0 0.0
  %1106 = vmatpush1.msra.mxu0 0.0
  %1107 = vmatprep.subr.mxu0 0.0
  %1108 = vmatpush1.msra.mxu0 0.0
  %1109 = vmatprep.subr.mxu0 0.0
  %1110 = vmatpush1.msra.mxu0 0.0
  %1111 = vmatprep.subr.mxu0 0.0
  %1112 = vmatpush1.msra.mxu0 0.0
  %1113 = vmatprep.subr.mxu0 0.0
  %1114 = vmatpush1.msra.mxu0 0.0
  %1115 = vmatprep.subr.mxu0 0.0
  %1116 = vmatpush1.msra.mxu0 0.0
  %1117 = vmatprep.subr.mxu0 0.0
  %1118 = vmatpush1.msra.mxu0 0.0
  %1119 = vmatprep.subr.mxu0 0.0
  %1120 = vmatpush1.msra.mxu0 0.0
  %1121 = vmatprep.subr.mxu0 0.0
  %1122 = vmatpush1.msra.mxu0 0.0
  %1123 = vmatprep.subr.mxu0 0.0
  %1124 = vmatpush1.msra.mxu0 0.0
  %1125 = vmatprep.subr.mxu0 0.0
  %1126 = vmatpush1.msra.mxu0 0.0
  %1127 = vmatprep.subr.mxu0 0.0
  %1128 = vmatpush1.msra.mxu0 0.0
  %1129 = vmatprep.subr.mxu0 0.0
  %1130 = vmatpush1.msra.mxu0 0.0
  %1131 = vmatprep.subr.mxu0 0.0
  %1132 = vmatpush1.msra.mxu0 0.0
  %1133 = vmatprep.subr.mxu0 0.0
  %1134 = vmatpush1.msra.mxu0 0.0
  %1135 = vmatprep.mubr.f32.mxu0 0.0
  %v1136 = vand.u32 %v55, 4294901760
  %1137 = vmatmul.mubr.f32.gmra.mrb[0].mxu0 %v1136
  %v1138 = vpop.f32.mrb[0].mxu0
  %v1139 = vadd.f32 %v974, %v1138
  %v1140 = vpop.f32.mrb[0].mxu0
  %1141 = vmatprep.mubr.f32.mxu0 0.0
  %v1142 = vand.u32 %v58, 4294901760
  %1143 = vmatmul.mubr.f32.gmra.mrb[0].mxu0 %v1142
  %v1144 = vpop.f32.mrb[0].mxu0
  %v1145 = vadd.f32 %v980, %v1144
  %v1146 = vpop.f32.mrb[0].mxu0
  %1147 = vmatprep.mubr.f32.mxu0 0.0
  %v1148 = vand.u32 %v61, 4294901760
  %1149 = vmatmul.mubr.f32.gmra.mrb[0].mxu0 %v1148
  %v1150 = vpop.f32.mrb[0].mxu0
  %v1151 = vadd.f32 %v986, %v1150
  %v1152 = vpop.f32.mrb[0].mxu0
  %1153 = vmatprep.mubr.f32.mxu0 0.0
  %v1154 = vand.u32 %v64, 4294901760
  %1155 = vmatmul.mubr.f32.gmra.mrb[0].mxu0 %v1154
  %v1156 = vpop.f32.mrb[0].mxu0
  %v1157 = vadd.f32 %v992, %v1156
  %v1158 = vpop.f32.mrb[0].mxu0
  %1159 = vmatprep.mubr.f32.mxu0 0.0
  %v1160 = vand.u32 %v67, 4294901760
  %1161 = vmatmul.mubr.f32.gmra.mrb[0].mxu0 %v1160
  %v1162 = vpop.f32.mrb[0].mxu0
  %v1163 = vadd.f32 %v998, %v1162
  %v1164 = vpop.f32.mrb[0].mxu0
  %1165 = vmatprep.mubr.f32.mxu0 0.0
  %v1166 = vand.u32 %v70, 4294901760
  %1167 = vmatmul.mubr.f32.gmra.mrb[0].mxu0 %v1166
  %v1168 = vpop.f32.mrb[0].mxu0
  %v1169 = vadd.f32 %v1004, %v1168
  %v1170 = vpop.f32.mrb[0].mxu0
  %1171 = vmatprep.mubr.f32.mxu0 0.0
  %v1172 = vand.u32 %v73, 4294901760
  %1173 = vmatmul.mubr.f32.gmra.mrb[0].mxu0 %v1172
  %v1174 = vpop.f32.mrb[0].mxu0
  %v1175 = vadd.f32 %v1010, %v1174
  %v1176 = vpop.f32.mrb[0].mxu0
  %1177 = vmatprep.mubr.f32.mxu0 0.0
  %v1178 = vand.u32 %v76, 4294901760
  %1179 = vmatmul.mubr.f32.gmra.mrb[0].mxu0 %v1178
  %v1180 = vpop.f32.mrb[0].mxu0
  %v1181 = vadd.f32 %v1016, %v1180
  %v1182 = vpop.f32.mrb[0].mxu0
  %1183 = vmatprep.mubr.f32.mxu0 0.0
  %v1184 = vand.u32 %v79, 4294901760
  %1185 = vmatmul.mubr.f32.gmra.mrb[0].mxu0 %v1184
  %v1186 = vpop.f32.mrb[0].mxu0
  %v1187 = vadd.f32 %v1022, %v1186
  %v1188 = vpop.f32.mrb[0].mxu0
  %1189 = vmatprep.mubr.f32.mxu0 0.0
  %v1190 = vand.u32 %v82, 4294901760
  %1191 = vmatmul.mubr.f32.gmra.mrb[0].mxu0 %v1190
  %v1192 = vpop.f32.mrb[0].mxu0
  %v1193 = vadd.f32 %v1028, %v1192
  %v1194 = vpop.f32.mrb[0].mxu0
  %1195 = vmatprep.mubr.f32.mxu0 0.0
  %v1196 = vand.u32 %v85, 4294901760
  %1197 = vmatmul.mubr.f32.gmra.mrb[0].mxu0 %v1196
  %v1198 = vpop.f32.mrb[0].mxu0
  %v1199 = vadd.f32 %v1034, %v1198
  %v1200 = vpop.f32.mrb[0].mxu0
  %1201 = vmatprep.mubr.f32.mxu0 0.0
  %v1202 = vand.u32 %v88, 4294901760
  %1203 = vmatmul.mubr.f32.gmra.mrb[0].mxu0 %v1202
  %v1204 = vpop.f32.mrb[0].mxu0
  %v1205 = vadd.f32 %v1040, %v1204
  %v1206 = vpop.f32.mrb[0].mxu0
  %1207 = vmatprep.mubr.f32.mxu0 0.0
  %v1208 = vand.u32 %v91, 4294901760
  %1209 = vmatmul.mubr.f32.gmra.mrb[0].mxu0 %v1208
  %v1210 = vpop.f32.mrb[0].mxu0
  %v1211 = vadd.f32 %v1046, %v1210
  %v1212 = vpop.f32.mrb[0].mxu0
  %1213 = vmatprep.mubr.f32.mxu0 0.0
  %v1214 = vand.u32 %v94, 4294901760
  %1215 = vmatmul.mubr.f32.gmra.mrb[0].mxu0 %v1214
  %v1216 = vpop.f32.mrb[0].mxu0
  %v1217 = vadd.f32 %v1052, %v1216
  %v1218 = vpop.f32.mrb[0].mxu0
  %1219 = vmatprep.mubr.f32.mxu0 0.0
  %v1220 = vand.u32 %v97, 4294901760
  %1221 = vmatmul.mubr.f32.gmra.mrb[0].mxu0 %v1220
  %v1222 = vpop.f32.mrb[0].mxu0
  %v1223 = vadd.f32 %v1058, %v1222
  %v1224 = vpop.f32.mrb[0].mxu0
  %1225 = vmatprep.mubr.f32.mxu0 0.0
  %v1226 = vand.u32 %v100, 4294901760
  %1227 = vmatmul.mubr.f32.gmra.mrb[0].mxu0 %v1226
  %v1228 = vpop.f32.mrb[0].mxu0
  %v1229 = vadd.f32 %v1064, %v1228
  %v1230 = vpop.f32.mrb[0].mxu0
  %1231 = vdwg.mxu0
  %v1232 = vmax.f32 %v1139, 0.0
  %v1233 = vmax.f32 %v1145, 0.0
  %v1234 = vmax.f32 %v1151, 0.0
  %v1235 = vmax.f32 %v1157, 0.0
  %v1236 = vmax.f32 %v1163, 0.0
  %v1237 = vmax.f32 %v1169, 0.0
  %v1238 = vmax.f32 %v1175, 0.0
  %v1239 = vmax.f32 %v1181, 0.0
  %v1240 = vmax.f32 %v1187, 0.0
  %v1241 = vmax.f32 %v1193, 0.0
  %v1242 = vmax.f32 %v1199, 0.0
  %v1243 = vmax.f32 %v1205, 0.0
  %v1244 = vmax.f32 %v1211, 0.0
  %v1245 = vmax.f32 %v1217, 0.0
  %v1246 = vmax.f32 %v1223, 0.0
  %v1247 = vmax.f32 %v1229, 0.0
  %v1248 = vld [vmem:[%s3] sm:$0xff]
  %v1249 = vld [vmem:[%s3 + $0x8] sm:$0xff]
  %v1250 = vld [vmem:[%s3 + $0x10] sm:$0xff]
  %v1251 = vld [vmem:[%s3 + $0x18] sm:$0xff]
  %v1252 = vld [vmem:[%s4] sm:$0x1]
  %v1254 = vlaneseq
  %v1255 = vshrl.u32 %v1254, 7
  %v1256 = vsub.s32 0, %v1255
  %v1257 = vrot.slane %v1252, %v1256
  %v1260 = vsel %vm53, %v1232, 0
  %v1263 = vsel %vm53, %v1233, 0
  %v1266 = vsel %vm53, %v1234, 0
  %v1269 = vsel %vm53, %v1235, 0
  %v1272 = vsel %vm53, %v1236, 0
  %v1275 = vsel %vm53, %v1237, 0
  %v1278 = vsel %vm53, %v1238, 0
  %v1281 = vsel %vm53, %v1239, 0
  %v1284 = vsel %vm53, %v1240, 0
  %v1287 = vsel %vm53, %v1241, 0
  %v1290 = vsel %vm53, %v1242, 0
  %v1293 = vsel %vm53, %v1243, 0
  %v1296 = vsel %vm53, %v1244, 0
  %v1299 = vsel %vm53, %v1245, 0
  %v1302 = vsel %vm53, %v1246, 0
  %v1305 = vsel %vm53, %v1247, 0
  %1307 = vmatprep.subr.mxu0 0.0
  %v1308 = vand.u32 %v1248, 4294901760
  %1309 = vmatpush1.msra.mxu0 %v1308
  %1310 = vmatprep.subr.mxu0 0.0
  %v1311 = vand.u32 %v1249, 4294901760
  %1312 = vmatpush1.msra.mxu0 %v1311
  %1313 = vmatprep.subr.mxu0 0.0
  %v1314 = vand.u32 %v1250, 4294901760
  %1315 = vmatpush1.msra.mxu0 %v1314
  %1316 = vmatprep.subr.mxu0 0.0
  %v1317 = vand.u32 %v1251, 4294901760
  %1318 = vmatpush1.msra.mxu0 %v1317
  %1319 = vmatprep.subr.mxu0 0.0
  %1320 = vmatpush1.msra.mxu0 0.0
  %1321 = vmatprep.subr.mxu0 0.0
  %1322 = vmatpush1.msra.mxu0 0.0
  %1323 = vmatprep.subr.mxu0 0.0
  %1324 = vmatpush1.msra.mxu0 0.0
  %1325 = vmatprep.subr.mxu0 0.0
  %1326 = vmatpush1.msra.mxu0 0.0
  %1327 = vmatprep.subr.mxu0 0.0
  %1328 = vmatpush1.msra.mxu0 0.0
  %1329 = vmatprep.subr.mxu0 0.0
  %1330 = vmatpush1.msra.mxu0 0.0
  %1331 = vmatprep.subr.mxu0 0.0
  %1332 = vmatpush1.msra.mxu0 0.0
  %1333 = vmatprep.subr.mxu0 0.0
  %1334 = vmatpush1.msra.mxu0 0.0
  %1335 = vmatprep.subr.mxu0 0.0
  %1336 = vmatpush1.msra.mxu0 0.0
  %1337 = vmatprep.subr.mxu0 0.0
  %1338 = vmatpush1.msra.mxu0 0.0
  %1339 = vmatprep.subr.mxu0 0.0
  %1340 = vmatpush1.msra.mxu0 0.0
  %1341 = vmatprep.subr.mxu0 0.0
  %1342 = vmatpush1.msra.mxu0 0.0
  %1343 = vmatprep.subr.mxu0 0.0
  %1344 = vmatpush1.msra.mxu0 0.0
  %1345 = vmatprep.subr.mxu0 0.0
  %1346 = vmatpush1.msra.mxu0 0.0
  %1347 = vmatprep.subr.mxu0 0.0
  %1348 = vmatpush1.msra.mxu0 0.0
  %1349 = vmatprep.subr.mxu0 0.0
  %1350 = vmatpush1.msra.mxu0 0.0
  %1351 = vmatprep.subr.mxu0 0.0
  %1352 = vmatpush1.msra.mxu0 0.0
  %1353 = vmatprep.subr.mxu0 0.0
  %1354 = vmatpush1.msra.mxu0 0.0
  %1355 = vmatprep.subr.mxu0 0.0
  %1356 = vmatpush1.msra.mxu0 0.0
  %1357 = vmatprep.subr.mxu0 0.0
  %1358 = vmatpush1.msra.mxu0 0.0
  %1359 = vmatprep.subr.mxu0 0.0
  %1360 = vmatpush1.msra.mxu0 0.0
  %1361 = vmatprep.subr.mxu0 0.0
  %1362 = vmatpush1.msra.mxu0 0.0
  %1363 = vmatprep.subr.mxu0 0.0
  %1364 = vmatpush1.msra.mxu0 0.0
  %1365 = vmatprep.subr.mxu0 0.0
  %1366 = vmatpush1.msra.mxu0 0.0
  %1367 = vmatprep.subr.mxu0 0.0
  %1368 = vmatpush1.msra.mxu0 0.0
  %1369 = vmatprep.subr.mxu0 0.0
  %1370 = vmatpush1.msra.mxu0 0.0
  %1371 = vmatprep.subr.mxu0 0.0
  %1372 = vmatpush1.msra.mxu0 0.0
  %1373 = vmatprep.subr.mxu0 0.0
  %1374 = vmatpush1.msra.mxu0 0.0
  %1375 = vmatprep.mubr.f32.mxu0 0.0
  %v1376 = vand.u32 %v1260, 4294901760
  %v1377 = vsub.f32 %v1260, %v1376
  %v1378 = vand.u32 %v1377, 4294901760
  %v1379 = vsub.f32 %v1377, %v1378
  %v1380 = vand.u32 %v1379, 4294901760
  %1381 = vmatmul.mubr.f32.gmra.mrb[0].mxu0 %v1380
  %v1382 = vpop.f32.mrb[0].mxu0
  %v1383 = vadd.f32 %v1257, %v1382
  %v1384 = vpop.f32.mrb[0].mxu0
  %1385 = vmatprep.mubr.f32.mxu0 0.0
  %v1386 = vand.u32 %v1263, 4294901760
  %v1387 = vsub.f32 %v1263, %v1386
  %v1388 = vand.u32 %v1387, 4294901760
  %v1389 = vsub.f32 %v1387, %v1388
  %v1390 = vand.u32 %v1389, 4294901760
  %1391 = vmatmul.mubr.f32.gmra.mrb[0].mxu0 %v1390
  %v1392 = vpop.f32.mrb[0].mxu0
  %v1393 = vadd.f32 %v1257, %v1392
  %v1394 = vpop.f32.mrb[0].mxu0
  %1395 = vmatprep.mubr.f32.mxu0 0.0
  %v1396 = vand.u32 %v1266, 4294901760
  %v1397 = vsub.f32 %v1266, %v1396
  %v1398 = vand.u32 %v1397, 4294901760
  %v1399 = vsub.f32 %v1397, %v1398
  %v1400 = vand.u32 %v1399, 4294901760
  %1401 = vmatmul.mubr.f32.gmra.mrb[0].mxu0 %v1400
  %v1402 = vpop.f32.mrb[0].mxu0
  %v1403 = vadd.f32 %v1257, %v1402
  %v1404 = vpop.f32.mrb[0].mxu0
  %1405 = vmatprep.mubr.f32.mxu0 0.0
  %v1406 = vand.u32 %v1269, 4294901760
  %v1407 = vsub.f32 %v1269, %v1406
  %v1408 = vand.u32 %v1407, 4294901760
  %v1409 = vsub.f32 %v1407, %v1408
  %v1410 = vand.u32 %v1409, 4294901760
  %1411 = vmatmul.mubr.f32.gmra.mrb[0].mxu0 %v1410
  %v1412 = vpop.f32.mrb[0].mxu0
  %v1413 = vadd.f32 %v1257, %v1412
  %v1414 = vpop.f32.mrb[0].mxu0
  %1415 = vmatprep.mubr.f32.mxu0 0.0
  %v1416 = vand.u32 %v1272, 4294901760
  %v1417 = vsub.f32 %v1272, %v1416
  %v1418 = vand.u32 %v1417, 4294901760
  %v1419 = vsub.f32 %v1417, %v1418
  %v1420 = vand.u32 %v1419, 4294901760
  %1421 = vmatmul.mubr.f32.gmra.mrb[0].mxu0 %v1420
  %v1422 = vpop.f32.mrb[0].mxu0
  %v1423 = vadd.f32 %v1257, %v1422
  %v1424 = vpop.f32.mrb[0].mxu0
  %1425 = vmatprep.mubr.f32.mxu0 0.0
  %v1426 = vand.u32 %v1275, 4294901760
  %v1427 = vsub.f32 %v1275, %v1426
  %v1428 = vand.u32 %v1427, 4294901760
  %v1429 = vsub.f32 %v1427, %v1428
  %v1430 = vand.u32 %v1429, 4294901760
  %1431 = vmatmul.mubr.f32.gmra.mrb[0].mxu0 %v1430
  %v1432 = vpop.f32.mrb[0].mxu0
  %v1433 = vadd.f32 %v1257, %v1432
  %v1434 = vpop.f32.mrb[0].mxu0
  %1435 = vmatprep.mubr.f32.mxu0 0.0
  %v1436 = vand.u32 %v1278, 4294901760
  %v1437 = vsub.f32 %v1278, %v1436
  %v1438 = vand.u32 %v1437, 4294901760
  %v1439 = vsub.f32 %v1437, %v1438
  %v1440 = vand.u32 %v1439, 4294901760
  %1441 = vmatmul.mubr.f32.gmra.mrb[0].mxu0 %v1440
  %v1442 = vpop.f32.mrb[0].mxu0
  %v1443 = vadd.f32 %v1257, %v1442
  %v1444 = vpop.f32.mrb[0].mxu0
  %1445 = vmatprep.mubr.f32.mxu0 0.0
  %v1446 = vand.u32 %v1281, 4294901760
  %v1447 = vsub.f32 %v1281, %v1446
  %v1448 = vand.u32 %v1447, 4294901760
  %v1449 = vsub.f32 %v1447, %v1448
  %v1450 = vand.u32 %v1449, 4294901760
  %1451 = vmatmul.mubr.f32.gmra.mrb[0].mxu0 %v1450
  %v1452 = vpop.f32.mrb[0].mxu0
  %v1453 = vadd.f32 %v1257, %v1452
  %v1454 = vpop.f32.mrb[0].mxu0
  %1455 = vmatprep.mubr.f32.mxu0 0.0
  %v1456 = vand.u32 %v1284, 4294901760
  %v1457 = vsub.f32 %v1284, %v1456
  %v1458 = vand.u32 %v1457, 4294901760
  %v1459 = vsub.f32 %v1457, %v1458
  %v1460 = vand.u32 %v1459, 4294901760
  %1461 = vmatmul.mubr.f32.gmra.mrb[0].mxu0 %v1460
  %v1462 = vpop.f32.mrb[0].mxu0
  %v1463 = vadd.f32 %v1257, %v1462
  %v1464 = vpop.f32.mrb[0].mxu0
  %1465 = vmatprep.mubr.f32.mxu0 0.0
  %v1466 = vand.u32 %v1287, 4294901760
  %v1467 = vsub.f32 %v1287, %v1466
  %v1468 = vand.u32 %v1467, 4294901760
  %v1469 = vsub.f32 %v1467, %v1468
  %v1470 = vand.u32 %v1469, 4294901760
  %1471 = vmatmul.mubr.f32.gmra.mrb[0].mxu0 %v1470
  %v1472 = vpop.f32.mrb[0].mxu0
  %v1473 = vadd.f32 %v1257, %v1472
  %v1474 = vpop.f32.mrb[0].mxu0
  %1475 = vmatprep.mubr.f32.mxu0 0.0
  %v1476 = vand.u32 %v1290, 4294901760
  %v1477 = vsub.f32 %v1290, %v1476
  %v1478 = vand.u32 %v1477, 4294901760
  %v1479 = vsub.f32 %v1477, %v1478
  %v1480 = vand.u32 %v1479, 4294901760
  %1481 = vmatmul.mubr.f32.gmra.mrb[0].mxu0 %v1480
  %v1482 = vpop.f32.mrb[0].mxu0
  %v1483 = vadd.f32 %v1257, %v1482
  %v1484 = vpop.f32.mrb[0].mxu0
  %1485 = vmatprep.mubr.f32.mxu0 0.0
  %v1486 = vand.u32 %v1293, 4294901760
  %v1487 = vsub.f32 %v1293, %v1486
  %v1488 = vand.u32 %v1487, 4294901760
  %v1489 = vsub.f32 %v1487, %v1488
  %v1490 = vand.u32 %v1489, 4294901760
  %1491 = vmatmul.mubr.f32.gmra.mrb[0].mxu0 %v1490
  %v1492 = vpop.f32.mrb[0].mxu0
  %v1493 = vadd.f32 %v1257, %v1492
  %v1494 = vpop.f32.mrb[0].mxu0
  %1495 = vmatprep.mubr.f32.mxu0 0.0
  %v1496 = vand.u32 %v1296, 4294901760
  %v1497 = vsub.f32 %v1296, %v1496
  %v1498 = vand.u32 %v1497, 4294901760
  %v1499 = vsub.f32 %v1497, %v1498
  %v1500 = vand.u32 %v1499, 4294901760
  %1501 = vmatmul.mubr.f32.gmra.mrb[0].mxu0 %v1500
  %v1502 = vpop.f32.mrb[0].mxu0
  %v1503 = vadd.f32 %v1257, %v1502
  %v1504 = vpop.f32.mrb[0].mxu0
  %1505 = vmatprep.mubr.f32.mxu0 0.0
  %v1506 = vand.u32 %v1299, 4294901760
  %v1507 = vsub.f32 %v1299, %v1506
  %v1508 = vand.u32 %v1507, 4294901760
  %v1509 = vsub.f32 %v1507, %v1508
  %v1510 = vand.u32 %v1509, 4294901760
  %1511 = vmatmul.mubr.f32.gmra.mrb[0].mxu0 %v1510
  %v1512 = vpop.f32.mrb[0].mxu0
  %v1513 = vadd.f32 %v1257, %v1512
  %v1514 = vpop.f32.mrb[0].mxu0
  %1515 = vmatprep.mubr.f32.mxu0 0.0
  %v1516 = vand.u32 %v1302, 4294901760
  %v1517 = vsub.f32 %v1302, %v1516
  %v1518 = vand.u32 %v1517, 4294901760
  %v1519 = vsub.f32 %v1517, %v1518
  %v1520 = vand.u32 %v1519, 4294901760
  %1521 = vmatmul.mubr.f32.gmra.mrb[0].mxu0 %v1520
  %v1522 = vpop.f32.mrb[0].mxu0
  %v1523 = vadd.f32 %v1257, %v1522
  %v1524 = vpop.f32.mrb[0].mxu0
  %1525 = vmatprep.mubr.f32.mxu0 0.0
  %v1526 = vand.u32 %v1305, 4294901760
  %v1527 = vsub.f32 %v1305, %v1526
  %v1528 = vand.u32 %v1527, 4294901760
  %v1529 = vsub.f32 %v1527, %v1528
  %v1530 = vand.u32 %v1529, 4294901760
  %1531 = vmatmul.mubr.f32.gmra.mrb[0].mxu0 %v1530
  %v1532 = vpop.f32.mrb[0].mxu0
  %v1533 = vadd.f32 %v1257, %v1532
  %v1534 = vpop.f32.mrb[0].mxu0
  %1535 = vdwg.mxu0
  %1536 = vmatprep.subr.mxu0 0.0
  %v1537 = vand.u32 %v1248, 4294901760
  %v1538 = vsub.f32 %v1248, %v1537
  %v1539 = vand.u32 %v1538, 4294901760
  %v1540 = vsub.f32 %v1538, %v1539
  %v1541 = vand.u32 %v1540, 4294901760
  %1542 = vmatpush1.msra.mxu0 %v1541
  %1543 = vmatprep.subr.mxu0 0.0
  %v1544 = vand.u32 %v1249, 4294901760
  %v1545 = vsub.f32 %v1249, %v1544
  %v1546 = vand.u32 %v1545, 4294901760
  %v1547 = vsub.f32 %v1545, %v1546
  %v1548 = vand.u32 %v1547, 4294901760
  %1549 = vmatpush1.msra.mxu0 %v1548
  %1550 = vmatprep.subr.mxu0 0.0
  %v1551 = vand.u32 %v1250, 4294901760
  %v1552 = vsub.f32 %v1250, %v1551
  %v1553 = vand.u32 %v1552, 4294901760
  %v1554 = vsub.f32 %v1552, %v1553
  %v1555 = vand.u32 %v1554, 4294901760
  %1556 = vmatpush1.msra.mxu0 %v1555
  %1557 = vmatprep.subr.mxu0 0.0
  %v1558 = vand.u32 %v1251, 4294901760
  %v1559 = vsub.f32 %v1251, %v1558
  %v1560 = vand.u32 %v1559, 4294901760
  %v1561 = vsub.f32 %v1559, %v1560
  %v1562 = vand.u32 %v1561, 4294901760
  %1563 = vmatpush1.msra.mxu0 %v1562
  %1564 = vmatprep.subr.mxu0 0.0
  %1565 = vmatpush1.msra.mxu0 0.0
  %1566 = vmatprep.subr.mxu0 0.0
  %1567 = vmatpush1.msra.mxu0 0.0
  %1568 = vmatprep.subr.mxu0 0.0
  %1569 = vmatpush1.msra.mxu0 0.0
  %1570 = vmatprep.subr.mxu0 0.0
  %1571 = vmatpush1.msra.mxu0 0.0
  %1572 = vmatprep.subr.mxu0 0.0
  %1573 = vmatpush1.msra.mxu0 0.0
  %1574 = vmatprep.subr.mxu0 0.0
  %1575 = vmatpush1.msra.mxu0 0.0
  %1576 = vmatprep.subr.mxu0 0.0
  %1577 = vmatpush1.msra.mxu0 0.0
  %1578 = vmatprep.subr.mxu0 0.0
  %1579 = vmatpush1.msra.mxu0 0.0
  %1580 = vmatprep.subr.mxu0 0.0
  %1581 = vmatpush1.msra.mxu0 0.0
  %1582 = vmatprep.subr.mxu0 0.0
  %1583 = vmatpush1.msra.mxu0 0.0
  %1584 = vmatprep.subr.mxu0 0.0
  %1585 = vmatpush1.msra.mxu0 0.0
  %1586 = vmatprep.subr.mxu0 0.0
  %1587 = vmatpush1.msra.mxu0 0.0
  %1588 = vmatprep.subr.mxu0 0.0
  %1589 = vmatpush1.msra.mxu0 0.0
  %1590 = vmatprep.subr.mxu0 0.0
  %1591 = vmatpush1.msra.mxu0 0.0
  %1592 = vmatprep.subr.mxu0 0.0
  %1593 = vmatpush1.msra.mxu0 0.0
  %1594 = vmatprep.subr.mxu0 0.0
  %1595 = vmatpush1.msra.mxu0 0.0
  %1596 = vmatprep.subr.mxu0 0.0
  %1597 = vmatpush1.msra.mxu0 0.0
  %1598 = vmatprep.subr.mxu0 0.0
  %1599 = vmatpush1.msra.mxu0 0.0
  %1600 = vmatprep.subr.mxu0 0.0
  %1601 = vmatpush1.msra.mxu0 0.0
  %1602 = vmatprep.subr.mxu0 0.0
  %1603 = vmatpush1.msra.mxu0 0.0
  %1604 = vmatprep.subr.mxu0 0.0
  %1605 = vmatpush1.msra.mxu0 0.0
  %1606 = vmatprep.subr.mxu0 0.0
  %1607 = vmatpush1.msra.mxu0 0.0
  %1608 = vmatprep.subr.mxu0 0.0
  %1609 = vmatpush1.msra.mxu0 0.0
  %1610 = vmatprep.subr.mxu0 0.0
  %1611 = vmatpush1.msra.mxu0 0.0
  %1612 = vmatprep.subr.mxu0 0.0
  %1613 = vmatpush1.msra.mxu0 0.0
  %1614 = vmatprep.subr.mxu0 0.0
  %1615 = vmatpush1.msra.mxu0 0.0
  %1616 = vmatprep.subr.mxu0 0.0
  %1617 = vmatpush1.msra.mxu0 0.0
  %1618 = vmatprep.subr.mxu0 0.0
  %1619 = vmatpush1.msra.mxu0 0.0
  %1620 = vmatprep.mubr.f32.mxu0 0.0
  %v1621 = vand.u32 %v1260, 4294901760
  %1622 = vmatmul.mubr.f32.gmra.mrb[0].mxu0 %v1621
  %v1623 = vpop.f32.mrb[0].mxu0
  %v1624 = vadd.f32 %v1383, %v1623
  %v1625 = vpop.f32.mrb[0].mxu0
  %1626 = vmatprep.mubr.f32.mxu0 0.0
  %v1627 = vand.u32 %v1263, 4294901760
  %1628 = vmatmul.mubr.f32.gmra.mrb[0].mxu0 %v1627
  %v1629 = vpop.f32.mrb[0].mxu0
  %v1630 = vadd.f32 %v1393, %v1629
  %v1631 = vpop.f32.mrb[0].mxu0
  %1632 = vmatprep.mubr.f32.mxu0 0.0
  %v1633 = vand.u32 %v1266, 4294901760
  %1634 = vmatmul.mubr.f32.gmra.mrb[0].mxu0 %v1633
  %v1635 = vpop.f32.mrb[0].mxu0
  %v1636 = vadd.f32 %v1403, %v1635
  %v1637 = vpop.f32.mrb[0].mxu0
  %1638 = vmatprep.mubr.f32.mxu0 0.0
  %v1639 = vand.u32 %v1269, 4294901760
  %1640 = vmatmul.mubr.f32.gmra.mrb[0].mxu0 %v1639
  %v1641 = vpop.f32.mrb[0].mxu0
  %v1642 = vadd.f32 %v1413, %v1641
  %v1643 = vpop.f32.mrb[0].mxu0
  %1644 = vmatprep.mubr.f32.mxu0 0.0
  %v1645 = vand.u32 %v1272, 4294901760
  %1646 = vmatmul.mubr.f32.gmra.mrb[0].mxu0 %v1645
  %v1647 = vpop.f32.mrb[0].mxu0
  %v1648 = vadd.f32 %v1423, %v1647
  %v1649 = vpop.f32.mrb[0].mxu0
  %1650 = vmatprep.mubr.f32.mxu0 0.0
  %v1651 = vand.u32 %v1275, 4294901760
  %1652 = vmatmul.mubr.f32.gmra.mrb[0].mxu0 %v1651
  %v1653 = vpop.f32.mrb[0].mxu0
  %v1654 = vadd.f32 %v1433, %v1653
  %v1655 = vpop.f32.mrb[0].mxu0
  %1656 = vmatprep.mubr.f32.mxu0 0.0
  %v1657 = vand.u32 %v1278, 4294901760
  %1658 = vmatmul.mubr.f32.gmra.mrb[0].mxu0 %v1657
  %v1659 = vpop.f32.mrb[0].mxu0
  %v1660 = vadd.f32 %v1443, %v1659
  %v1661 = vpop.f32.mrb[0].mxu0
  %1662 = vmatprep.mubr.f32.mxu0 0.0
  %v1663 = vand.u32 %v1281, 4294901760
  %1664 = vmatmul.mubr.f32.gmra.mrb[0].mxu0 %v1663
  %v1665 = vpop.f32.mrb[0].mxu0
  %v1666 = vadd.f32 %v1453, %v1665
  %v1667 = vpop.f32.mrb[0].mxu0
  %1668 = vmatprep.mubr.f32.mxu0 0.0
  %v1669 = vand.u32 %v1284, 4294901760
  %1670 = vmatmul.mubr.f32.gmra.mrb[0].mxu0 %v1669
  %v1671 = vpop.f32.mrb[0].mxu0
  %v1672 = vadd.f32 %v1463, %v1671
  %v1673 = vpop.f32.mrb[0].mxu0
  %1674 = vmatprep.mubr.f32.mxu0 0.0
  %v1675 = vand.u32 %v1287, 4294901760
  %1676 = vmatmul.mubr.f32.gmra.mrb[0].mxu0 %v1675
  %v1677 = vpop.f32.mrb[0].mxu0
  %v1678 = vadd.f32 %v1473, %v1677
  %v1679 = vpop.f32.mrb[0].mxu0
  %1680 = vmatprep.mubr.f32.mxu0 0.0
  %v1681 = vand.u32 %v1290, 4294901760
  %1682 = vmatmul.mubr.f32.gmra.mrb[0].mxu0 %v1681
  %v1683 = vpop.f32.mrb[0].mxu0
  %v1684 = vadd.f32 %v1483, %v1683
  %v1685 = vpop.f32.mrb[0].mxu0
  %1686 = vmatprep.mubr.f32.mxu0 0.0
  %v1687 = vand.u32 %v1293, 4294901760
  %1688 = vmatmul.mubr.f32.gmra.mrb[0].mxu0 %v1687
  %v1689 = vpop.f32.mrb[0].mxu0
  %v1690 = vadd.f32 %v1493, %v1689
  %v1691 = vpop.f32.mrb[0].mxu0
  %1692 = vmatprep.mubr.f32.mxu0 0.0
  %v1693 = vand.u32 %v1296, 4294901760
  %1694 = vmatmul.mubr.f32.gmra.mrb[0].mxu0 %v1693
  %v1695 = vpop.f32.mrb[0].mxu0
  %v1696 = vadd.f32 %v1503, %v1695
  %v1697 = vpop.f32.mrb[0].mxu0
  %1698 = vmatprep.mubr.f32.mxu0 0.0
  %v1699 = vand.u32 %v1299, 4294901760
  %1700 = vmatmul.mubr.f32.gmra.mrb[0].mxu0 %v1699
  %v1701 = vpop.f32.mrb[0].mxu0
  %v1702 = vadd.f32 %v1513, %v1701
  %v1703 = vpop.f32.mrb[0].mxu0
  %1704 = vmatprep.mubr.f32.mxu0 0.0
  %v1705 = vand.u32 %v1302, 4294901760
  %1706 = vmatmul.mubr.f32.gmra.mrb[0].mxu0 %v1705
  %v1707 = vpop.f32.mrb[0].mxu0
  %v1708 = vadd.f32 %v1523, %v1707
  %v1709 = vpop.f32.mrb[0].mxu0
  %1710 = vmatprep.mubr.f32.mxu0 0.0
  %v1711 = vand.u32 %v1305, 4294901760
  %1712 = vmatmul.mubr.f32.gmra.mrb[0].mxu0 %v1711
  %v1713 = vpop.f32.mrb[0].mxu0
  %v1714 = vadd.f32 %v1533, %v1713
  %v1715 = vpop.f32.mrb[0].mxu0
  %1716 = vdwg.mxu0
  %1717 = vmatprep.subr.mxu0 0.0
  %v1718 = vand.u32 %v1248, 4294901760
  %v1719 = vsub.f32 %v1248, %v1718
  %1720 = vmatpush1.msra.mxu0 %v1719
  %1721 = vmatprep.subr.mxu0 0.0
  %v1722 = vand.u32 %v1249, 4294901760
  %v1723 = vsub.f32 %v1249, %v1722
  %1724 = vmatpush1.msra.mxu0 %v1723
  %1725 = vmatprep.subr.mxu0 0.0
  %v1726 = vand.u32 %v1250, 4294901760
  %v1727 = vsub.f32 %v1250, %v1726
  %1728 = vmatpush1.msra.mxu0 %v1727
  %1729 = vmatprep.subr.mxu0 0.0
  %v1730 = vand.u32 %v1251, 4294901760
  %v1731 = vsub.f32 %v1251, %v1730
  %1732 = vmatpush1.msra.mxu0 %v1731
  %1733 = vmatprep.subr.mxu0 0.0
  %1734 = vmatpush1.msra.mxu0 0.0
  %1735 = vmatprep.subr.mxu0 0.0
  %1736 = vmatpush1.msra.mxu0 0.0
  %1737 = vmatprep.subr.mxu0 0.0
  %1738 = vmatpush1.msra.mxu0 0.0
  %1739 = vmatprep.subr.mxu0 0.0
  %1740 = vmatpush1.msra.mxu0 0.0
  %1741 = vmatprep.subr.mxu0 0.0
  %1742 = vmatpush1.msra.mxu0 0.0
  %1743 = vmatprep.subr.mxu0 0.0
  %1744 = vmatpush1.msra.mxu0 0.0
  %1745 = vmatprep.subr.mxu0 0.0
  %1746 = vmatpush1.msra.mxu0 0.0
  %1747 = vmatprep.subr.mxu0 0.0
  %1748 = vmatpush1.msra.mxu0 0.0
  %1749 = vmatprep.subr.mxu0 0.0
  %1750 = vmatpush1.msra.mxu0 0.0
  %1751 = vmatprep.subr.mxu0 0.0
  %1752 = vmatpush1.msra.mxu0 0.0
  %1753 = vmatprep.subr.mxu0 0.0
  %1754 = vmatpush1.msra.mxu0 0.0
  %1755 = vmatprep.subr.mxu0 0.0
  %1756 = vmatpush1.msra.mxu0 0.0
  %1757 = vmatprep.subr.mxu0 0.0
  %1758 = vmatpush1.msra.mxu0 0.0
  %1759 = vmatprep.subr.mxu0 0.0
  %1760 = vmatpush1.msra.mxu0 0.0
  %1761 = vmatprep.subr.mxu0 0.0
  %1762 = vmatpush1.msra.mxu0 0.0
  %1763 = vmatprep.subr.mxu0 0.0
  %1764 = vmatpush1.msra.mxu0 0.0
  %1765 = vmatprep.subr.mxu0 0.0
  %1766 = vmatpush1.msra.mxu0 0.0
  %1767 = vmatprep.subr.mxu0 0.0
  %1768 = vmatpush1.msra.mxu0 0.0
  %1769 = vmatprep.subr.mxu0 0.0
  %1770 = vmatpush1.msra.mxu0 0.0
  %1771 = vmatprep.subr.mxu0 0.0
  %1772 = vmatpush1.msra.mxu0 0.0
  %1773 = vmatprep.subr.mxu0 0.0
  %1774 = vmatpush1.msra.mxu0 0.0
  %1775 = vmatprep.subr.mxu0 0.0
  %1776 = vmatpush1.msra.mxu0 0.0
  %1777 = vmatprep.subr.mxu0 0.0
  %1778 = vmatpush1.msra.mxu0 0.0
  %1779 = vmatprep.subr.mxu0 0.0
  %1780 = vmatpush1.msra.mxu0 0.0
  %1781 = vmatprep.subr.mxu0 0.0
  %1782 = vmatpush1.msra.mxu0 0.0
  %1783 = vmatprep.subr.mxu0 0.0
  %1784 = vmatpush1.msra.mxu0 0.0
  %1785 = vmatprep.subr.mxu0 0.0
  %1786 = vmatpush1.msra.mxu0 0.0
  %1787 = vmatprep.subr.mxu0 0.0
  %1788 = vmatpush1.msra.mxu0 0.0
  %1789 = vmatprep.mubr.f32.mxu0 0.0
  %v1790 = vand.u32 %v1260, 4294901760
  %v1791 = vsub.f32 %v1260, %v1790
  %1792 = vmatmul.mubr.f32.gmra.mrb[0].mxu0 %v1791
  %v1793 = vpop.f32.mrb[0].mxu0
  %v1794 = vadd.f32 %v1624, %v1793
  %v1795 = vpop.f32.mrb[0].mxu0
  %1796 = vmatprep.mubr.f32.mxu0 0.0
  %v1797 = vand.u32 %v1263, 4294901760
  %v1798 = vsub.f32 %v1263, %v1797
  %1799 = vmatmul.mubr.f32.gmra.mrb[0].mxu0 %v1798
  %v1800 = vpop.f32.mrb[0].mxu0
  %v1801 = vadd.f32 %v1630, %v1800
  %v1802 = vpop.f32.mrb[0].mxu0
  %1803 = vmatprep.mubr.f32.mxu0 0.0
  %v1804 = vand.u32 %v1266, 4294901760
  %v1805 = vsub.f32 %v1266, %v1804
  %1806 = vmatmul.mubr.f32.gmra.mrb[0].mxu0 %v1805
  %v1807 = vpop.f32.mrb[0].mxu0
  %v1808 = vadd.f32 %v1636, %v1807
  %v1809 = vpop.f32.mrb[0].mxu0
  %1810 = vmatprep.mubr.f32.mxu0 0.0
  %v1811 = vand.u32 %v1269, 4294901760
  %v1812 = vsub.f32 %v1269, %v1811
  %1813 = vmatmul.mubr.f32.gmra.mrb[0].mxu0 %v1812
  %v1814 = vpop.f32.mrb[0].mxu0
  %v1815 = vadd.f32 %v1642, %v1814
  %v1816 = vpop.f32.mrb[0].mxu0
  %1817 = vmatprep.mubr.f32.mxu0 0.0
  %v1818 = vand.u32 %v1272, 4294901760
  %v1819 = vsub.f32 %v1272, %v1818
  %1820 = vmatmul.mubr.f32.gmra.mrb[0].mxu0 %v1819
  %v1821 = vpop.f32.mrb[0].mxu0
  %v1822 = vadd.f32 %v1648, %v1821
  %v1823 = vpop.f32.mrb[0].mxu0
  %1824 = vmatprep.mubr.f32.mxu0 0.0
  %v1825 = vand.u32 %v1275, 4294901760
  %v1826 = vsub.f32 %v1275, %v1825
  %1827 = vmatmul.mubr.f32.gmra.mrb[0].mxu0 %v1826
  %v1828 = vpop.f32.mrb[0].mxu0
  %v1829 = vadd.f32 %v1654, %v1828
  %v1830 = vpop.f32.mrb[0].mxu0
  %1831 = vmatprep.mubr.f32.mxu0 0.0
  %v1832 = vand.u32 %v1278, 4294901760
  %v1833 = vsub.f32 %v1278, %v1832
  %1834 = vmatmul.mubr.f32.gmra.mrb[0].mxu0 %v1833
  %v1835 = vpop.f32.mrb[0].mxu0
  %v1836 = vadd.f32 %v1660, %v1835
  %v1837 = vpop.f32.mrb[0].mxu0
  %1838 = vmatprep.mubr.f32.mxu0 0.0
  %v1839 = vand.u32 %v1281, 4294901760
  %v1840 = vsub.f32 %v1281, %v1839
  %1841 = vmatmul.mubr.f32.gmra.mrb[0].mxu0 %v1840
  %v1842 = vpop.f32.mrb[0].mxu0
  %v1843 = vadd.f32 %v1666, %v1842
  %v1844 = vpop.f32.mrb[0].mxu0
  %1845 = vmatprep.mubr.f32.mxu0 0.0
  %v1846 = vand.u32 %v1284, 4294901760
  %v1847 = vsub.f32 %v1284, %v1846
  %1848 = vmatmul.mubr.f32.gmra.mrb[0].mxu0 %v1847
  %v1849 = vpop.f32.mrb[0].mxu0
  %v1850 = vadd.f32 %v1672, %v1849
  %v1851 = vpop.f32.mrb[0].mxu0
  %1852 = vmatprep.mubr.f32.mxu0 0.0
  %v1853 = vand.u32 %v1287, 4294901760
  %v1854 = vsub.f32 %v1287, %v1853
  %1855 = vmatmul.mubr.f32.gmra.mrb[0].mxu0 %v1854
  %v1856 = vpop.f32.mrb[0].mxu0
  %v1857 = vadd.f32 %v1678, %v1856
  %v1858 = vpop.f32.mrb[0].mxu0
  %1859 = vmatprep.mubr.f32.mxu0 0.0
  %v1860 = vand.u32 %v1290, 4294901760
  %v1861 = vsub.f32 %v1290, %v1860
  %1862 = vmatmul.mubr.f32.gmra.mrb[0].mxu0 %v1861
  %v1863 = vpop.f32.mrb[0].mxu0
  %v1864 = vadd.f32 %v1684, %v1863
  %v1865 = vpop.f32.mrb[0].mxu0
  %1866 = vmatprep.mubr.f32.mxu0 0.0
  %v1867 = vand.u32 %v1293, 4294901760
  %v1868 = vsub.f32 %v1293, %v1867
  %1869 = vmatmul.mubr.f32.gmra.mrb[0].mxu0 %v1868
  %v1870 = vpop.f32.mrb[0].mxu0
  %v1871 = vadd.f32 %v1690, %v1870
  %v1872 = vpop.f32.mrb[0].mxu0
  %1873 = vmatprep.mubr.f32.mxu0 0.0
  %v1874 = vand.u32 %v1296, 4294901760
  %v1875 = vsub.f32 %v1296, %v1874
  %1876 = vmatmul.mubr.f32.gmra.mrb[0].mxu0 %v1875
  %v1877 = vpop.f32.mrb[0].mxu0
  %v1878 = vadd.f32 %v1696, %v1877
  %v1879 = vpop.f32.mrb[0].mxu0
  %1880 = vmatprep.mubr.f32.mxu0 0.0
  %v1881 = vand.u32 %v1299, 4294901760
  %v1882 = vsub.f32 %v1299, %v1881
  %1883 = vmatmul.mubr.f32.gmra.mrb[0].mxu0 %v1882
  %v1884 = vpop.f32.mrb[0].mxu0
  %v1885 = vadd.f32 %v1702, %v1884
  %v1886 = vpop.f32.mrb[0].mxu0
  %1887 = vmatprep.mubr.f32.mxu0 0.0
  %v1888 = vand.u32 %v1302, 4294901760
  %v1889 = vsub.f32 %v1302, %v1888
  %1890 = vmatmul.mubr.f32.gmra.mrb[0].mxu0 %v1889
  %v1891 = vpop.f32.mrb[0].mxu0
  %v1892 = vadd.f32 %v1708, %v1891
  %v1893 = vpop.f32.mrb[0].mxu0
  %1894 = vmatprep.mubr.f32.mxu0 0.0
  %v1895 = vand.u32 %v1305, 4294901760
  %v1896 = vsub.f32 %v1305, %v1895
  %1897 = vmatmul.mubr.f32.gmra.mrb[0].mxu0 %v1896
  %v1898 = vpop.f32.mrb[0].mxu0
  %v1899 = vadd.f32 %v1714, %v1898
  %v1900 = vpop.f32.mrb[0].mxu0
  %1901 = vdwg.mxu0
  %1902 = vmatprep.subr.mxu0 0.0
  %v1903 = vand.u32 %v1248, 4294901760
  %1904 = vmatpush1.msra.mxu0 %v1903
  %1905 = vmatprep.subr.mxu0 0.0
  %v1906 = vand.u32 %v1249, 4294901760
  %1907 = vmatpush1.msra.mxu0 %v1906
  %1908 = vmatprep.subr.mxu0 0.0
  %v1909 = vand.u32 %v1250, 4294901760
  %1910 = vmatpush1.msra.mxu0 %v1909
  %1911 = vmatprep.subr.mxu0 0.0
  %v1912 = vand.u32 %v1251, 4294901760
  %1913 = vmatpush1.msra.mxu0 %v1912
  %1914 = vmatprep.subr.mxu0 0.0
  %1915 = vmatpush1.msra.mxu0 0.0
  %1916 = vmatprep.subr.mxu0 0.0
  %1917 = vmatpush1.msra.mxu0 0.0
  %1918 = vmatprep.subr.mxu0 0.0
  %1919 = vmatpush1.msra.mxu0 0.0
  %1920 = vmatprep.subr.mxu0 0.0
  %1921 = vmatpush1.msra.mxu0 0.0
  %1922 = vmatprep.subr.mxu0 0.0
  %1923 = vmatpush1.msra.mxu0 0.0
  %1924 = vmatprep.subr.mxu0 0.0
  %1925 = vmatpush1.msra.mxu0 0.0
  %1926 = vmatprep.subr.mxu0 0.0
  %1927 = vmatpush1.msra.mxu0 0.0
  %1928 = vmatprep.subr.mxu0 0.0
  %1929 = vmatpush1.msra.mxu0 0.0
  %1930 = vmatprep.subr.mxu0 0.0
  %1931 = vmatpush1.msra.mxu0 0.0
  %1932 = vmatprep.subr.mxu0 0.0
  %1933 = vmatpush1.msra.mxu0 0.0
  %1934 = vmatprep.subr.mxu0 0.0
  %1935 = vmatpush1.msra.mxu0 0.0
  %1936 = vmatprep.subr.mxu0 0.0
  %1937 = vmatpush1.msra.mxu0 0.0
  %1938 = vmatprep.subr.mxu0 0.0
  %1939 = vmatpush1.msra.mxu0 0.0
  %1940 = vmatprep.subr.mxu0 0.0
  %1941 = vmatpush1.msra.mxu0 0.0
  %1942 = vmatprep.subr.mxu0 0.0
  %1943 = vmatpush1.msra.mxu0 0.0
  %1944 = vmatprep.subr.mxu0 0.0
  %1945 = vmatpush1.msra.mxu0 0.0
  %1946 = vmatprep.subr.mxu0 0.0
  %1947 = vmatpush1.msra.mxu0 0.0
  %1948 = vmatprep.subr.mxu0 0.0
  %1949 = vmatpush1.msra.mxu0 0.0
  %1950 = vmatprep.subr.mxu0 0.0
  %1951 = vmatpush1.msra.mxu0 0.0
  %1952 = vmatprep.subr.mxu0 0.0
  %1953 = vmatpush1.msra.mxu0 0.0
  %1954 = vmatprep.subr.mxu0 0.0
  %1955 = vmatpush1.msra.mxu0 0.0
  %1956 = vmatprep.subr.mxu0 0.0
  %1957 = vmatpush1.msra.mxu0 0.0
  %1958 = vmatprep.subr.mxu0 0.0
  %1959 = vmatpush1.msra.mxu0 0.0
  %1960 = vmatprep.subr.mxu0 0.0
  %1961 = vmatpush1.msra.mxu0 0.0
  %1962 = vmatprep.subr.mxu0 0.0
  %1963 = vmatpush1.msra.mxu0 0.0
  %1964 = vmatprep.subr.mxu0 0.0
  %1965 = vmatpush1.msra.mxu0 0.0
  %1966 = vmatprep.subr.mxu0 0.0
  %1967 = vmatpush1.msra.mxu0 0.0
  %1968 = vmatprep.subr.mxu0 0.0
  %1969 = vmatpush1.msra.mxu0 0.0
  %1970 = vmatprep.mubr.f32.mxu0 0.0
  %v1971 = vand.u32 %v1260, 4294901760
  %v1972 = vsub.f32 %v1260, %v1971
  %v1973 = vand.u32 %v1972, 4294901760
  %1974 = vmatmul.mubr.f32.gmra.mrb[0].mxu0 %v1973
  %v1975 = vpop.f32.mrb[0].mxu0
  %v1976 = vadd.f32 %v1794, %v1975
  %v1977 = vpop.f32.mrb[0].mxu0
  %1978 = vmatprep.mubr.f32.mxu0 0.0
  %v1979 = vand.u32 %v1263, 4294901760
  %v1980 = vsub.f32 %v1263, %v1979
  %v1981 = vand.u32 %v1980, 4294901760
  %1982 = vmatmul.mubr.f32.gmra.mrb[0].mxu0 %v1981
  %v1983 = vpop.f32.mrb[0].mxu0
  %v1984 = vadd.f32 %v1801, %v1983
  %v1985 = vpop.f32.mrb[0].mxu0
  %1986 = vmatprep.mubr.f32.mxu0 0.0
  %v1987 = vand.u32 %v1266, 4294901760
  %v1988 = vsub.f32 %v1266, %v1987
  %v1989 = vand.u32 %v1988, 4294901760
  %1990 = vmatmul.mubr.f32.gmra.mrb[0].mxu0 %v1989
  %v1991 = vpop.f32.mrb[0].mxu0
  %v1992 = vadd.f32 %v1808, %v1991
  %v1993 = vpop.f32.mrb[0].mxu0
  %1994 = vmatprep.mubr.f32.mxu0 0.0
  %v1995 = vand.u32 %v1269, 4294901760
  %v1996 = vsub.f32 %v1269, %v1995
  %v1997 = vand.u32 %v1996, 4294901760
  %1998 = vmatmul.mubr.f32.gmra.mrb[0].mxu0 %v1997
  %v1999 = vpop.f32.mrb[0].mxu0
  %v2000 = vadd.f32 %v1815, %v1999
  %v2001 = vpop.f32.mrb[0].mxu0
  %2002 = vmatprep.mubr.f32.mxu0 0.0
  %v2003 = vand.u32 %v1272, 4294901760
  %v2004 = vsub.f32 %v1272, %v2003
  %v2005 = vand.u32 %v2004, 4294901760
  %2006 = vmatmul.mubr.f32.gmra.mrb[0].mxu0 %v2005
  %v2007 = vpop.f32.mrb[0].mxu0
  %v2008 = vadd.f32 %v1822, %v2007
  %v2009 = vpop.f32.mrb[0].mxu0
  %2010 = vmatprep.mubr.f32.mxu0 0.0
  %v2011 = vand.u32 %v1275, 4294901760
  %v2012 = vsub.f32 %v1275, %v2011
  %v2013 = vand.u32 %v2012, 4294901760
  %2014 = vmatmul.mubr.f32.gmra.mrb[0].mxu0 %v2013
  %v2015 = vpop.f32.mrb[0].mxu0
  %v2016 = vadd.f32 %v1829, %v2015
  %v2017 = vpop.f32.mrb[0].mxu0
  %2018 = vmatprep.mubr.f32.mxu0 0.0
  %v2019 = vand.u32 %v1278, 4294901760
  %v2020 = vsub.f32 %v1278, %v2019
  %v2021 = vand.u32 %v2020, 4294901760
  %2022 = vmatmul.mubr.f32.gmra.mrb[0].mxu0 %v2021
  %v2023 = vpop.f32.mrb[0].mxu0
  %v2024 = vadd.f32 %v1836, %v2023
  %v2025 = vpop.f32.mrb[0].mxu0
  %2026 = vmatprep.mubr.f32.mxu0 0.0
  %v2027 = vand.u32 %v1281, 4294901760
  %v2028 = vsub.f32 %v1281, %v2027
  %v2029 = vand.u32 %v2028, 4294901760
  %2030 = vmatmul.mubr.f32.gmra.mrb[0].mxu0 %v2029
  %v2031 = vpop.f32.mrb[0].mxu0
  %v2032 = vadd.f32 %v1843, %v2031
  %v2033 = vpop.f32.mrb[0].mxu0
  %2034 = vmatprep.mubr.f32.mxu0 0.0
  %v2035 = vand.u32 %v1284, 4294901760
  %v2036 = vsub.f32 %v1284, %v2035
  %v2037 = vand.u32 %v2036, 4294901760
  %2038 = vmatmul.mubr.f32.gmra.mrb[0].mxu0 %v2037
  %v2039 = vpop.f32.mrb[0].mxu0
  %v2040 = vadd.f32 %v1850, %v2039
  %v2041 = vpop.f32.mrb[0].mxu0
  %2042 = vmatprep.mubr.f32.mxu0 0.0
  %v2043 = vand.u32 %v1287, 4294901760
  %v2044 = vsub.f32 %v1287, %v2043
  %v2045 = vand.u32 %v2044, 4294901760
  %2046 = vmatmul.mubr.f32.gmra.mrb[0].mxu0 %v2045
  %v2047 = vpop.f32.mrb[0].mxu0
  %v2048 = vadd.f32 %v1857, %v2047
  %v2049 = vpop.f32.mrb[0].mxu0
  %2050 = vmatprep.mubr.f32.mxu0 0.0
  %v2051 = vand.u32 %v1290, 4294901760
  %v2052 = vsub.f32 %v1290, %v2051
  %v2053 = vand.u32 %v2052, 4294901760
  %2054 = vmatmul.mubr.f32.gmra.mrb[0].mxu0 %v2053
  %v2055 = vpop.f32.mrb[0].mxu0
  %v2056 = vadd.f32 %v1864, %v2055
  %v2057 = vpop.f32.mrb[0].mxu0
  %2058 = vmatprep.mubr.f32.mxu0 0.0
  %v2059 = vand.u32 %v1293, 4294901760
  %v2060 = vsub.f32 %v1293, %v2059
  %v2061 = vand.u32 %v2060, 4294901760
  %2062 = vmatmul.mubr.f32.gmra.mrb[0].mxu0 %v2061
  %v2063 = vpop.f32.mrb[0].mxu0
  %v2064 = vadd.f32 %v1871, %v2063
  %v2065 = vpop.f32.mrb[0].mxu0
  %2066 = vmatprep.mubr.f32.mxu0 0.0
  %v2067 = vand.u32 %v1296, 4294901760
  %v2068 = vsub.f32 %v1296, %v2067
  %v2069 = vand.u32 %v2068, 4294901760
  %2070 = vmatmul.mubr.f32.gmra.mrb[0].mxu0 %v2069
  %v2071 = vpop.f32.mrb[0].mxu0
  %v2072 = vadd.f32 %v1878, %v2071
  %v2073 = vpop.f32.mrb[0].mxu0
  %2074 = vmatprep.mubr.f32.mxu0 0.0
  %v2075 = vand.u32 %v1299, 4294901760
  %v2076 = vsub.f32 %v1299, %v2075
  %v2077 = vand.u32 %v2076, 4294901760
  %2078 = vmatmul.mubr.f32.gmra.mrb[0].mxu0 %v2077
  %v2079 = vpop.f32.mrb[0].mxu0
  %v2080 = vadd.f32 %v1885, %v2079
  %v2081 = vpop.f32.mrb[0].mxu0
  %2082 = vmatprep.mubr.f32.mxu0 0.0
  %v2083 = vand.u32 %v1302, 4294901760
  %v2084 = vsub.f32 %v1302, %v2083
  %v2085 = vand.u32 %v2084, 4294901760
  %2086 = vmatmul.mubr.f32.gmra.mrb[0].mxu0 %v2085
  %v2087 = vpop.f32.mrb[0].mxu0
  %v2088 = vadd.f32 %v1892, %v2087
  %v2089 = vpop.f32.mrb[0].mxu0
  %2090 = vmatprep.mubr.f32.mxu0 0.0
  %v2091 = vand.u32 %v1305, 4294901760
  %v2092 = vsub.f32 %v1305, %v2091
  %v2093 = vand.u32 %v2092, 4294901760
  %2094 = vmatmul.mubr.f32.gmra.mrb[0].mxu0 %v2093
  %v2095 = vpop.f32.mrb[0].mxu0
  %v2096 = vadd.f32 %v1899, %v2095
  %v2097 = vpop.f32.mrb[0].mxu0
  %2098 = vdwg.mxu0
  %2099 = vmatprep.subr.mxu0 0.0
  %v2100 = vand.u32 %v1248, 4294901760
  %v2101 = vsub.f32 %v1248, %v2100
  %v2102 = vand.u32 %v2101, 4294901760
  %2103 = vmatpush1.msra.mxu0 %v2102
  %2104 = vmatprep.subr.mxu0 0.0
  %v2105 = vand.u32 %v1249, 4294901760
  %v2106 = vsub.f32 %v1249, %v2105
  %v2107 = vand.u32 %v2106, 4294901760
  %2108 = vmatpush1.msra.mxu0 %v2107
  %2109 = vmatprep.subr.mxu0 0.0
  %v2110 = vand.u32 %v1250, 4294901760
  %v2111 = vsub.f32 %v1250, %v2110
  %v2112 = vand.u32 %v2111, 4294901760
  %2113 = vmatpush1.msra.mxu0 %v2112
  %2114 = vmatprep.subr.mxu0 0.0
  %v2115 = vand.u32 %v1251, 4294901760
  %v2116 = vsub.f32 %v1251, %v2115
  %v2117 = vand.u32 %v2116, 4294901760
  %2118 = vmatpush1.msra.mxu0 %v2117
  %2119 = vmatprep.subr.mxu0 0.0
  %2120 = vmatpush1.msra.mxu0 0.0
  %2121 = vmatprep.subr.mxu0 0.0
  %2122 = vmatpush1.msra.mxu0 0.0
  %2123 = vmatprep.subr.mxu0 0.0
  %2124 = vmatpush1.msra.mxu0 0.0
  %2125 = vmatprep.subr.mxu0 0.0
  %2126 = vmatpush1.msra.mxu0 0.0
  %2127 = vmatprep.subr.mxu0 0.0
  %2128 = vmatpush1.msra.mxu0 0.0
  %2129 = vmatprep.subr.mxu0 0.0
  %2130 = vmatpush1.msra.mxu0 0.0
  %2131 = vmatprep.subr.mxu0 0.0
  %2132 = vmatpush1.msra.mxu0 0.0
  %2133 = vmatprep.subr.mxu0 0.0
  %2134 = vmatpush1.msra.mxu0 0.0
  %2135 = vmatprep.subr.mxu0 0.0
  %2136 = vmatpush1.msra.mxu0 0.0
  %2137 = vmatprep.subr.mxu0 0.0
  %2138 = vmatpush1.msra.mxu0 0.0
  %2139 = vmatprep.subr.mxu0 0.0
  %2140 = vmatpush1.msra.mxu0 0.0
  %2141 = vmatprep.subr.mxu0 0.0
  %2142 = vmatpush1.msra.mxu0 0.0
  %2143 = vmatprep.subr.mxu0 0.0
  %2144 = vmatpush1.msra.mxu0 0.0
  %2145 = vmatprep.subr.mxu0 0.0
  %2146 = vmatpush1.msra.mxu0 0.0
  %2147 = vmatprep.subr.mxu0 0.0
  %2148 = vmatpush1.msra.mxu0 0.0
  %2149 = vmatprep.subr.mxu0 0.0
  %2150 = vmatpush1.msra.mxu0 0.0
  %2151 = vmatprep.subr.mxu0 0.0
  %2152 = vmatpush1.msra.mxu0 0.0
  %2153 = vmatprep.subr.mxu0 0.0
  %2154 = vmatpush1.msra.mxu0 0.0
  %2155 = vmatprep.subr.mxu0 0.0
  %2156 = vmatpush1.msra.mxu0 0.0
  %2157 = vmatprep.subr.mxu0 0.0
  %2158 = vmatpush1.msra.mxu0 0.0
  %2159 = vmatprep.subr.mxu0 0.0
  %2160 = vmatpush1.msra.mxu0 0.0
  %2161 = vmatprep.subr.mxu0 0.0
  %2162 = vmatpush1.msra.mxu0 0.0
  %2163 = vmatprep.subr.mxu0 0.0
  %2164 = vmatpush1.msra.mxu0 0.0
  %2165 = vmatprep.subr.mxu0 0.0
  %2166 = vmatpush1.msra.mxu0 0.0
  %2167 = vmatprep.subr.mxu0 0.0
  %2168 = vmatpush1.msra.mxu0 0.0
  %2169 = vmatprep.subr.mxu0 0.0
  %2170 = vmatpush1.msra.mxu0 0.0
  %2171 = vmatprep.subr.mxu0 0.0
  %2172 = vmatpush1.msra.mxu0 0.0
  %2173 = vmatprep.subr.mxu0 0.0
  %2174 = vmatpush1.msra.mxu0 0.0
  %2175 = vmatprep.mubr.f32.mxu0 0.0
  %v2176 = vand.u32 %v1260, 4294901760
  %2177 = vmatmul.mubr.f32.gmra.mrb[0].mxu0 %v2176
  %v2178 = vpop.f32.mrb[0].mxu0
  %v2179 = vadd.f32 %v1976, %v2178
  %v2180 = vpop.f32.mrb[0].mxu0
  %2181 = vmatprep.mubr.f32.mxu0 0.0
  %v2182 = vand.u32 %v1263, 4294901760
  %2183 = vmatmul.mubr.f32.gmra.mrb[0].mxu0 %v2182
  %v2184 = vpop.f32.mrb[0].mxu0
  %v2185 = vadd.f32 %v1984, %v2184
  %v2186 = vpop.f32.mrb[0].mxu0
  %2187 = vmatprep.mubr.f32.mxu0 0.0
  %v2188 = vand.u32 %v1266, 4294901760
  %2189 = vmatmul.mubr.f32.gmra.mrb[0].mxu0 %v2188
  %v2190 = vpop.f32.mrb[0].mxu0
  %v2191 = vadd.f32 %v1992, %v2190
  %v2192 = vpop.f32.mrb[0].mxu0
  %2193 = vmatprep.mubr.f32.mxu0 0.0
  %v2194 = vand.u32 %v1269, 4294901760
  %2195 = vmatmul.mubr.f32.gmra.mrb[0].mxu0 %v2194
  %v2196 = vpop.f32.mrb[0].mxu0
  %v2197 = vadd.f32 %v2000, %v2196
  %v2198 = vpop.f32.mrb[0].mxu0
  %2199 = vmatprep.mubr.f32.mxu0 0.0
  %v2200 = vand.u32 %v1272, 4294901760
  %2201 = vmatmul.mubr.f32.gmra.mrb[0].mxu0 %v2200
  %v2202 = vpop.f32.mrb[0].mxu0
  %v2203 = vadd.f32 %v2008, %v2202
  %v2204 = vpop.f32.mrb[0].mxu0
  %2205 = vmatprep.mubr.f32.mxu0 0.0
  %v2206 = vand.u32 %v1275, 4294901760
  %2207 = vmatmul.mubr.f32.gmra.mrb[0].mxu0 %v2206
  %v2208 = vpop.f32.mrb[0].mxu0
  %v2209 = vadd.f32 %v2016, %v2208
  %v2210 = vpop.f32.mrb[0].mxu0
  %2211 = vmatprep.mubr.f32.mxu0 0.0
  %v2212 = vand.u32 %v1278, 4294901760
  %2213 = vmatmul.mubr.f32.gmra.mrb[0].mxu0 %v2212
  %v2214 = vpop.f32.mrb[0].mxu0
  %v2215 = vadd.f32 %v2024, %v2214
  %v2216 = vpop.f32.mrb[0].mxu0
  %2217 = vmatprep.mubr.f32.mxu0 0.0
  %v2218 = vand.u32 %v1281, 4294901760
  %2219 = vmatmul.mubr.f32.gmra.mrb[0].mxu0 %v2218
  %v2220 = vpop.f32.mrb[0].mxu0
  %v2221 = vadd.f32 %v2032, %v2220
  %v2222 = vpop.f32.mrb[0].mxu0
  %2223 = vmatprep.mubr.f32.mxu0 0.0
  %v2224 = vand.u32 %v1284, 4294901760
  %2225 = vmatmul.mubr.f32.gmra.mrb[0].mxu0 %v2224
  %v2226 = vpop.f32.mrb[0].mxu0
  %v2227 = vadd.f32 %v2040, %v2226
  %v2228 = vpop.f32.mrb[0].mxu0
  %2229 = vmatprep.mubr.f32.mxu0 0.0
  %v2230 = vand.u32 %v1287, 4294901760
  %2231 = vmatmul.mubr.f32.gmra.mrb[0].mxu0 %v2230
  %v2232 = vpop.f32.mrb[0].mxu0
  %v2233 = vadd.f32 %v2048, %v2232
  %v2234 = vpop.f32.mrb[0].mxu0
  %2235 = vmatprep.mubr.f32.mxu0 0.0
  %v2236 = vand.u32 %v1290, 4294901760
  %2237 = vmatmul.mubr.f32.gmra.mrb[0].mxu0 %v2236
  %v2238 = vpop.f32.mrb[0].mxu0
  %v2239 = vadd.f32 %v2056, %v2238
  %v2240 = vpop.f32.mrb[0].mxu0
  %2241 = vmatprep.mubr.f32.mxu0 0.0
  %v2242 = vand.u32 %v1293, 4294901760
  %2243 = vmatmul.mubr.f32.gmra.mrb[0].mxu0 %v2242
  %v2244 = vpop.f32.mrb[0].mxu0
  %v2245 = vadd.f32 %v2064, %v2244
  %v2246 = vpop.f32.mrb[0].mxu0
  %2247 = vmatprep.mubr.f32.mxu0 0.0
  %v2248 = vand.u32 %v1296, 4294901760
  %2249 = vmatmul.mubr.f32.gmra.mrb[0].mxu0 %v2248
  %v2250 = vpop.f32.mrb[0].mxu0
  %v2251 = vadd.f32 %v2072, %v2250
  %v2252 = vpop.f32.mrb[0].mxu0
  %2253 = vmatprep.mubr.f32.mxu0 0.0
  %v2254 = vand.u32 %v1299, 4294901760
  %2255 = vmatmul.mubr.f32.gmra.mrb[0].mxu0 %v2254
  %v2256 = vpop.f32.mrb[0].mxu0
  %v2257 = vadd.f32 %v2080, %v2256
  %v2258 = vpop.f32.mrb[0].mxu0
  %2259 = vmatprep.mubr.f32.mxu0 0.0
  %v2260 = vand.u32 %v1302, 4294901760
  %2261 = vmatmul.mubr.f32.gmra.mrb[0].mxu0 %v2260
  %v2262 = vpop.f32.mrb[0].mxu0
  %v2263 = vadd.f32 %v2088, %v2262
  %v2264 = vpop.f32.mrb[0].mxu0
  %2265 = vmatprep.mubr.f32.mxu0 0.0
  %v2266 = vand.u32 %v1305, 4294901760
  %2267 = vmatmul.mubr.f32.gmra.mrb[0].mxu0 %v2266
  %v2268 = vpop.f32.mrb[0].mxu0
  %v2269 = vadd.f32 %v2096, %v2268
  %v2270 = vpop.f32.mrb[0].mxu0
  %2271 = vdwg.mxu0
  %2272 = vmatprep.subr.mxu0 0.0
  %v2273 = vand.u32 %v1248, 4294901760
  %2274 = vmatpush1.msra.mxu0 %v2273
  %2275 = vmatprep.subr.mxu0 0.0
  %v2276 = vand.u32 %v1249, 4294901760
  %2277 = vmatpush1.msra.mxu0 %v2276
  %2278 = vmatprep.subr.mxu0 0.0
  %v2279 = vand.u32 %v1250, 4294901760
  %2280 = vmatpush1.msra.mxu0 %v2279
  %2281 = vmatprep.subr.mxu0 0.0
  %v2282 = vand.u32 %v1251, 4294901760
  %2283 = vmatpush1.msra.mxu0 %v2282
  %2284 = vmatprep.subr.mxu0 0.0
  %2285 = vmatpush1.msra.mxu0 0.0
  %2286 = vmatprep.subr.mxu0 0.0
  %2287 = vmatpush1.msra.mxu0 0.0
  %2288 = vmatprep.subr.mxu0 0.0
  %2289 = vmatpush1.msra.mxu0 0.0
  %2290 = vmatprep.subr.mxu0 0.0
  %2291 = vmatpush1.msra.mxu0 0.0
  %2292 = vmatprep.subr.mxu0 0.0
  %2293 = vmatpush1.msra.mxu0 0.0
  %2294 = vmatprep.subr.mxu0 0.0
  %2295 = vmatpush1.msra.mxu0 0.0
  %2296 = vmatprep.subr.mxu0 0.0
  %2297 = vmatpush1.msra.mxu0 0.0
  %2298 = vmatprep.subr.mxu0 0.0
  %2299 = vmatpush1.msra.mxu0 0.0
  %2300 = vmatprep.subr.mxu0 0.0
  %2301 = vmatpush1.msra.mxu0 0.0
  %2302 = vmatprep.subr.mxu0 0.0
  %2303 = vmatpush1.msra.mxu0 0.0
  %2304 = vmatprep.subr.mxu0 0.0
  %2305 = vmatpush1.msra.mxu0 0.0
  %2306 = vmatprep.subr.mxu0 0.0
  %2307 = vmatpush1.msra.mxu0 0.0
  %2308 = vmatprep.subr.mxu0 0.0
  %2309 = vmatpush1.msra.mxu0 0.0
  %2310 = vmatprep.subr.mxu0 0.0
  %2311 = vmatpush1.msra.mxu0 0.0
  %2312 = vmatprep.subr.mxu0 0.0
  %2313 = vmatpush1.msra.mxu0 0.0
  %2314 = vmatprep.subr.mxu0 0.0
  %2315 = vmatpush1.msra.mxu0 0.0
  %2316 = vmatprep.subr.mxu0 0.0
  %2317 = vmatpush1.msra.mxu0 0.0
  %2318 = vmatprep.subr.mxu0 0.0
  %2319 = vmatpush1.msra.mxu0 0.0
  %2320 = vmatprep.subr.mxu0 0.0
  %2321 = vmatpush1.msra.mxu0 0.0
  %2322 = vmatprep.subr.mxu0 0.0
  %2323 = vmatpush1.msra.mxu0 0.0
  %2324 = vmatprep.subr.mxu0 0.0
  %2325 = vmatpush1.msra.mxu0 0.0
  %2326 = vmatprep.subr.mxu0 0.0
  %2327 = vmatpush1.msra.mxu0 0.0
  %2328 = vmatprep.subr.mxu0 0.0
  %2329 = vmatpush1.msra.mxu0 0.0
  %2330 = vmatprep.subr.mxu0 0.0
  %2331 = vmatpush1.msra.mxu0 0.0
  %2332 = vmatprep.subr.mxu0 0.0
  %2333 = vmatpush1.msra.mxu0 0.0
  %2334 = vmatprep.subr.mxu0 0.0
  %2335 = vmatpush1.msra.mxu0 0.0
  %2336 = vmatprep.subr.mxu0 0.0
  %2337 = vmatpush1.msra.mxu0 0.0
  %2338 = vmatprep.subr.mxu0 0.0
  %2339 = vmatpush1.msra.mxu0 0.0
  %2340 = vmatprep.mubr.f32.mxu0 0.0
  %v2341 = vand.u32 %v1260, 4294901760
  %2342 = vmatmul.mubr.f32.gmra.mrb[0].mxu0 %v2341
  %v2343 = vpop.f32.mrb[0].mxu0
  %v2344 = vadd.f32 %v2179, %v2343
  %v2345 = vpop.f32.mrb[0].mxu0
  %2346 = vmatprep.mubr.f32.mxu0 0.0
  %v2347 = vand.u32 %v1263, 4294901760
  %2348 = vmatmul.mubr.f32.gmra.mrb[0].mxu0 %v2347
  %v2349 = vpop.f32.mrb[0].mxu0
  %v2350 = vadd.f32 %v2185, %v2349
  %v2351 = vpop.f32.mrb[0].mxu0
  %2352 = vmatprep.mubr.f32.mxu0 0.0
  %v2353 = vand.u32 %v1266, 4294901760
  %2354 = vmatmul.mubr.f32.gmra.mrb[0].mxu0 %v2353
  %v2355 = vpop.f32.mrb[0].mxu0
  %v2356 = vadd.f32 %v2191, %v2355
  %v2357 = vpop.f32.mrb[0].mxu0
  %2358 = vmatprep.mubr.f32.mxu0 0.0
  %v2359 = vand.u32 %v1269, 4294901760
  %2360 = vmatmul.mubr.f32.gmra.mrb[0].mxu0 %v2359
  %v2361 = vpop.f32.mrb[0].mxu0
  %v2362 = vadd.f32 %v2197, %v2361
  %v2363 = vpop.f32.mrb[0].mxu0
  %2364 = vmatprep.mubr.f32.mxu0 0.0
  %v2365 = vand.u32 %v1272, 4294901760
  %2366 = vmatmul.mubr.f32.gmra.mrb[0].mxu0 %v2365
  %v2367 = vpop.f32.mrb[0].mxu0
  %v2368 = vadd.f32 %v2203, %v2367
  %v2369 = vpop.f32.mrb[0].mxu0
  %2370 = vmatprep.mubr.f32.mxu0 0.0
  %v2371 = vand.u32 %v1275, 4294901760
  %2372 = vmatmul.mubr.f32.gmra.mrb[0].mxu0 %v2371
  %v2373 = vpop.f32.mrb[0].mxu0
  %v2374 = vadd.f32 %v2209, %v2373
  %v2375 = vpop.f32.mrb[0].mxu0
  %2376 = vmatprep.mubr.f32.mxu0 0.0
  %v2377 = vand.u32 %v1278, 4294901760
  %2378 = vmatmul.mubr.f32.gmra.mrb[0].mxu0 %v2377
  %v2379 = vpop.f32.mrb[0].mxu0
  %v2380 = vadd.f32 %v2215, %v2379
  %v2381 = vpop.f32.mrb[0].mxu0
  %2382 = vmatprep.mubr.f32.mxu0 0.0
  %v2383 = vand.u32 %v1281, 4294901760
  %2384 = vmatmul.mubr.f32.gmra.mrb[0].mxu0 %v2383
  %v2385 = vpop.f32.mrb[0].mxu0
  %v2386 = vadd.f32 %v2221, %v2385
  %v2387 = vpop.f32.mrb[0].mxu0
  %2388 = vmatprep.mubr.f32.mxu0 0.0
  %v2389 = vand.u32 %v1284, 4294901760
  %2390 = vmatmul.mubr.f32.gmra.mrb[0].mxu0 %v2389
  %v2391 = vpop.f32.mrb[0].mxu0
  %v2392 = vadd.f32 %v2227, %v2391
  %v2393 = vpop.f32.mrb[0].mxu0
  %2394 = vmatprep.mubr.f32.mxu0 0.0
  %v2395 = vand.u32 %v1287, 4294901760
  %2396 = vmatmul.mubr.f32.gmra.mrb[0].mxu0 %v2395
  %v2397 = vpop.f32.mrb[0].mxu0
  %v2398 = vadd.f32 %v2233, %v2397
  %v2399 = vpop.f32.mrb[0].mxu0
  %2400 = vmatprep.mubr.f32.mxu0 0.0
  %v2401 = vand.u32 %v1290, 4294901760
  %2402 = vmatmul.mubr.f32.gmra.mrb[0].mxu0 %v2401
  %v2403 = vpop.f32.mrb[0].mxu0
  %v2404 = vadd.f32 %v2239, %v2403
  %v2405 = vpop.f32.mrb[0].mxu0
  %2406 = vmatprep.mubr.f32.mxu0 0.0
  %v2407 = vand.u32 %v1293, 4294901760
  %2408 = vmatmul.mubr.f32.gmra.mrb[0].mxu0 %v2407
  %v2409 = vpop.f32.mrb[0].mxu0
  %v2410 = vadd.f32 %v2245, %v2409
  %v2411 = vpop.f32.mrb[0].mxu0
  %2412 = vmatprep.mubr.f32.mxu0 0.0
  %v2413 = vand.u32 %v1296, 4294901760
  %2414 = vmatmul.mubr.f32.gmra.mrb[0].mxu0 %v2413
  %v2415 = vpop.f32.mrb[0].mxu0
  %v2416 = vadd.f32 %v2251, %v2415
  %v2417 = vpop.f32.mrb[0].mxu0
  %2418 = vmatprep.mubr.f32.mxu0 0.0
  %v2419 = vand.u32 %v1299, 4294901760
  %2420 = vmatmul.mubr.f32.gmra.mrb[0].mxu0 %v2419
  %v2421 = vpop.f32.mrb[0].mxu0
  %v2422 = vadd.f32 %v2257, %v2421
  %v2423 = vpop.f32.mrb[0].mxu0
  %2424 = vmatprep.mubr.f32.mxu0 0.0
  %v2425 = vand.u32 %v1302, 4294901760
  %2426 = vmatmul.mubr.f32.gmra.mrb[0].mxu0 %v2425
  %v2427 = vpop.f32.mrb[0].mxu0
  %v2428 = vadd.f32 %v2263, %v2427
  %v2429 = vpop.f32.mrb[0].mxu0
  %2430 = vmatprep.mubr.f32.mxu0 0.0
  %v2431 = vand.u32 %v1305, 4294901760
  %2432 = vmatmul.mubr.f32.gmra.mrb[0].mxu0 %v2431
  %v2433 = vpop.f32.mrb[0].mxu0
  %v2434 = vadd.f32 %v2269, %v2433
  %v2435 = vpop.f32.mrb[0].mxu0
  %2436 = vdwg.mxu0
  %v2437 = vmax.f32 %v2344, 0.0
  %v2438 = vmax.f32 %v2350, 0.0
  %v2439 = vmax.f32 %v2356, 0.0
  %v2440 = vmax.f32 %v2362, 0.0
  %v2441 = vmax.f32 %v2368, 0.0
  %v2442 = vmax.f32 %v2374, 0.0
  %v2443 = vmax.f32 %v2380, 0.0
  %v2444 = vmax.f32 %v2386, 0.0
  %v2445 = vmax.f32 %v2392, 0.0
  %v2446 = vmax.f32 %v2398, 0.0
  %v2447 = vmax.f32 %v2404, 0.0
  %v2448 = vmax.f32 %v2410, 0.0
  %v2449 = vmax.f32 %v2416, 0.0
  %v2450 = vmax.f32 %v2422, 0.0
  %v2451 = vmax.f32 %v2428, 0.0
  %v2452 = vmax.f32 %v2434, 0.0
  %v2453 = vld [vmem:[%s5] sm:$0xff]
  %v2454 = vld [vmem:[%s5 + $0x8] sm:$0xff]
  %v2455 = vld [vmem:[%s5 + $0x10] sm:$0xff]
  %v2456 = vld [vmem:[%s5 + $0x18] sm:$0xff]
  %v2457 = vld [vmem:[%s6] sm:$0x1]
  %v2459 = vlaneseq
  %v2460 = vshrl.u32 %v2459, 7
  %v2461 = vsub.s32 0, %v2460
  %v2462 = vrot.slane %v2457, %v2461
  %v2465 = vsel %vm53, %v2437, 0
  %v2468 = vsel %vm53, %v2438, 0
  %v2471 = vsel %vm53, %v2439, 0
  %v2474 = vsel %vm53, %v2440, 0
  %v2477 = vsel %vm53, %v2441, 0
  %v2480 = vsel %vm53, %v2442, 0
  %v2483 = vsel %vm53, %v2443, 0
  %v2486 = vsel %vm53, %v2444, 0
  %v2489 = vsel %vm53, %v2445, 0
  %v2492 = vsel %vm53, %v2446, 0
  %v2495 = vsel %vm53, %v2447, 0
  %v2498 = vsel %vm53, %v2448, 0
  %v2501 = vsel %vm53, %v2449, 0
  %v2504 = vsel %vm53, %v2450, 0
  %v2507 = vsel %vm53, %v2451, 0
  %v2510 = vsel %vm53, %v2452, 0
  %2512 = vmatprep.subr.mxu0 0.0
  %v2513 = vand.u32 %v2453, 4294901760
  %2514 = vmatpush1.msra.mxu0 %v2513
  %2515 = vmatprep.subr.mxu0 0.0
  %v2516 = vand.u32 %v2454, 4294901760
  %2517 = vmatpush1.msra.mxu0 %v2516
  %2518 = vmatprep.subr.mxu0 0.0
  %v2519 = vand.u32 %v2455, 4294901760
  %2520 = vmatpush1.msra.mxu0 %v2519
  %2521 = vmatprep.subr.mxu0 0.0
  %v2522 = vand.u32 %v2456, 4294901760
  %2523 = vmatpush1.msra.mxu0 %v2522
  %2524 = vmatprep.subr.mxu0 0.0
  %2525 = vmatpush1.msra.mxu0 0.0
  %2526 = vmatprep.subr.mxu0 0.0
  %2527 = vmatpush1.msra.mxu0 0.0
  %2528 = vmatprep.subr.mxu0 0.0
  %2529 = vmatpush1.msra.mxu0 0.0
  %2530 = vmatprep.subr.mxu0 0.0
  %2531 = vmatpush1.msra.mxu0 0.0
  %2532 = vmatprep.subr.mxu0 0.0
  %2533 = vmatpush1.msra.mxu0 0.0
  %2534 = vmatprep.subr.mxu0 0.0
  %2535 = vmatpush1.msra.mxu0 0.0
  %2536 = vmatprep.subr.mxu0 0.0
  %2537 = vmatpush1.msra.mxu0 0.0
  %2538 = vmatprep.subr.mxu0 0.0
  %2539 = vmatpush1.msra.mxu0 0.0
  %2540 = vmatprep.subr.mxu0 0.0
  %2541 = vmatpush1.msra.mxu0 0.0
  %2542 = vmatprep.subr.mxu0 0.0
  %2543 = vmatpush1.msra.mxu0 0.0
  %2544 = vmatprep.subr.mxu0 0.0
  %2545 = vmatpush1.msra.mxu0 0.0
  %2546 = vmatprep.subr.mxu0 0.0
  %2547 = vmatpush1.msra.mxu0 0.0
  %2548 = vmatprep.subr.mxu0 0.0
  %2549 = vmatpush1.msra.mxu0 0.0
  %2550 = vmatprep.subr.mxu0 0.0
  %2551 = vmatpush1.msra.mxu0 0.0
  %2552 = vmatprep.subr.mxu0 0.0
  %2553 = vmatpush1.msra.mxu0 0.0
  %2554 = vmatprep.subr.mxu0 0.0
  %2555 = vmatpush1.msra.mxu0 0.0
  %2556 = vmatprep.subr.mxu0 0.0
  %2557 = vmatpush1.msra.mxu0 0.0
  %2558 = vmatprep.subr.mxu0 0.0
  %2559 = vmatpush1.msra.mxu0 0.0
  %2560 = vmatprep.subr.mxu0 0.0
  %2561 = vmatpush1.msra.mxu0 0.0
  %2562 = vmatprep.subr.mxu0 0.0
  %2563 = vmatpush1.msra.mxu0 0.0
  %2564 = vmatprep.subr.mxu0 0.0
  %2565 = vmatpush1.msra.mxu0 0.0
  %2566 = vmatprep.subr.mxu0 0.0
  %2567 = vmatpush1.msra.mxu0 0.0
  %2568 = vmatprep.subr.mxu0 0.0
  %2569 = vmatpush1.msra.mxu0 0.0
  %2570 = vmatprep.subr.mxu0 0.0
  %2571 = vmatpush1.msra.mxu0 0.0
  %2572 = vmatprep.subr.mxu0 0.0
  %2573 = vmatpush1.msra.mxu0 0.0
  %2574 = vmatprep.subr.mxu0 0.0
  %2575 = vmatpush1.msra.mxu0 0.0
  %2576 = vmatprep.subr.mxu0 0.0
  %2577 = vmatpush1.msra.mxu0 0.0
  %2578 = vmatprep.subr.mxu0 0.0
  %2579 = vmatpush1.msra.mxu0 0.0
  %2580 = vmatprep.mubr.f32.mxu0 0.0
  %v2581 = vand.u32 %v2465, 4294901760
  %v2582 = vsub.f32 %v2465, %v2581
  %v2583 = vand.u32 %v2582, 4294901760
  %v2584 = vsub.f32 %v2582, %v2583
  %v2585 = vand.u32 %v2584, 4294901760
  %2586 = vmatmul.mubr.f32.gmra.mrb[0].mxu0 %v2585
  %v2587 = vpop.f32.mrb[0].mxu0
  %v2588 = vadd.f32 %v2462, %v2587
  %v2589 = vpop.f32.mrb[0].mxu0
  %2590 = vmatprep.mubr.f32.mxu0 0.0
  %v2591 = vand.u32 %v2468, 4294901760
  %v2592 = vsub.f32 %v2468, %v2591
  %v2593 = vand.u32 %v2592, 4294901760
  %v2594 = vsub.f32 %v2592, %v2593
  %v2595 = vand.u32 %v2594, 4294901760
  %2596 = vmatmul.mubr.f32.gmra.mrb[0].mxu0 %v2595
  %v2597 = vpop.f32.mrb[0].mxu0
  %v2598 = vadd.f32 %v2462, %v2597
  %v2599 = vpop.f32.mrb[0].mxu0
  %2600 = vmatprep.mubr.f32.mxu0 0.0
  %v2601 = vand.u32 %v2471, 4294901760
  %v2602 = vsub.f32 %v2471, %v2601
  %v2603 = vand.u32 %v2602, 4294901760
  %v2604 = vsub.f32 %v2602, %v2603
  %v2605 = vand.u32 %v2604, 4294901760
  %2606 = vmatmul.mubr.f32.gmra.mrb[0].mxu0 %v2605
  %v2607 = vpop.f32.mrb[0].mxu0
  %v2608 = vadd.f32 %v2462, %v2607
  %v2609 = vpop.f32.mrb[0].mxu0
  %2610 = vmatprep.mubr.f32.mxu0 0.0
  %v2611 = vand.u32 %v2474, 4294901760
  %v2612 = vsub.f32 %v2474, %v2611
  %v2613 = vand.u32 %v2612, 4294901760
  %v2614 = vsub.f32 %v2612, %v2613
  %v2615 = vand.u32 %v2614, 4294901760
  %2616 = vmatmul.mubr.f32.gmra.mrb[0].mxu0 %v2615
  %v2617 = vpop.f32.mrb[0].mxu0
  %v2618 = vadd.f32 %v2462, %v2617
  %v2619 = vpop.f32.mrb[0].mxu0
  %2620 = vmatprep.mubr.f32.mxu0 0.0
  %v2621 = vand.u32 %v2477, 4294901760
  %v2622 = vsub.f32 %v2477, %v2621
  %v2623 = vand.u32 %v2622, 4294901760
  %v2624 = vsub.f32 %v2622, %v2623
  %v2625 = vand.u32 %v2624, 4294901760
  %2626 = vmatmul.mubr.f32.gmra.mrb[0].mxu0 %v2625
  %v2627 = vpop.f32.mrb[0].mxu0
  %v2628 = vadd.f32 %v2462, %v2627
  %v2629 = vpop.f32.mrb[0].mxu0
  %2630 = vmatprep.mubr.f32.mxu0 0.0
  %v2631 = vand.u32 %v2480, 4294901760
  %v2632 = vsub.f32 %v2480, %v2631
  %v2633 = vand.u32 %v2632, 4294901760
  %v2634 = vsub.f32 %v2632, %v2633
  %v2635 = vand.u32 %v2634, 4294901760
  %2636 = vmatmul.mubr.f32.gmra.mrb[0].mxu0 %v2635
  %v2637 = vpop.f32.mrb[0].mxu0
  %v2638 = vadd.f32 %v2462, %v2637
  %v2639 = vpop.f32.mrb[0].mxu0
  %2640 = vmatprep.mubr.f32.mxu0 0.0
  %v2641 = vand.u32 %v2483, 4294901760
  %v2642 = vsub.f32 %v2483, %v2641
  %v2643 = vand.u32 %v2642, 4294901760
  %v2644 = vsub.f32 %v2642, %v2643
  %v2645 = vand.u32 %v2644, 4294901760
  %2646 = vmatmul.mubr.f32.gmra.mrb[0].mxu0 %v2645
  %v2647 = vpop.f32.mrb[0].mxu0
  %v2648 = vadd.f32 %v2462, %v2647
  %v2649 = vpop.f32.mrb[0].mxu0
  %2650 = vmatprep.mubr.f32.mxu0 0.0
  %v2651 = vand.u32 %v2486, 4294901760
  %v2652 = vsub.f32 %v2486, %v2651
  %v2653 = vand.u32 %v2652, 4294901760
  %v2654 = vsub.f32 %v2652, %v2653
  %v2655 = vand.u32 %v2654, 4294901760
  %2656 = vmatmul.mubr.f32.gmra.mrb[0].mxu0 %v2655
  %v2657 = vpop.f32.mrb[0].mxu0
  %v2658 = vadd.f32 %v2462, %v2657
  %v2659 = vpop.f32.mrb[0].mxu0
  %2660 = vmatprep.mubr.f32.mxu0 0.0
  %v2661 = vand.u32 %v2489, 4294901760
  %v2662 = vsub.f32 %v2489, %v2661
  %v2663 = vand.u32 %v2662, 4294901760
  %v2664 = vsub.f32 %v2662, %v2663
  %v2665 = vand.u32 %v2664, 4294901760
  %2666 = vmatmul.mubr.f32.gmra.mrb[0].mxu0 %v2665
  %v2667 = vpop.f32.mrb[0].mxu0
  %v2668 = vadd.f32 %v2462, %v2667
  %v2669 = vpop.f32.mrb[0].mxu0
  %2670 = vmatprep.mubr.f32.mxu0 0.0
  %v2671 = vand.u32 %v2492, 4294901760
  %v2672 = vsub.f32 %v2492, %v2671
  %v2673 = vand.u32 %v2672, 4294901760
  %v2674 = vsub.f32 %v2672, %v2673
  %v2675 = vand.u32 %v2674, 4294901760
  %2676 = vmatmul.mubr.f32.gmra.mrb[0].mxu0 %v2675
  %v2677 = vpop.f32.mrb[0].mxu0
  %v2678 = vadd.f32 %v2462, %v2677
  %v2679 = vpop.f32.mrb[0].mxu0
  %2680 = vmatprep.mubr.f32.mxu0 0.0
  %v2681 = vand.u32 %v2495, 4294901760
  %v2682 = vsub.f32 %v2495, %v2681
  %v2683 = vand.u32 %v2682, 4294901760
  %v2684 = vsub.f32 %v2682, %v2683
  %v2685 = vand.u32 %v2684, 4294901760
  %2686 = vmatmul.mubr.f32.gmra.mrb[0].mxu0 %v2685
  %v2687 = vpop.f32.mrb[0].mxu0
  %v2688 = vadd.f32 %v2462, %v2687
  %v2689 = vpop.f32.mrb[0].mxu0
  %2690 = vmatprep.mubr.f32.mxu0 0.0
  %v2691 = vand.u32 %v2498, 4294901760
  %v2692 = vsub.f32 %v2498, %v2691
  %v2693 = vand.u32 %v2692, 4294901760
  %v2694 = vsub.f32 %v2692, %v2693
  %v2695 = vand.u32 %v2694, 4294901760
  %2696 = vmatmul.mubr.f32.gmra.mrb[0].mxu0 %v2695
  %v2697 = vpop.f32.mrb[0].mxu0
  %v2698 = vadd.f32 %v2462, %v2697
  %v2699 = vpop.f32.mrb[0].mxu0
  %2700 = vmatprep.mubr.f32.mxu0 0.0
  %v2701 = vand.u32 %v2501, 4294901760
  %v2702 = vsub.f32 %v2501, %v2701
  %v2703 = vand.u32 %v2702, 4294901760
  %v2704 = vsub.f32 %v2702, %v2703
  %v2705 = vand.u32 %v2704, 4294901760
  %2706 = vmatmul.mubr.f32.gmra.mrb[0].mxu0 %v2705
  %v2707 = vpop.f32.mrb[0].mxu0
  %v2708 = vadd.f32 %v2462, %v2707
  %v2709 = vpop.f32.mrb[0].mxu0
  %2710 = vmatprep.mubr.f32.mxu0 0.0
  %v2711 = vand.u32 %v2504, 4294901760
  %v2712 = vsub.f32 %v2504, %v2711
  %v2713 = vand.u32 %v2712, 4294901760
  %v2714 = vsub.f32 %v2712, %v2713
  %v2715 = vand.u32 %v2714, 4294901760
  %2716 = vmatmul.mubr.f32.gmra.mrb[0].mxu0 %v2715
  %v2717 = vpop.f32.mrb[0].mxu0
  %v2718 = vadd.f32 %v2462, %v2717
  %v2719 = vpop.f32.mrb[0].mxu0
  %2720 = vmatprep.mubr.f32.mxu0 0.0
  %v2721 = vand.u32 %v2507, 4294901760
  %v2722 = vsub.f32 %v2507, %v2721
  %v2723 = vand.u32 %v2722, 4294901760
  %v2724 = vsub.f32 %v2722, %v2723
  %v2725 = vand.u32 %v2724, 4294901760
  %2726 = vmatmul.mubr.f32.gmra.mrb[0].mxu0 %v2725
  %v2727 = vpop.f32.mrb[0].mxu0
  %v2728 = vadd.f32 %v2462, %v2727
  %v2729 = vpop.f32.mrb[0].mxu0
  %2730 = vmatprep.mubr.f32.mxu0 0.0
  %v2731 = vand.u32 %v2510, 4294901760
  %v2732 = vsub.f32 %v2510, %v2731
  %v2733 = vand.u32 %v2732, 4294901760
  %v2734 = vsub.f32 %v2732, %v2733
  %v2735 = vand.u32 %v2734, 4294901760
  %2736 = vmatmul.mubr.f32.gmra.mrb[0].mxu0 %v2735
  %v2737 = vpop.f32.mrb[0].mxu0
  %v2738 = vadd.f32 %v2462, %v2737
  %v2739 = vpop.f32.mrb[0].mxu0
  %2740 = vdwg.mxu0
  %2741 = vmatprep.subr.mxu0 0.0
  %v2742 = vand.u32 %v2453, 4294901760
  %v2743 = vsub.f32 %v2453, %v2742
  %v2744 = vand.u32 %v2743, 4294901760
  %v2745 = vsub.f32 %v2743, %v2744
  %v2746 = vand.u32 %v2745, 4294901760
  %2747 = vmatpush1.msra.mxu0 %v2746
  %2748 = vmatprep.subr.mxu0 0.0
  %v2749 = vand.u32 %v2454, 4294901760
  %v2750 = vsub.f32 %v2454, %v2749
  %v2751 = vand.u32 %v2750, 4294901760
  %v2752 = vsub.f32 %v2750, %v2751
  %v2753 = vand.u32 %v2752, 4294901760
  %2754 = vmatpush1.msra.mxu0 %v2753
  %2755 = vmatprep.subr.mxu0 0.0
  %v2756 = vand.u32 %v2455, 4294901760
  %v2757 = vsub.f32 %v2455, %v2756
  %v2758 = vand.u32 %v2757, 4294901760
  %v2759 = vsub.f32 %v2757, %v2758
  %v2760 = vand.u32 %v2759, 4294901760
  %2761 = vmatpush1.msra.mxu0 %v2760
  %2762 = vmatprep.subr.mxu0 0.0
  %v2763 = vand.u32 %v2456, 4294901760
  %v2764 = vsub.f32 %v2456, %v2763
  %v2765 = vand.u32 %v2764, 4294901760
  %v2766 = vsub.f32 %v2764, %v2765
  %v2767 = vand.u32 %v2766, 4294901760
  %2768 = vmatpush1.msra.mxu0 %v2767
  %2769 = vmatprep.subr.mxu0 0.0
  %2770 = vmatpush1.msra.mxu0 0.0
  %2771 = vmatprep.subr.mxu0 0.0
  %2772 = vmatpush1.msra.mxu0 0.0
  %2773 = vmatprep.subr.mxu0 0.0
  %2774 = vmatpush1.msra.mxu0 0.0
  %2775 = vmatprep.subr.mxu0 0.0
  %2776 = vmatpush1.msra.mxu0 0.0
  %2777 = vmatprep.subr.mxu0 0.0
  %2778 = vmatpush1.msra.mxu0 0.0
  %2779 = vmatprep.subr.mxu0 0.0
  %2780 = vmatpush1.msra.mxu0 0.0
  %2781 = vmatprep.subr.mxu0 0.0
  %2782 = vmatpush1.msra.mxu0 0.0
  %2783 = vmatprep.subr.mxu0 0.0
  %2784 = vmatpush1.msra.mxu0 0.0
  %2785 = vmatprep.subr.mxu0 0.0
  %2786 = vmatpush1.msra.mxu0 0.0
  %2787 = vmatprep.subr.mxu0 0.0
  %2788 = vmatpush1.msra.mxu0 0.0
  %2789 = vmatprep.subr.mxu0 0.0
  %2790 = vmatpush1.msra.mxu0 0.0
  %2791 = vmatprep.subr.mxu0 0.0
  %2792 = vmatpush1.msra.mxu0 0.0
  %2793 = vmatprep.subr.mxu0 0.0
  %2794 = vmatpush1.msra.mxu0 0.0
  %2795 = vmatprep.subr.mxu0 0.0
  %2796 = vmatpush1.msra.mxu0 0.0
  %2797 = vmatprep.subr.mxu0 0.0
  %2798 = vmatpush1.msra.mxu0 0.0
  %2799 = vmatprep.subr.mxu0 0.0
  %2800 = vmatpush1.msra.mxu0 0.0
  %2801 = vmatprep.subr.mxu0 0.0
  %2802 = vmatpush1.msra.mxu0 0.0
  %2803 = vmatprep.subr.mxu0 0.0
  %2804 = vmatpush1.msra.mxu0 0.0
  %2805 = vmatprep.subr.mxu0 0.0
  %2806 = vmatpush1.msra.mxu0 0.0
  %2807 = vmatprep.subr.mxu0 0.0
  %2808 = vmatpush1.msra.mxu0 0.0
  %2809 = vmatprep.subr.mxu0 0.0
  %2810 = vmatpush1.msra.mxu0 0.0
  %2811 = vmatprep.subr.mxu0 0.0
  %2812 = vmatpush1.msra.mxu0 0.0
  %2813 = vmatprep.subr.mxu0 0.0
  %2814 = vmatpush1.msra.mxu0 0.0
  %2815 = vmatprep.subr.mxu0 0.0
  %2816 = vmatpush1.msra.mxu0 0.0
  %2817 = vmatprep.subr.mxu0 0.0
  %2818 = vmatpush1.msra.mxu0 0.0
  %2819 = vmatprep.subr.mxu0 0.0
  %2820 = vmatpush1.msra.mxu0 0.0
  %2821 = vmatprep.subr.mxu0 0.0
  %2822 = vmatpush1.msra.mxu0 0.0
  %2823 = vmatprep.subr.mxu0 0.0
  %2824 = vmatpush1.msra.mxu0 0.0
  %2825 = vmatprep.mubr.f32.mxu0 0.0
  %v2826 = vand.u32 %v2465, 4294901760
  %2827 = vmatmul.mubr.f32.gmra.mrb[0].mxu0 %v2826
  %v2828 = vpop.f32.mrb[0].mxu0
  %v2829 = vadd.f32 %v2588, %v2828
  %v2830 = vpop.f32.mrb[0].mxu0
  %2831 = vmatprep.mubr.f32.mxu0 0.0
  %v2832 = vand.u32 %v2468, 4294901760
  %2833 = vmatmul.mubr.f32.gmra.mrb[0].mxu0 %v2832
  %v2834 = vpop.f32.mrb[0].mxu0
  %v2835 = vadd.f32 %v2598, %v2834
  %v2836 = vpop.f32.mrb[0].mxu0
  %2837 = vmatprep.mubr.f32.mxu0 0.0
  %v2838 = vand.u32 %v2471, 4294901760
  %2839 = vmatmul.mubr.f32.gmra.mrb[0].mxu0 %v2838
  %v2840 = vpop.f32.mrb[0].mxu0
  %v2841 = vadd.f32 %v2608, %v2840
  %v2842 = vpop.f32.mrb[0].mxu0
  %2843 = vmatprep.mubr.f32.mxu0 0.0
  %v2844 = vand.u32 %v2474, 4294901760
  %2845 = vmatmul.mubr.f32.gmra.mrb[0].mxu0 %v2844
  %v2846 = vpop.f32.mrb[0].mxu0
  %v2847 = vadd.f32 %v2618, %v2846
  %v2848 = vpop.f32.mrb[0].mxu0
  %2849 = vmatprep.mubr.f32.mxu0 0.0
  %v2850 = vand.u32 %v2477, 4294901760
  %2851 = vmatmul.mubr.f32.gmra.mrb[0].mxu0 %v2850
  %v2852 = vpop.f32.mrb[0].mxu0
  %v2853 = vadd.f32 %v2628, %v2852
  %v2854 = vpop.f32.mrb[0].mxu0
  %2855 = vmatprep.mubr.f32.mxu0 0.0
  %v2856 = vand.u32 %v2480, 4294901760
  %2857 = vmatmul.mubr.f32.gmra.mrb[0].mxu0 %v2856
  %v2858 = vpop.f32.mrb[0].mxu0
  %v2859 = vadd.f32 %v2638, %v2858
  %v2860 = vpop.f32.mrb[0].mxu0
  %2861 = vmatprep.mubr.f32.mxu0 0.0
  %v2862 = vand.u32 %v2483, 4294901760
  %2863 = vmatmul.mubr.f32.gmra.mrb[0].mxu0 %v2862
  %v2864 = vpop.f32.mrb[0].mxu0
  %v2865 = vadd.f32 %v2648, %v2864
  %v2866 = vpop.f32.mrb[0].mxu0
  %2867 = vmatprep.mubr.f32.mxu0 0.0
  %v2868 = vand.u32 %v2486, 4294901760
  %2869 = vmatmul.mubr.f32.gmra.mrb[0].mxu0 %v2868
  %v2870 = vpop.f32.mrb[0].mxu0
  %v2871 = vadd.f32 %v2658, %v2870
  %v2872 = vpop.f32.mrb[0].mxu0
  %2873 = vmatprep.mubr.f32.mxu0 0.0
  %v2874 = vand.u32 %v2489, 4294901760
  %2875 = vmatmul.mubr.f32.gmra.mrb[0].mxu0 %v2874
  %v2876 = vpop.f32.mrb[0].mxu0
  %v2877 = vadd.f32 %v2668, %v2876
  %v2878 = vpop.f32.mrb[0].mxu0
  %2879 = vmatprep.mubr.f32.mxu0 0.0
  %v2880 = vand.u32 %v2492, 4294901760
  %2881 = vmatmul.mubr.f32.gmra.mrb[0].mxu0 %v2880
  %v2882 = vpop.f32.mrb[0].mxu0
  %v2883 = vadd.f32 %v2678, %v2882
  %v2884 = vpop.f32.mrb[0].mxu0
  %2885 = vmatprep.mubr.f32.mxu0 0.0
  %v2886 = vand.u32 %v2495, 4294901760
  %2887 = vmatmul.mubr.f32.gmra.mrb[0].mxu0 %v2886
  %v2888 = vpop.f32.mrb[0].mxu0
  %v2889 = vadd.f32 %v2688, %v2888
  %v2890 = vpop.f32.mrb[0].mxu0
  %2891 = vmatprep.mubr.f32.mxu0 0.0
  %v2892 = vand.u32 %v2498, 4294901760
  %2893 = vmatmul.mubr.f32.gmra.mrb[0].mxu0 %v2892
  %v2894 = vpop.f32.mrb[0].mxu0
  %v2895 = vadd.f32 %v2698, %v2894
  %v2896 = vpop.f32.mrb[0].mxu0
  %2897 = vmatprep.mubr.f32.mxu0 0.0
  %v2898 = vand.u32 %v2501, 4294901760
  %2899 = vmatmul.mubr.f32.gmra.mrb[0].mxu0 %v2898
  %v2900 = vpop.f32.mrb[0].mxu0
  %v2901 = vadd.f32 %v2708, %v2900
  %v2902 = vpop.f32.mrb[0].mxu0
  %2903 = vmatprep.mubr.f32.mxu0 0.0
  %v2904 = vand.u32 %v2504, 4294901760
  %2905 = vmatmul.mubr.f32.gmra.mrb[0].mxu0 %v2904
  %v2906 = vpop.f32.mrb[0].mxu0
  %v2907 = vadd.f32 %v2718, %v2906
  %v2908 = vpop.f32.mrb[0].mxu0
  %2909 = vmatprep.mubr.f32.mxu0 0.0
  %v2910 = vand.u32 %v2507, 4294901760
  %2911 = vmatmul.mubr.f32.gmra.mrb[0].mxu0 %v2910
  %v2912 = vpop.f32.mrb[0].mxu0
  %v2913 = vadd.f32 %v2728, %v2912
  %v2914 = vpop.f32.mrb[0].mxu0
  %2915 = vmatprep.mubr.f32.mxu0 0.0
  %v2916 = vand.u32 %v2510, 4294901760
  %2917 = vmatmul.mubr.f32.gmra.mrb[0].mxu0 %v2916
  %v2918 = vpop.f32.mrb[0].mxu0
  %v2919 = vadd.f32 %v2738, %v2918
  %v2920 = vpop.f32.mrb[0].mxu0
  %2921 = vdwg.mxu0
  %2922 = vmatprep.subr.mxu0 0.0
  %v2923 = vand.u32 %v2453, 4294901760
  %v2924 = vsub.f32 %v2453, %v2923
  %2925 = vmatpush1.msra.mxu0 %v2924
  %2926 = vmatprep.subr.mxu0 0.0
  %v2927 = vand.u32 %v2454, 4294901760
  %v2928 = vsub.f32 %v2454, %v2927
  %2929 = vmatpush1.msra.mxu0 %v2928
  %2930 = vmatprep.subr.mxu0 0.0
  %v2931 = vand.u32 %v2455, 4294901760
  %v2932 = vsub.f32 %v2455, %v2931
  %2933 = vmatpush1.msra.mxu0 %v2932
  %2934 = vmatprep.subr.mxu0 0.0
  %v2935 = vand.u32 %v2456, 4294901760
  %v2936 = vsub.f32 %v2456, %v2935
  %2937 = vmatpush1.msra.mxu0 %v2936
  %2938 = vmatprep.subr.mxu0 0.0
  %2939 = vmatpush1.msra.mxu0 0.0
  %2940 = vmatprep.subr.mxu0 0.0
  %2941 = vmatpush1.msra.mxu0 0.0
  %2942 = vmatprep.subr.mxu0 0.0
  %2943 = vmatpush1.msra.mxu0 0.0
  %2944 = vmatprep.subr.mxu0 0.0
  %2945 = vmatpush1.msra.mxu0 0.0
  %2946 = vmatprep.subr.mxu0 0.0
  %2947 = vmatpush1.msra.mxu0 0.0
  %2948 = vmatprep.subr.mxu0 0.0
  %2949 = vmatpush1.msra.mxu0 0.0
  %2950 = vmatprep.subr.mxu0 0.0
  %2951 = vmatpush1.msra.mxu0 0.0
  %2952 = vmatprep.subr.mxu0 0.0
  %2953 = vmatpush1.msra.mxu0 0.0
  %2954 = vmatprep.subr.mxu0 0.0
  %2955 = vmatpush1.msra.mxu0 0.0
  %2956 = vmatprep.subr.mxu0 0.0
  %2957 = vmatpush1.msra.mxu0 0.0
  %2958 = vmatprep.subr.mxu0 0.0
  %2959 = vmatpush1.msra.mxu0 0.0
  %2960 = vmatprep.subr.mxu0 0.0
  %2961 = vmatpush1.msra.mxu0 0.0
  %2962 = vmatprep.subr.mxu0 0.0
  %2963 = vmatpush1.msra.mxu0 0.0
  %2964 = vmatprep.subr.mxu0 0.0
  %2965 = vmatpush1.msra.mxu0 0.0
  %2966 = vmatprep.subr.mxu0 0.0
  %2967 = vmatpush1.msra.mxu0 0.0
  %2968 = vmatprep.subr.mxu0 0.0
  %2969 = vmatpush1.msra.mxu0 0.0
  %2970 = vmatprep.subr.mxu0 0.0
  %2971 = vmatpush1.msra.mxu0 0.0
  %2972 = vmatprep.subr.mxu0 0.0
  %2973 = vmatpush1.msra.mxu0 0.0
  %2974 = vmatprep.subr.mxu0 0.0
  %2975 = vmatpush1.msra.mxu0 0.0
  %2976 = vmatprep.subr.mxu0 0.0
  %2977 = vmatpush1.msra.mxu0 0.0
  %2978 = vmatprep.subr.mxu0 0.0
  %2979 = vmatpush1.msra.mxu0 0.0
  %2980 = vmatprep.subr.mxu0 0.0
  %2981 = vmatpush1.msra.mxu0 0.0
  %2982 = vmatprep.subr.mxu0 0.0
  %2983 = vmatpush1.msra.mxu0 0.0
  %2984 = vmatprep.subr.mxu0 0.0
  %2985 = vmatpush1.msra.mxu0 0.0
  %2986 = vmatprep.subr.mxu0 0.0
  %2987 = vmatpush1.msra.mxu0 0.0
  %2988 = vmatprep.subr.mxu0 0.0
  %2989 = vmatpush1.msra.mxu0 0.0
  %2990 = vmatprep.subr.mxu0 0.0
  %2991 = vmatpush1.msra.mxu0 0.0
  %2992 = vmatprep.subr.mxu0 0.0
  %2993 = vmatpush1.msra.mxu0 0.0
  %2994 = vmatprep.mubr.f32.mxu0 0.0
  %v2995 = vand.u32 %v2465, 4294901760
  %v2996 = vsub.f32 %v2465, %v2995
  %2997 = vmatmul.mubr.f32.gmra.mrb[0].mxu0 %v2996
  %v2998 = vpop.f32.mrb[0].mxu0
  %v2999 = vadd.f32 %v2829, %v2998
  %v3000 = vpop.f32.mrb[0].mxu0
  %3001 = vmatprep.mubr.f32.mxu0 0.0
  %v3002 = vand.u32 %v2468, 4294901760
  %v3003 = vsub.f32 %v2468, %v3002
  %3004 = vmatmul.mubr.f32.gmra.mrb[0].mxu0 %v3003
  %v3005 = vpop.f32.mrb[0].mxu0
  %v3006 = vadd.f32 %v2835, %v3005
  %v3007 = vpop.f32.mrb[0].mxu0
  %3008 = vmatprep.mubr.f32.mxu0 0.0
  %v3009 = vand.u32 %v2471, 4294901760
  %v3010 = vsub.f32 %v2471, %v3009
  %3011 = vmatmul.mubr.f32.gmra.mrb[0].mxu0 %v3010
  %v3012 = vpop.f32.mrb[0].mxu0
  %v3013 = vadd.f32 %v2841, %v3012
  %v3014 = vpop.f32.mrb[0].mxu0
  %3015 = vmatprep.mubr.f32.mxu0 0.0
  %v3016 = vand.u32 %v2474, 4294901760
  %v3017 = vsub.f32 %v2474, %v3016
  %3018 = vmatmul.mubr.f32.gmra.mrb[0].mxu0 %v3017
  %v3019 = vpop.f32.mrb[0].mxu0
  %v3020 = vadd.f32 %v2847, %v3019
  %v3021 = vpop.f32.mrb[0].mxu0
  %3022 = vmatprep.mubr.f32.mxu0 0.0
  %v3023 = vand.u32 %v2477, 4294901760
  %v3024 = vsub.f32 %v2477, %v3023
  %3025 = vmatmul.mubr.f32.gmra.mrb[0].mxu0 %v3024
  %v3026 = vpop.f32.mrb[0].mxu0
  %v3027 = vadd.f32 %v2853, %v3026
  %v3028 = vpop.f32.mrb[0].mxu0
  %3029 = vmatprep.mubr.f32.mxu0 0.0
  %v3030 = vand.u32 %v2480, 4294901760
  %v3031 = vsub.f32 %v2480, %v3030
  %3032 = vmatmul.mubr.f32.gmra.mrb[0].mxu0 %v3031
  %v3033 = vpop.f32.mrb[0].mxu0
  %v3034 = vadd.f32 %v2859, %v3033
  %v3035 = vpop.f32.mrb[0].mxu0
  %3036 = vmatprep.mubr.f32.mxu0 0.0
  %v3037 = vand.u32 %v2483, 4294901760
  %v3038 = vsub.f32 %v2483, %v3037
  %3039 = vmatmul.mubr.f32.gmra.mrb[0].mxu0 %v3038
  %v3040 = vpop.f32.mrb[0].mxu0
  %v3041 = vadd.f32 %v2865, %v3040
  %v3042 = vpop.f32.mrb[0].mxu0
  %3043 = vmatprep.mubr.f32.mxu0 0.0
  %v3044 = vand.u32 %v2486, 4294901760
  %v3045 = vsub.f32 %v2486, %v3044
  %3046 = vmatmul.mubr.f32.gmra.mrb[0].mxu0 %v3045
  %v3047 = vpop.f32.mrb[0].mxu0
  %v3048 = vadd.f32 %v2871, %v3047
  %v3049 = vpop.f32.mrb[0].mxu0
  %3050 = vmatprep.mubr.f32.mxu0 0.0
  %v3051 = vand.u32 %v2489, 4294901760
  %v3052 = vsub.f32 %v2489, %v3051
  %3053 = vmatmul.mubr.f32.gmra.mrb[0].mxu0 %v3052
  %v3054 = vpop.f32.mrb[0].mxu0
  %v3055 = vadd.f32 %v2877, %v3054
  %v3056 = vpop.f32.mrb[0].mxu0
  %3057 = vmatprep.mubr.f32.mxu0 0.0
  %v3058 = vand.u32 %v2492, 4294901760
  %v3059 = vsub.f32 %v2492, %v3058
  %3060 = vmatmul.mubr.f32.gmra.mrb[0].mxu0 %v3059
  %v3061 = vpop.f32.mrb[0].mxu0
  %v3062 = vadd.f32 %v2883, %v3061
  %v3063 = vpop.f32.mrb[0].mxu0
  %3064 = vmatprep.mubr.f32.mxu0 0.0
  %v3065 = vand.u32 %v2495, 4294901760
  %v3066 = vsub.f32 %v2495, %v3065
  %3067 = vmatmul.mubr.f32.gmra.mrb[0].mxu0 %v3066
  %v3068 = vpop.f32.mrb[0].mxu0
  %v3069 = vadd.f32 %v2889, %v3068
  %v3070 = vpop.f32.mrb[0].mxu0
  %3071 = vmatprep.mubr.f32.mxu0 0.0
  %v3072 = vand.u32 %v2498, 4294901760
  %v3073 = vsub.f32 %v2498, %v3072
  %3074 = vmatmul.mubr.f32.gmra.mrb[0].mxu0 %v3073
  %v3075 = vpop.f32.mrb[0].mxu0
  %v3076 = vadd.f32 %v2895, %v3075
  %v3077 = vpop.f32.mrb[0].mxu0
  %3078 = vmatprep.mubr.f32.mxu0 0.0
  %v3079 = vand.u32 %v2501, 4294901760
  %v3080 = vsub.f32 %v2501, %v3079
  %3081 = vmatmul.mubr.f32.gmra.mrb[0].mxu0 %v3080
  %v3082 = vpop.f32.mrb[0].mxu0
  %v3083 = vadd.f32 %v2901, %v3082
  %v3084 = vpop.f32.mrb[0].mxu0
  %3085 = vmatprep.mubr.f32.mxu0 0.0
  %v3086 = vand.u32 %v2504, 4294901760
  %v3087 = vsub.f32 %v2504, %v3086
  %3088 = vmatmul.mubr.f32.gmra.mrb[0].mxu0 %v3087
  %v3089 = vpop.f32.mrb[0].mxu0
  %v3090 = vadd.f32 %v2907, %v3089
  %v3091 = vpop.f32.mrb[0].mxu0
  %3092 = vmatprep.mubr.f32.mxu0 0.0
  %v3093 = vand.u32 %v2507, 4294901760
  %v3094 = vsub.f32 %v2507, %v3093
  %3095 = vmatmul.mubr.f32.gmra.mrb[0].mxu0 %v3094
  %v3096 = vpop.f32.mrb[0].mxu0
  %v3097 = vadd.f32 %v2913, %v3096
  %v3098 = vpop.f32.mrb[0].mxu0
  %3099 = vmatprep.mubr.f32.mxu0 0.0
  %v3100 = vand.u32 %v2510, 4294901760
  %v3101 = vsub.f32 %v2510, %v3100
  %3102 = vmatmul.mubr.f32.gmra.mrb[0].mxu0 %v3101
  %v3103 = vpop.f32.mrb[0].mxu0
  %v3104 = vadd.f32 %v2919, %v3103
  %v3105 = vpop.f32.mrb[0].mxu0
  %3106 = vdwg.mxu0
  %3107 = vmatprep.subr.mxu0 0.0
  %v3108 = vand.u32 %v2453, 4294901760
  %3109 = vmatpush1.msra.mxu0 %v3108
  %3110 = vmatprep.subr.mxu0 0.0
  %v3111 = vand.u32 %v2454, 4294901760
  %3112 = vmatpush1.msra.mxu0 %v3111
  %3113 = vmatprep.subr.mxu0 0.0
  %v3114 = vand.u32 %v2455, 4294901760
  %3115 = vmatpush1.msra.mxu0 %v3114
  %3116 = vmatprep.subr.mxu0 0.0
  %v3117 = vand.u32 %v2456, 4294901760
  %3118 = vmatpush1.msra.mxu0 %v3117
  %3119 = vmatprep.subr.mxu0 0.0
  %3120 = vmatpush1.msra.mxu0 0.0
  %3121 = vmatprep.subr.mxu0 0.0
  %3122 = vmatpush1.msra.mxu0 0.0
  %3123 = vmatprep.subr.mxu0 0.0
  %3124 = vmatpush1.msra.mxu0 0.0
  %3125 = vmatprep.subr.mxu0 0.0
  %3126 = vmatpush1.msra.mxu0 0.0
  %3127 = vmatprep.subr.mxu0 0.0
  %3128 = vmatpush1.msra.mxu0 0.0
  %3129 = vmatprep.subr.mxu0 0.0
  %3130 = vmatpush1.msra.mxu0 0.0
  %3131 = vmatprep.subr.mxu0 0.0
  %3132 = vmatpush1.msra.mxu0 0.0
  %3133 = vmatprep.subr.mxu0 0.0
  %3134 = vmatpush1.msra.mxu0 0.0
  %3135 = vmatprep.subr.mxu0 0.0
  %3136 = vmatpush1.msra.mxu0 0.0
  %3137 = vmatprep.subr.mxu0 0.0
  %3138 = vmatpush1.msra.mxu0 0.0
  %3139 = vmatprep.subr.mxu0 0.0
  %3140 = vmatpush1.msra.mxu0 0.0
  %3141 = vmatprep.subr.mxu0 0.0
  %3142 = vmatpush1.msra.mxu0 0.0
  %3143 = vmatprep.subr.mxu0 0.0
  %3144 = vmatpush1.msra.mxu0 0.0
  %3145 = vmatprep.subr.mxu0 0.0
  %3146 = vmatpush1.msra.mxu0 0.0
  %3147 = vmatprep.subr.mxu0 0.0
  %3148 = vmatpush1.msra.mxu0 0.0
  %3149 = vmatprep.subr.mxu0 0.0
  %3150 = vmatpush1.msra.mxu0 0.0
  %3151 = vmatprep.subr.mxu0 0.0
  %3152 = vmatpush1.msra.mxu0 0.0
  %3153 = vmatprep.subr.mxu0 0.0
  %3154 = vmatpush1.msra.mxu0 0.0
  %3155 = vmatprep.subr.mxu0 0.0
  %3156 = vmatpush1.msra.mxu0 0.0
  %3157 = vmatprep.subr.mxu0 0.0
  %3158 = vmatpush1.msra.mxu0 0.0
  %3159 = vmatprep.subr.mxu0 0.0
  %3160 = vmatpush1.msra.mxu0 0.0
  %3161 = vmatprep.subr.mxu0 0.0
  %3162 = vmatpush1.msra.mxu0 0.0
  %3163 = vmatprep.subr.mxu0 0.0
  %3164 = vmatpush1.msra.mxu0 0.0
  %3165 = vmatprep.subr.mxu0 0.0
  %3166 = vmatpush1.msra.mxu0 0.0
  %3167 = vmatprep.subr.mxu0 0.0
  %3168 = vmatpush1.msra.mxu0 0.0
  %3169 = vmatprep.subr.mxu0 0.0
  %3170 = vmatpush1.msra.mxu0 0.0
  %3171 = vmatprep.subr.mxu0 0.0
  %3172 = vmatpush1.msra.mxu0 0.0
  %3173 = vmatprep.subr.mxu0 0.0
  %3174 = vmatpush1.msra.mxu0 0.0
  %3175 = vmatprep.mubr.f32.mxu0 0.0
  %v3176 = vand.u32 %v2465, 4294901760
  %v3177 = vsub.f32 %v2465, %v3176
  %v3178 = vand.u32 %v3177, 4294901760
  %3179 = vmatmul.mubr.f32.gmra.mrb[0].mxu0 %v3178
  %v3180 = vpop.f32.mrb[0].mxu0
  %v3181 = vadd.f32 %v2999, %v3180
  %v3182 = vpop.f32.mrb[0].mxu0
  %3183 = vmatprep.mubr.f32.mxu0 0.0
  %v3184 = vand.u32 %v2468, 4294901760
  %v3185 = vsub.f32 %v2468, %v3184
  %v3186 = vand.u32 %v3185, 4294901760
  %3187 = vmatmul.mubr.f32.gmra.mrb[0].mxu0 %v3186
  %v3188 = vpop.f32.mrb[0].mxu0
  %v3189 = vadd.f32 %v3006, %v3188
  %v3190 = vpop.f32.mrb[0].mxu0
  %3191 = vmatprep.mubr.f32.mxu0 0.0
  %v3192 = vand.u32 %v2471, 4294901760
  %v3193 = vsub.f32 %v2471, %v3192
  %v3194 = vand.u32 %v3193, 4294901760
  %3195 = vmatmul.mubr.f32.gmra.mrb[0].mxu0 %v3194
  %v3196 = vpop.f32.mrb[0].mxu0
  %v3197 = vadd.f32 %v3013, %v3196
  %v3198 = vpop.f32.mrb[0].mxu0
  %3199 = vmatprep.mubr.f32.mxu0 0.0
  %v3200 = vand.u32 %v2474, 4294901760
  %v3201 = vsub.f32 %v2474, %v3200
  %v3202 = vand.u32 %v3201, 4294901760
  %3203 = vmatmul.mubr.f32.gmra.mrb[0].mxu0 %v3202
  %v3204 = vpop.f32.mrb[0].mxu0
  %v3205 = vadd.f32 %v3020, %v3204
  %v3206 = vpop.f32.mrb[0].mxu0
  %3207 = vmatprep.mubr.f32.mxu0 0.0
  %v3208 = vand.u32 %v2477, 4294901760
  %v3209 = vsub.f32 %v2477, %v3208
  %v3210 = vand.u32 %v3209, 4294901760
  %3211 = vmatmul.mubr.f32.gmra.mrb[0].mxu0 %v3210
  %v3212 = vpop.f32.mrb[0].mxu0
  %v3213 = vadd.f32 %v3027, %v3212
  %v3214 = vpop.f32.mrb[0].mxu0
  %3215 = vmatprep.mubr.f32.mxu0 0.0
  %v3216 = vand.u32 %v2480, 4294901760
  %v3217 = vsub.f32 %v2480, %v3216
  %v3218 = vand.u32 %v3217, 4294901760
  %3219 = vmatmul.mubr.f32.gmra.mrb[0].mxu0 %v3218
  %v3220 = vpop.f32.mrb[0].mxu0
  %v3221 = vadd.f32 %v3034, %v3220
  %v3222 = vpop.f32.mrb[0].mxu0
  %3223 = vmatprep.mubr.f32.mxu0 0.0
  %v3224 = vand.u32 %v2483, 4294901760
  %v3225 = vsub.f32 %v2483, %v3224
  %v3226 = vand.u32 %v3225, 4294901760
  %3227 = vmatmul.mubr.f32.gmra.mrb[0].mxu0 %v3226
  %v3228 = vpop.f32.mrb[0].mxu0
  %v3229 = vadd.f32 %v3041, %v3228
  %v3230 = vpop.f32.mrb[0].mxu0
  %3231 = vmatprep.mubr.f32.mxu0 0.0
  %v3232 = vand.u32 %v2486, 4294901760
  %v3233 = vsub.f32 %v2486, %v3232
  %v3234 = vand.u32 %v3233, 4294901760
  %3235 = vmatmul.mubr.f32.gmra.mrb[0].mxu0 %v3234
  %v3236 = vpop.f32.mrb[0].mxu0
  %v3237 = vadd.f32 %v3048, %v3236
  %v3238 = vpop.f32.mrb[0].mxu0
  %3239 = vmatprep.mubr.f32.mxu0 0.0
  %v3240 = vand.u32 %v2489, 4294901760
  %v3241 = vsub.f32 %v2489, %v3240
  %v3242 = vand.u32 %v3241, 4294901760
  %3243 = vmatmul.mubr.f32.gmra.mrb[0].mxu0 %v3242
  %v3244 = vpop.f32.mrb[0].mxu0
  %v3245 = vadd.f32 %v3055, %v3244
  %v3246 = vpop.f32.mrb[0].mxu0
  %3247 = vmatprep.mubr.f32.mxu0 0.0
  %v3248 = vand.u32 %v2492, 4294901760
  %v3249 = vsub.f32 %v2492, %v3248
  %v3250 = vand.u32 %v3249, 4294901760
  %3251 = vmatmul.mubr.f32.gmra.mrb[0].mxu0 %v3250
  %v3252 = vpop.f32.mrb[0].mxu0
  %v3253 = vadd.f32 %v3062, %v3252
  %v3254 = vpop.f32.mrb[0].mxu0
  %3255 = vmatprep.mubr.f32.mxu0 0.0
  %v3256 = vand.u32 %v2495, 4294901760
  %v3257 = vsub.f32 %v2495, %v3256
  %v3258 = vand.u32 %v3257, 4294901760
  %3259 = vmatmul.mubr.f32.gmra.mrb[0].mxu0 %v3258
  %v3260 = vpop.f32.mrb[0].mxu0
  %v3261 = vadd.f32 %v3069, %v3260
  %v3262 = vpop.f32.mrb[0].mxu0
  %3263 = vmatprep.mubr.f32.mxu0 0.0
  %v3264 = vand.u32 %v2498, 4294901760
  %v3265 = vsub.f32 %v2498, %v3264
  %v3266 = vand.u32 %v3265, 4294901760
  %3267 = vmatmul.mubr.f32.gmra.mrb[0].mxu0 %v3266
  %v3268 = vpop.f32.mrb[0].mxu0
  %v3269 = vadd.f32 %v3076, %v3268
  %v3270 = vpop.f32.mrb[0].mxu0
  %3271 = vmatprep.mubr.f32.mxu0 0.0
  %v3272 = vand.u32 %v2501, 4294901760
  %v3273 = vsub.f32 %v2501, %v3272
  %v3274 = vand.u32 %v3273, 4294901760
  %3275 = vmatmul.mubr.f32.gmra.mrb[0].mxu0 %v3274
  %v3276 = vpop.f32.mrb[0].mxu0
  %v3277 = vadd.f32 %v3083, %v3276
  %v3278 = vpop.f32.mrb[0].mxu0
  %3279 = vmatprep.mubr.f32.mxu0 0.0
  %v3280 = vand.u32 %v2504, 4294901760
  %v3281 = vsub.f32 %v2504, %v3280
  %v3282 = vand.u32 %v3281, 4294901760
  %3283 = vmatmul.mubr.f32.gmra.mrb[0].mxu0 %v3282
  %v3284 = vpop.f32.mrb[0].mxu0
  %v3285 = vadd.f32 %v3090, %v3284
  %v3286 = vpop.f32.mrb[0].mxu0
  %3287 = vmatprep.mubr.f32.mxu0 0.0
  %v3288 = vand.u32 %v2507, 4294901760
  %v3289 = vsub.f32 %v2507, %v3288
  %v3290 = vand.u32 %v3289, 4294901760
  %3291 = vmatmul.mubr.f32.gmra.mrb[0].mxu0 %v3290
  %v3292 = vpop.f32.mrb[0].mxu0
  %v3293 = vadd.f32 %v3097, %v3292
  %v3294 = vpop.f32.mrb[0].mxu0
  %3295 = vmatprep.mubr.f32.mxu0 0.0
  %v3296 = vand.u32 %v2510, 4294901760
  %v3297 = vsub.f32 %v2510, %v3296
  %v3298 = vand.u32 %v3297, 4294901760
  %3299 = vmatmul.mubr.f32.gmra.mrb[0].mxu0 %v3298
  %v3300 = vpop.f32.mrb[0].mxu0
  %v3301 = vadd.f32 %v3104, %v3300
  %v3302 = vpop.f32.mrb[0].mxu0
  %3303 = vdwg.mxu0
  %3304 = vmatprep.subr.mxu0 0.0
  %v3305 = vand.u32 %v2453, 4294901760
  %v3306 = vsub.f32 %v2453, %v3305
  %v3307 = vand.u32 %v3306, 4294901760
  %3308 = vmatpush1.msra.mxu0 %v3307
  %3309 = vmatprep.subr.mxu0 0.0
  %v3310 = vand.u32 %v2454, 4294901760
  %v3311 = vsub.f32 %v2454, %v3310
  %v3312 = vand.u32 %v3311, 4294901760
  %3313 = vmatpush1.msra.mxu0 %v3312
  %3314 = vmatprep.subr.mxu0 0.0
  %v3315 = vand.u32 %v2455, 4294901760
  %v3316 = vsub.f32 %v2455, %v3315
  %v3317 = vand.u32 %v3316, 4294901760
  %3318 = vmatpush1.msra.mxu0 %v3317
  %3319 = vmatprep.subr.mxu0 0.0
  %v3320 = vand.u32 %v2456, 4294901760
  %v3321 = vsub.f32 %v2456, %v3320
  %v3322 = vand.u32 %v3321, 4294901760
  %3323 = vmatpush1.msra.mxu0 %v3322
  %3324 = vmatprep.subr.mxu0 0.0
  %3325 = vmatpush1.msra.mxu0 0.0
  %3326 = vmatprep.subr.mxu0 0.0
  %3327 = vmatpush1.msra.mxu0 0.0
  %3328 = vmatprep.subr.mxu0 0.0
  %3329 = vmatpush1.msra.mxu0 0.0
  %3330 = vmatprep.subr.mxu0 0.0
  %3331 = vmatpush1.msra.mxu0 0.0
  %3332 = vmatprep.subr.mxu0 0.0
  %3333 = vmatpush1.msra.mxu0 0.0
  %3334 = vmatprep.subr.mxu0 0.0
  %3335 = vmatpush1.msra.mxu0 0.0
  %3336 = vmatprep.subr.mxu0 0.0
  %3337 = vmatpush1.msra.mxu0 0.0
  %3338 = vmatprep.subr.mxu0 0.0
  %3339 = vmatpush1.msra.mxu0 0.0
  %3340 = vmatprep.subr.mxu0 0.0
  %3341 = vmatpush1.msra.mxu0 0.0
  %3342 = vmatprep.subr.mxu0 0.0
  %3343 = vmatpush1.msra.mxu0 0.0
  %3344 = vmatprep.subr.mxu0 0.0
  %3345 = vmatpush1.msra.mxu0 0.0
  %3346 = vmatprep.subr.mxu0 0.0
  %3347 = vmatpush1.msra.mxu0 0.0
  %3348 = vmatprep.subr.mxu0 0.0
  %3349 = vmatpush1.msra.mxu0 0.0
  %3350 = vmatprep.subr.mxu0 0.0
  %3351 = vmatpush1.msra.mxu0 0.0
  %3352 = vmatprep.subr.mxu0 0.0
  %3353 = vmatpush1.msra.mxu0 0.0
  %3354 = vmatprep.subr.mxu0 0.0
  %3355 = vmatpush1.msra.mxu0 0.0
  %3356 = vmatprep.subr.mxu0 0.0
  %3357 = vmatpush1.msra.mxu0 0.0
  %3358 = vmatprep.subr.mxu0 0.0
  %3359 = vmatpush1.msra.mxu0 0.0
  %3360 = vmatprep.subr.mxu0 0.0
  %3361 = vmatpush1.msra.mxu0 0.0
  %3362 = vmatprep.subr.mxu0 0.0
  %3363 = vmatpush1.msra.mxu0 0.0
  %3364 = vmatprep.subr.mxu0 0.0
  %3365 = vmatpush1.msra.mxu0 0.0
  %3366 = vmatprep.subr.mxu0 0.0
  %3367 = vmatpush1.msra.mxu0 0.0
  %3368 = vmatprep.subr.mxu0 0.0
  %3369 = vmatpush1.msra.mxu0 0.0
  %3370 = vmatprep.subr.mxu0 0.0
  %3371 = vmatpush1.msra.mxu0 0.0
  %3372 = vmatprep.subr.mxu0 0.0
  %3373 = vmatpush1.msra.mxu0 0.0
  %3374 = vmatprep.subr.mxu0 0.0
  %3375 = vmatpush1.msra.mxu0 0.0
  %3376 = vmatprep.subr.mxu0 0.0
  %3377 = vmatpush1.msra.mxu0 0.0
  %3378 = vmatprep.subr.mxu0 0.0
  %3379 = vmatpush1.msra.mxu0 0.0
  %3380 = vmatprep.mubr.f32.mxu0 0.0
  %v3381 = vand.u32 %v2465, 4294901760
  %3382 = vmatmul.mubr.f32.gmra.mrb[0].mxu0 %v3381
  %v3383 = vpop.f32.mrb[0].mxu0
  %v3384 = vadd.f32 %v3181, %v3383
  %v3385 = vpop.f32.mrb[0].mxu0
  %3386 = vmatprep.mubr.f32.mxu0 0.0
  %v3387 = vand.u32 %v2468, 4294901760
  %3388 = vmatmul.mubr.f32.gmra.mrb[0].mxu0 %v3387
  %v3389 = vpop.f32.mrb[0].mxu0
  %v3390 = vadd.f32 %v3189, %v3389
  %v3391 = vpop.f32.mrb[0].mxu0
  %3392 = vmatprep.mubr.f32.mxu0 0.0
  %v3393 = vand.u32 %v2471, 4294901760
  %3394 = vmatmul.mubr.f32.gmra.mrb[0].mxu0 %v3393
  %v3395 = vpop.f32.mrb[0].mxu0
  %v3396 = vadd.f32 %v3197, %v3395
  %v3397 = vpop.f32.mrb[0].mxu0
  %3398 = vmatprep.mubr.f32.mxu0 0.0
  %v3399 = vand.u32 %v2474, 4294901760
  %3400 = vmatmul.mubr.f32.gmra.mrb[0].mxu0 %v3399
  %v3401 = vpop.f32.mrb[0].mxu0
  %v3402 = vadd.f32 %v3205, %v3401
  %v3403 = vpop.f32.mrb[0].mxu0
  %3404 = vmatprep.mubr.f32.mxu0 0.0
  %v3405 = vand.u32 %v2477, 4294901760
  %3406 = vmatmul.mubr.f32.gmra.mrb[0].mxu0 %v3405
  %v3407 = vpop.f32.mrb[0].mxu0
  %v3408 = vadd.f32 %v3213, %v3407
  %v3409 = vpop.f32.mrb[0].mxu0
  %3410 = vmatprep.mubr.f32.mxu0 0.0
  %v3411 = vand.u32 %v2480, 4294901760
  %3412 = vmatmul.mubr.f32.gmra.mrb[0].mxu0 %v3411
  %v3413 = vpop.f32.mrb[0].mxu0
  %v3414 = vadd.f32 %v3221, %v3413
  %v3415 = vpop.f32.mrb[0].mxu0
  %3416 = vmatprep.mubr.f32.mxu0 0.0
  %v3417 = vand.u32 %v2483, 4294901760
  %3418 = vmatmul.mubr.f32.gmra.mrb[0].mxu0 %v3417
  %v3419 = vpop.f32.mrb[0].mxu0
  %v3420 = vadd.f32 %v3229, %v3419
  %v3421 = vpop.f32.mrb[0].mxu0
  %3422 = vmatprep.mubr.f32.mxu0 0.0
  %v3423 = vand.u32 %v2486, 4294901760
  %3424 = vmatmul.mubr.f32.gmra.mrb[0].mxu0 %v3423
  %v3425 = vpop.f32.mrb[0].mxu0
  %v3426 = vadd.f32 %v3237, %v3425
  %v3427 = vpop.f32.mrb[0].mxu0
  %3428 = vmatprep.mubr.f32.mxu0 0.0
  %v3429 = vand.u32 %v2489, 4294901760
  %3430 = vmatmul.mubr.f32.gmra.mrb[0].mxu0 %v3429
  %v3431 = vpop.f32.mrb[0].mxu0
  %v3432 = vadd.f32 %v3245, %v3431
  %v3433 = vpop.f32.mrb[0].mxu0
  %3434 = vmatprep.mubr.f32.mxu0 0.0
  %v3435 = vand.u32 %v2492, 4294901760
  %3436 = vmatmul.mubr.f32.gmra.mrb[0].mxu0 %v3435
  %v3437 = vpop.f32.mrb[0].mxu0
  %v3438 = vadd.f32 %v3253, %v3437
  %v3439 = vpop.f32.mrb[0].mxu0
  %3440 = vmatprep.mubr.f32.mxu0 0.0
  %v3441 = vand.u32 %v2495, 4294901760
  %3442 = vmatmul.mubr.f32.gmra.mrb[0].mxu0 %v3441
  %v3443 = vpop.f32.mrb[0].mxu0
  %v3444 = vadd.f32 %v3261, %v3443
  %v3445 = vpop.f32.mrb[0].mxu0
  %3446 = vmatprep.mubr.f32.mxu0 0.0
  %v3447 = vand.u32 %v2498, 4294901760
  %3448 = vmatmul.mubr.f32.gmra.mrb[0].mxu0 %v3447
  %v3449 = vpop.f32.mrb[0].mxu0
  %v3450 = vadd.f32 %v3269, %v3449
  %v3451 = vpop.f32.mrb[0].mxu0
  %3452 = vmatprep.mubr.f32.mxu0 0.0
  %v3453 = vand.u32 %v2501, 4294901760
  %3454 = vmatmul.mubr.f32.gmra.mrb[0].mxu0 %v3453
  %v3455 = vpop.f32.mrb[0].mxu0
  %v3456 = vadd.f32 %v3277, %v3455
  %v3457 = vpop.f32.mrb[0].mxu0
  %3458 = vmatprep.mubr.f32.mxu0 0.0
  %v3459 = vand.u32 %v2504, 4294901760
  %3460 = vmatmul.mubr.f32.gmra.mrb[0].mxu0 %v3459
  %v3461 = vpop.f32.mrb[0].mxu0
  %v3462 = vadd.f32 %v3285, %v3461
  %v3463 = vpop.f32.mrb[0].mxu0
  %3464 = vmatprep.mubr.f32.mxu0 0.0
  %v3465 = vand.u32 %v2507, 4294901760
  %3466 = vmatmul.mubr.f32.gmra.mrb[0].mxu0 %v3465
  %v3467 = vpop.f32.mrb[0].mxu0
  %v3468 = vadd.f32 %v3293, %v3467
  %v3469 = vpop.f32.mrb[0].mxu0
  %3470 = vmatprep.mubr.f32.mxu0 0.0
  %v3471 = vand.u32 %v2510, 4294901760
  %3472 = vmatmul.mubr.f32.gmra.mrb[0].mxu0 %v3471
  %v3473 = vpop.f32.mrb[0].mxu0
  %v3474 = vadd.f32 %v3301, %v3473
  %v3475 = vpop.f32.mrb[0].mxu0
  %3476 = vdwg.mxu0
  %3477 = vmatprep.subr.mxu0 0.0
  %v3478 = vand.u32 %v2453, 4294901760
  %3479 = vmatpush1.msra.mxu0 %v3478
  %3480 = vmatprep.subr.mxu0 0.0
  %v3481 = vand.u32 %v2454, 4294901760
  %3482 = vmatpush1.msra.mxu0 %v3481
  %3483 = vmatprep.subr.mxu0 0.0
  %v3484 = vand.u32 %v2455, 4294901760
  %3485 = vmatpush1.msra.mxu0 %v3484
  %3486 = vmatprep.subr.mxu0 0.0
  %v3487 = vand.u32 %v2456, 4294901760
  %3488 = vmatpush1.msra.mxu0 %v3487
  %3489 = vmatprep.subr.mxu0 0.0
  %3490 = vmatpush1.msra.mxu0 0.0
  %3491 = vmatprep.subr.mxu0 0.0
  %3492 = vmatpush1.msra.mxu0 0.0
  %3493 = vmatprep.subr.mxu0 0.0
  %3494 = vmatpush1.msra.mxu0 0.0
  %3495 = vmatprep.subr.mxu0 0.0
  %3496 = vmatpush1.msra.mxu0 0.0
  %3497 = vmatprep.subr.mxu0 0.0
  %3498 = vmatpush1.msra.mxu0 0.0
  %3499 = vmatprep.subr.mxu0 0.0
  %3500 = vmatpush1.msra.mxu0 0.0
  %3501 = vmatprep.subr.mxu0 0.0
  %3502 = vmatpush1.msra.mxu0 0.0
  %3503 = vmatprep.subr.mxu0 0.0
  %3504 = vmatpush1.msra.mxu0 0.0
  %3505 = vmatprep.subr.mxu0 0.0
  %3506 = vmatpush1.msra.mxu0 0.0
  %3507 = vmatprep.subr.mxu0 0.0
  %3508 = vmatpush1.msra.mxu0 0.0
  %3509 = vmatprep.subr.mxu0 0.0
  %3510 = vmatpush1.msra.mxu0 0.0
  %3511 = vmatprep.subr.mxu0 0.0
  %3512 = vmatpush1.msra.mxu0 0.0
  %3513 = vmatprep.subr.mxu0 0.0
  %3514 = vmatpush1.msra.mxu0 0.0
  %3515 = vmatprep.subr.mxu0 0.0
  %3516 = vmatpush1.msra.mxu0 0.0
  %3517 = vmatprep.subr.mxu0 0.0
  %3518 = vmatpush1.msra.mxu0 0.0
  %3519 = vmatprep.subr.mxu0 0.0
  %3520 = vmatpush1.msra.mxu0 0.0
  %3521 = vmatprep.subr.mxu0 0.0
  %3522 = vmatpush1.msra.mxu0 0.0
  %3523 = vmatprep.subr.mxu0 0.0
  %3524 = vmatpush1.msra.mxu0 0.0
  %3525 = vmatprep.subr.mxu0 0.0
  %3526 = vmatpush1.msra.mxu0 0.0
  %3527 = vmatprep.subr.mxu0 0.0
  %3528 = vmatpush1.msra.mxu0 0.0
  %3529 = vmatprep.subr.mxu0 0.0
  %3530 = vmatpush1.msra.mxu0 0.0
  %3531 = vmatprep.subr.mxu0 0.0
  %3532 = vmatpush1.msra.mxu0 0.0
  %3533 = vmatprep.subr.mxu0 0.0
  %3534 = vmatpush1.msra.mxu0 0.0
  %3535 = vmatprep.subr.mxu0 0.0
  %3536 = vmatpush1.msra.mxu0 0.0
  %3537 = vmatprep.subr.mxu0 0.0
  %3538 = vmatpush1.msra.mxu0 0.0
  %3539 = vmatprep.subr.mxu0 0.0
  %3540 = vmatpush1.msra.mxu0 0.0
  %3541 = vmatprep.subr.mxu0 0.0
  %3542 = vmatpush1.msra.mxu0 0.0
  %3543 = vmatprep.subr.mxu0 0.0
  %3544 = vmatpush1.msra.mxu0 0.0
  %3545 = vmatprep.mubr.f32.mxu0 0.0
  %v3546 = vand.u32 %v2465, 4294901760
  %3547 = vmatmul.mubr.f32.gmra.mrb[0].mxu0 %v3546
  %v3548 = vpop.f32.mrb[0].mxu0
  %v3549 = vadd.f32 %v3384, %v3548
  %v3550 = vpop.f32.mrb[0].mxu0
  %3551 = vmatprep.mubr.f32.mxu0 0.0
  %v3552 = vand.u32 %v2468, 4294901760
  %3553 = vmatmul.mubr.f32.gmra.mrb[0].mxu0 %v3552
  %v3554 = vpop.f32.mrb[0].mxu0
  %v3555 = vadd.f32 %v3390, %v3554
  %v3556 = vpop.f32.mrb[0].mxu0
  %3557 = vmatprep.mubr.f32.mxu0 0.0
  %v3558 = vand.u32 %v2471, 4294901760
  %3559 = vmatmul.mubr.f32.gmra.mrb[0].mxu0 %v3558
  %v3560 = vpop.f32.mrb[0].mxu0
  %v3561 = vadd.f32 %v3396, %v3560
  %v3562 = vpop.f32.mrb[0].mxu0
  %3563 = vmatprep.mubr.f32.mxu0 0.0
  %v3564 = vand.u32 %v2474, 4294901760
  %3565 = vmatmul.mubr.f32.gmra.mrb[0].mxu0 %v3564
  %v3566 = vpop.f32.mrb[0].mxu0
  %v3567 = vadd.f32 %v3402, %v3566
  %v3568 = vpop.f32.mrb[0].mxu0
  %3569 = vmatprep.mubr.f32.mxu0 0.0
  %v3570 = vand.u32 %v2477, 4294901760
  %3571 = vmatmul.mubr.f32.gmra.mrb[0].mxu0 %v3570
  %v3572 = vpop.f32.mrb[0].mxu0
  %v3573 = vadd.f32 %v3408, %v3572
  %v3574 = vpop.f32.mrb[0].mxu0
  %3575 = vmatprep.mubr.f32.mxu0 0.0
  %v3576 = vand.u32 %v2480, 4294901760
  %3577 = vmatmul.mubr.f32.gmra.mrb[0].mxu0 %v3576
  %v3578 = vpop.f32.mrb[0].mxu0
  %v3579 = vadd.f32 %v3414, %v3578
  %v3580 = vpop.f32.mrb[0].mxu0
  %3581 = vmatprep.mubr.f32.mxu0 0.0
  %v3582 = vand.u32 %v2483, 4294901760
  %3583 = vmatmul.mubr.f32.gmra.mrb[0].mxu0 %v3582
  %v3584 = vpop.f32.mrb[0].mxu0
  %v3585 = vadd.f32 %v3420, %v3584
  %v3586 = vpop.f32.mrb[0].mxu0
  %3587 = vmatprep.mubr.f32.mxu0 0.0
  %v3588 = vand.u32 %v2486, 4294901760
  %3589 = vmatmul.mubr.f32.gmra.mrb[0].mxu0 %v3588
  %v3590 = vpop.f32.mrb[0].mxu0
  %v3591 = vadd.f32 %v3426, %v3590
  %v3592 = vpop.f32.mrb[0].mxu0
  %3593 = vmatprep.mubr.f32.mxu0 0.0
  %v3594 = vand.u32 %v2489, 4294901760
  %3595 = vmatmul.mubr.f32.gmra.mrb[0].mxu0 %v3594
  %v3596 = vpop.f32.mrb[0].mxu0
  %v3597 = vadd.f32 %v3432, %v3596
  %v3598 = vpop.f32.mrb[0].mxu0
  %3599 = vmatprep.mubr.f32.mxu0 0.0
  %v3600 = vand.u32 %v2492, 4294901760
  %3601 = vmatmul.mubr.f32.gmra.mrb[0].mxu0 %v3600
  %v3602 = vpop.f32.mrb[0].mxu0
  %v3603 = vadd.f32 %v3438, %v3602
  %v3604 = vpop.f32.mrb[0].mxu0
  %3605 = vmatprep.mubr.f32.mxu0 0.0
  %v3606 = vand.u32 %v2495, 4294901760
  %3607 = vmatmul.mubr.f32.gmra.mrb[0].mxu0 %v3606
  %v3608 = vpop.f32.mrb[0].mxu0
  %v3609 = vadd.f32 %v3444, %v3608
  %v3610 = vpop.f32.mrb[0].mxu0
  %3611 = vmatprep.mubr.f32.mxu0 0.0
  %v3612 = vand.u32 %v2498, 4294901760
  %3613 = vmatmul.mubr.f32.gmra.mrb[0].mxu0 %v3612
  %v3614 = vpop.f32.mrb[0].mxu0
  %v3615 = vadd.f32 %v3450, %v3614
  %v3616 = vpop.f32.mrb[0].mxu0
  %3617 = vmatprep.mubr.f32.mxu0 0.0
  %v3618 = vand.u32 %v2501, 4294901760
  %3619 = vmatmul.mubr.f32.gmra.mrb[0].mxu0 %v3618
  %v3620 = vpop.f32.mrb[0].mxu0
  %v3621 = vadd.f32 %v3456, %v3620
  %v3622 = vpop.f32.mrb[0].mxu0
  %3623 = vmatprep.mubr.f32.mxu0 0.0
  %v3624 = vand.u32 %v2504, 4294901760
  %3625 = vmatmul.mubr.f32.gmra.mrb[0].mxu0 %v3624
  %v3626 = vpop.f32.mrb[0].mxu0
  %v3627 = vadd.f32 %v3462, %v3626
  %v3628 = vpop.f32.mrb[0].mxu0
  %3629 = vmatprep.mubr.f32.mxu0 0.0
  %v3630 = vand.u32 %v2507, 4294901760
  %3631 = vmatmul.mubr.f32.gmra.mrb[0].mxu0 %v3630
  %v3632 = vpop.f32.mrb[0].mxu0
  %v3633 = vadd.f32 %v3468, %v3632
  %v3634 = vpop.f32.mrb[0].mxu0
  %3635 = vmatprep.mubr.f32.mxu0 0.0
  %v3636 = vand.u32 %v2510, 4294901760
  %3637 = vmatmul.mubr.f32.gmra.mrb[0].mxu0 %v3636
  %v3638 = vpop.f32.mrb[0].mxu0
  %v3639 = vadd.f32 %v3474, %v3638
  %v3640 = vpop.f32.mrb[0].mxu0
  %3641 = vdwg.mxu0
  %vm3642 = vcmask 130048
  %3643 = vst.msk [vmem:[%s7] sm:$0xff] %vm3642, %v3549
  %3644 = vst.msk [vmem:[%s7 + $0x8] sm:$0xff] %vm3642, %v3555
  %3645 = vst.msk [vmem:[%s7 + $0x10] sm:$0xff] %vm3642, %v3561
  %3646 = vst.msk [vmem:[%s7 + $0x18] sm:$0xff] %vm3642, %v3567
  %3647 = vst.msk [vmem:[%s7 + $0x20] sm:$0xff] %vm3642, %v3573
  %3648 = vst.msk [vmem:[%s7 + $0x28] sm:$0xff] %vm3642, %v3579
  %3649 = vst.msk [vmem:[%s7 + $0x30] sm:$0xff] %vm3642, %v3585
  %3650 = vst.msk [vmem:[%s7 + $0x38] sm:$0xff] %vm3642, %v3591
  %3651 = vst.msk [vmem:[%s7 + $0x40] sm:$0xff] %vm3642, %v3597
  %3652 = vst.msk [vmem:[%s7 + $0x48] sm:$0xff] %vm3642, %v3603
  %3653 = vst.msk [vmem:[%s7 + $0x50] sm:$0xff] %vm3642, %v3609
  %3654 = vst.msk [vmem:[%s7 + $0x58] sm:$0xff] %vm3642, %v3615
  %3655 = vst.msk [vmem:[%s7 + $0x60] sm:$0xff] %vm3642, %v3621
  %3656 = vst.msk [vmem:[%s7 + $0x68] sm:$0xff] %vm3642, %v3627
  %3657 = vst.msk [vmem:[%s7 + $0x70] sm:$0xff] %vm3642, %v3633
  %3658 = vst.msk [vmem:[%s7 + $0x78] sm:$0xff] %vm3642, %v3639
  // Predicated region
  $region30: #{_mlp_pallas.1} parent=0 // pred_check
    _
  $region31: #{_mlp_pallas.1} parent=0 // pred_check_branch
    %3660 = sbr.rel (0) target = $region33
  $region32: #{_mlp_pallas.1} parent=0 // pred_region
    _
  $region33: #{_mlp_pallas.1} parent=0 // pred_fallthru
    _
  // Predicated region
  $region34: #{_mlp_pallas.1} parent=0 // pred_check
    _
  $region35: #{_mlp_pallas.1} parent=0 // pred_check_branch
    %3662 = sbr.rel (0) target = $region37
  $region36: #{_mlp_pallas.1} parent=0 // pred_region
    _
  $region37: #{_mlp_pallas.1} parent=0 // pred_fallthru
    _

</llo_original>
